<compile_context>
chip_gen: v6e
topology: v6e:2x2x1
jax: 0.10.0
libtpu: 0.0.40
codegen_flags: <defaults>
</compile_context>

<pallas_src>
import functools
import math

import jax
import jax.numpy as jnp
from jax.experimental import pallas as pl
from jax.experimental.pallas import tpu as pltpu


def gpt2_block_kernel(
    # inputs
    x_ref, pk_ref, pv_ref, sel_ref, selt_ref,
    g1_ref, b1_ref,
    wqkv_ref, bqkv_ref, wproj_ref, bproj_ref,
    g2_ref, b2_ref,
    wfc1_ref, bfc1_ref, wfc2_ref, bfc2_ref,
    # outputs
    o_ref, knew_ref, vnew_ref,
    # scratch
    q_s, m_s, l_s, acc_s,
    *, num_heads, head_dim, hidden, past_len, block_p, approx_recip,
):
    f32 = jnp.float32
    p_idx = pl.program_id(1)
    bb = x_ref.shape[0]
    sel = sel_ref[...]      # (H, nh): lane -> head one-hot (segmented score sum)
    selt = selt_ref[...]    # (nh, H): head -> lane broadcast

    def layer_norm(v, g_ref, b_ref):            # biased variance, eps = 1e-5
        mu = jnp.mean(v, axis=-1, keepdims=True)
        var = jnp.mean(jnp.square(v - mu), axis=-1, keepdims=True)
        return ((v - mu) * jax.lax.rsqrt(var + 1e-5)
                * g_ref[...].astype(f32) + b_ref[...].astype(f32))

    # ---- first KV tile only: ln_1 + fused QKV projection, seed online softmax
    @pl.when(p_idx == 0)
    def _init():
        x = x_ref[...].astype(f32)
        xn = layer_norm(x, g1_ref, b1_ref)
        qkv = jnp.dot(xn.astype(wqkv_ref.dtype), wqkv_ref[...],
                      preferred_element_type=f32) + bqkv_ref[...].astype(f32)
        # fold 1/sqrt(head_dim) into q once (instead of scaling every score)
        q = qkv[:, :hidden] * (1.0 / math.sqrt(head_dim))
        k_new = qkv[:, hidden:2 * hidden]
        v_new = qkv[:, 2 * hidden:]
        q_s[...] = q
        knew_ref[...] = k_new.astype(knew_ref.dtype)   # cache-append rows
        vnew_ref[...] = v_new.astype(vnew_ref.dtype)
        # the freshly produced token is one extra softmax column; seed the
        # running (m, l, acc) state with it so the KV loop below is uniform.
        s_new = jnp.dot(q * k_new, sel, preferred_element_type=f32)   # (bb, nh)
        m_s[...] = s_new
        l_s[...] = jnp.ones_like(s_new)
        acc_s[...] = v_new          # per-head weight exp(0)=1 broadcast over H

    # ---- streamed flash-style attention over this KV-cache tile ----
    q = q_s[...]                                    # (bb, H), already scaled
    k_past = pk_ref[...].astype(f32)                # (bb, tp, H)  lane-dense
    v_past = pv_ref[...].astype(f32)
    tp = k_past.shape[1]

    # per-head segmented score: elementwise q*K on the VPU, then the static
    # block-diagonal selector on the MXU (K/V never leave their lane layout).
    prod = q[:, None, :] * k_past                                    # (bb, tp, H)
    s_past = jnp.dot(prod.reshape(bb * tp, hidden), sel,
                     preferred_element_type=f32).reshape(bb, tp, num_heads)

    if past_len % block_p != 0:
        # partial last tile: out-of-bounds rows hold garbage -> mask them out
        pos = p_idx * block_p + jax.lax.broadcasted_iota(jnp.int32, (1, tp, 1), 1)
        valid = pos < past_len
        s_past = jnp.where(valid, s_past, -jnp.inf)
        v_past = jnp.where(valid, v_past, 0.0)

    m_new = jnp.maximum(m_s[...], jnp.max(s_past, axis=1))           # (bb, nh)
    alpha = jnp.exp(m_s[...] - m_new)
    p_past = jnp.exp(s_past - m_new[:, None, :])                     # (bb, tp, nh)
    l_s[...] = alpha * l_s[...] + jnp.sum(p_past, axis=1)
    # broadcast per-head probs back to lane space (selector^T) on the MXU
    w_past = jnp.dot(p_past.reshape(bb * tp, num_heads), selt,
                     preferred_element_type=f32).reshape(bb, tp, hidden)
    alpha_h = jnp.dot(alpha, selt, preferred_element_type=f32)       # (bb, H)
    acc_s[...] = alpha_h * acc_s[...] + jnp.sum(w_past * v_past, axis=1)
    m_s[...] = m_new

    # ---- last KV tile only: c_proj, residual, ln_2, MLP, residual, store ----
    @pl.when(p_idx == pl.num_programs(1) - 1)
    def _finish():
        r = pl.reciprocal(l_s[...], approx=approx_recip)             # (bb, nh) EUP
        r_h = jnp.dot(r, selt, preferred_element_type=f32)           # (bb, H)
        attn = acc_s[...] * r_h
        attn = jnp.dot(attn.astype(wproj_ref.dtype), wproj_ref[...],
                       preferred_element_type=f32) + bproj_ref[...].astype(f32)
        x1 = x_ref[...].astype(f32) + attn                           # residual 1
        xn2 = layer_norm(x1, g2_ref, b2_ref)
        h1 = jnp.dot(xn2.astype(wfc1_ref.dtype), wfc1_ref[...],
                     preferred_element_type=f32) + bfc1_ref[...].astype(f32)
        g = 0.5 * h1 * (1.0 + jax.lax.erf(h1 * 0.7071067811865476))  # exact GELU
        h2 = jnp.dot(g.astype(wfc2_ref.dtype), wfc2_ref[...],
                     preferred_element_type=f32) + bfc2_ref[...].astype(f32)
        o_ref[...] = (x1 + h2).astype(o_ref.dtype)                   # residual 2


def _physical_vmem_bytes():
    try:
        return int(pltpu.get_tpu_info().vmem_capacity_bytes)
    except Exception:
        return 64 * 1024 * 1024     # conservative: v7x has 64 MiB per TensorCore


def _default_block_b(batch, x_dtype):
    sub = 16 if jnp.dtype(x_dtype).itemsize == 2 else 8
    try:
        n_cores = int(getattr(pltpu.get_tpu_info(), "num_cores", 1) or 1)
    except Exception:
        n_cores = 1
    # on v7x (2 TensorCores) split the batch so dimension_semantics="parallel"
    # actually engages the second core; otherwise keep a size-1 batch grid
    # (single TC on v5e/v6e -> avoid the ~0.35us/step grid overhead).
    if n_cores >= 2 and batch % 2 == 0 and (batch // 2) % sub == 0:
        return batch // 2
    return batch


def gpt2_block(x, past_key, past_value, params, *, num_heads,
               block_b=None, block_p=None, param_dtype=None,
               approx_softmax_recip=True, return_new_kv=False):
    B, S, H = x.shape
    assert S == 1, "decode step expects seq_len == 1"
    P = past_key.shape[1]
    assert P >= 1
    head_dim = H // num_heads
    assert head_dim * num_heads == H

    if param_dtype is not None:
        # bf16 weights / KV halve HBM traffic (decode is bandwidth bound);
        # matmuls still accumulate in f32 via preferred_element_type.
        params = {k: v.astype(param_dtype) for k, v in params.items()}
        past_key = past_key.astype(param_dtype)
        past_value = past_value.astype(param_dtype)

    if block_b is None:
        block_b = _default_block_b(B, x.dtype)
    sub_b = 16 if jnp.dtype(x.dtype).itemsize == 2 else 8
    assert B % block_b == 0 and (block_b == B or block_b % sub_b == 0)

    if block_p is None:
        block_p = P if P <= 256 else 256          # multiple of 8 when tiling
    sub_p = 16 if jnp.dtype(past_key.dtype).itemsize == 2 else 8
    assert block_p == P or block_p % sub_p == 0
    n_p = pl.cdiv(P, block_p)

    x2d = x.reshape(B, H)
    # static block-diagonal head selector: sel[j, n] = 1 iff lane j is in head n
    sel = jnp.kron(jnp.eye(num_heads, dtype=jnp.float32),
                   jnp.ones((head_dim, 1), jnp.float32))            # (H, nh)
    selt = sel.T                                                    # (nh, H)

    kernel = functools.partial(
        gpt2_block_kernel, num_heads=num_heads, head_dim=head_dim, hidden=H,
        past_len=P, block_p=block_p, approx_recip=approx_softmax_recip)

    nbytes = lambda a: a.size * a.dtype.itemsize
    weight_bytes = sum(nbytes(v) for v in params.values()) + nbytes(sel) + nbytes(selt)
    kv_bytes = nbytes(past_key) + nbytes(past_value)
    act_bytes = B * H * x.dtype.itemsize

    # VMEM budget: single-buffered constants + double-buffered KV tiles +
    # scratch + f32 intermediates, clamped below the chip's *physical*
    # per-core VMEM (64 MiB on v7x, 128 MiB on v5e/v6e).
    kv_tile = 2 * 2 * block_b * block_p * H * past_key.dtype.itemsize
    scratch = block_b * (2 * H + 2 * num_heads) * 4
    temps = 2 * block_b * block_p * H * 4          # prod / w_past f32 temporaries
    est = weight_bytes + kv_tile + 8 * act_bytes + scratch + temps + (4 << 20)
    vmem_limit = int(min(max(est, 16 << 20), int(_physical_vmem_bytes() * 0.9)))

    cost = pl.CostEstimate(
        flops=int(2 * B * (12 * H * H + 2 * P * H) + 4 * B * P * num_heads),
        transcendentals=int(B * (4 * H + (P + 1) * num_heads + 4)),
        bytes_accessed=int(weight_bytes + kv_bytes + 6 * act_bytes),
    )

    out_shapes = (jax.ShapeDtypeStruct((B, H), x.dtype),    # block output
                  jax.ShapeDtypeStruct((B, H), x.dtype),    # new K row
                  jax.ShapeDtypeStruct((B, H), x.dtype))    # new V row

    def run(single_buffer_consts):
        def const(shape):
            idx = lambda *_: (0,) * len(shape)
            if single_buffer_consts:
                # constant-index blocks never change across grid steps: one
                # VMEM buffer is enough (halves the weight footprint).
                return pl.BlockSpec(shape, idx, pipeline_mode=pl.Buffered(1))
            return pl.BlockSpec(shape, idx)

        # TODO(synk): for very large H (GPT-2 XL on v7x) additionally stream
        # wfc1/wfc2 over their 4H axis via an extra 'arbitrary' grid axis.
        return pl.pallas_call(
            kernel,
            out_shape=out_shapes,
            grid=(B // block_b, n_p),
            in_specs=[
                pl.BlockSpec((block_b, H), lambda b, p: (b, 0)),              # x
                pl.BlockSpec((block_b, block_p, H), lambda b, p: (b, p, 0)),  # K cache
                pl.BlockSpec((block_b, block_p, H), lambda b, p: (b, p, 0)),  # V cache
                const((H, num_heads)),                                        # selector
                const((num_heads, H)),                                        # selector^T
                const((1, H)), const((1, H)),                                 # ln1
                const((H, 3 * H)), const((1, 3 * H)),                         # c_attn
                const((H, H)), const((1, H)),                                 # c_proj
                const((1, H)), const((1, H)),                                 # ln2
                const((H, 4 * H)), const((1, 4 * H)),                         # fc1
                const((4 * H, H)), const((1, H)),                             # fc2
            ],
            out_specs=(
                pl.BlockSpec((block_b, H), lambda b, p: (b, 0)),   # lane-dense output
                pl.BlockSpec((block_b, H), lambda b, p: (b, 0)),   # new K row
                pl.BlockSpec((block_b, H), lambda b, p: (b, 0)),   # new V row
            ),
            scratch_shapes=[
                pltpu.VMEM((block_b, H), jnp.float32),             # q (pre-scaled)
                pltpu.VMEM((block_b, num_heads), jnp.float32),     # running max m
                pltpu.VMEM((block_b, num_heads), jnp.float32),     # running sum l
                pltpu.VMEM((block_b, H), jnp.float32),             # running acc
            ],
            compiler_params=pltpu.CompilerParams(
                dimension_semantics=("parallel", "arbitrary"),
                vmem_limit_bytes=vmem_limit),
            cost_estimate=cost,
        )(x2d, past_key, past_value, sel, selt,
          params["g1"], params["b1"],
          params["wqkv"], params["bqkv"], params["wproj"], params["bproj"],
          params["g2"], params["b2"],
          params["wfc1"], params["bfc1"], params["wfc2"], params["bfc2"])

    try:
        out, k_new, v_new = run(True)
    except Exception:
        # older jax without BlockSpec(pipeline_mode=...): default buffering
        out, k_new, v_new = run(False)

    out = out.reshape(B, 1, H)
    if return_new_kv:
        return out, k_new.reshape(B, 1, H), v_new.reshape(B, 1, H)
    return out


# -------------------- pure-JAX reference (matches PyTorch GPT2Block) ----------
def gpt2_block_ref(x, past_key, past_value, params, *, num_heads):
    B, S, H = x.shape
    hd = H // num_heads

    def ln(v, g, b):
        mu = jnp.mean(v, axis=-1, keepdims=True)
        var = jnp.mean(jnp.square(v - mu), axis=-1, keepdims=True)
        return (v - mu) * jax.lax.rsqrt(var + 1e-5) * g + b

    xn = ln(x, params["g1"], params["b1"])
    qkv = xn @ params["wqkv"] + params["bqkv"]
    q, k, v = jnp.split(qkv, 3, axis=-1)
    k = jnp.concatenate([past_key, k], axis=1)
    v = jnp.concatenate([past_value, v], axis=1)

    def split_heads(t):
        return t.reshape(t.shape[0], t.shape[1], num_heads, hd).transpose(0, 2, 1, 3)

    qh, kh, vh = split_heads(q), split_heads(k), split_heads(v)
    s = jnp.einsum("bnqd,bnkd->bnqk", qh, kh) / math.sqrt(hd)
    p = jax.nn.softmax(s, axis=-1)
    o = jnp.einsum("bnqk,bnkd->bnqd", p, vh)
    o = o.transpose(0, 2, 1, 3).reshape(B, 1, H)
    x1 = x + (o @ params["wproj"] + params["bproj"])

    xn2 = ln(x1, params["g2"], params["b2"])
    h1 = xn2 @ params["wfc1"] + params["bfc1"]
    g = 0.5 * h1 * (1.0 + jax.lax.erf(h1 * 0.7071067811865476))
    return x1 + (g @ params["wfc2"] + params["bfc2"])


def _init_linear(kw, kb, fan_in, fan_out):
    # torch.nn.Linear default init: U(-1/sqrt(fan_in), 1/sqrt(fan_in))
    bound = 1.0 / math.sqrt(fan_in)
    w = jax.random.uniform(kw, (fan_in, fan_out), jnp.float32, -bound, bound)
    b = jax.random.uniform(kb, (1, fan_out), jnp.float32, -bound, bound)
    return w, b


if __name__ == "__main__":
    B, H, NUM_HEADS, INDEX = 2, 32, 4, 8   # past length = INDEX - 1 = 7
    key = jax.random.PRNGKey(0)
    ks = jax.random.split(key, 14)

    wqkv, bqkv = _init_linear(ks[0], ks[1], H, 3 * H)
    wproj, bproj = _init_linear(ks[2], ks[3], H, H)
    wfc1, bfc1 = _init_linear(ks[4], ks[5], H, 4 * H)
    wfc2, bfc2 = _init_linear(ks[6], ks[7], 4 * H, H)

    params = dict(
        g1=jnp.ones((1, H), jnp.float32), b1=jnp.zeros((1, H), jnp.float32),
        g2=jnp.ones((1, H), jnp.float32), b2=jnp.zeros((1, H), jnp.float32),
        wqkv=wqkv, bqkv=bqkv, wproj=wproj, bproj=bproj,
        wfc1=wfc1, bfc1=bfc1, wfc2=wfc2, bfc2=bfc2,
    )

    past_key = jax.random.uniform(ks[8], (B, INDEX - 1, H), jnp.float32)
    past_value = jax.random.uniform(ks[9], (B, INDEX - 1, H), jnp.float32)
    x = jax.random.normal(ks[10], (B, 1, H), jnp.float32)

    # --- single-tile KV path (P=7) + new-token K/V writeback rows ---
    out, k_new, v_new = gpt2_block(x, past_key, past_value, params,
                                   num_heads=NUM_HEADS, return_new_kv=True)
    out = jax.block_until_ready(out)
    assert out.shape == (B, 1, H) and out.dtype == jnp.float32

    ref = gpt2_block_ref(x, past_key, past_value, params, num_heads=NUM_HEADS)
    assert bool(jnp.allclose(out, ref, rtol=1e-2, atol=1e-2)), (
        float(jnp.max(jnp.abs(out - ref))))

    mu = jnp.mean(x, -1, keepdims=True)
    var = jnp.mean(jnp.square(x - mu), -1, keepdims=True)
    xn = (x - mu) * jax.lax.rsqrt(var + 1e-5) * params["g1"] + params["b1"]
    qkv_ref = xn @ params["wqkv"] + params["bqkv"]
    assert bool(jnp.allclose(k_new, qkv_ref[..., H:2 * H], rtol=1e-2, atol=1e-2))
    assert bool(jnp.allclose(v_new, qkv_ref[..., 2 * H:], rtol=1e-2, atol=1e-2))

    # --- streamed KV path (P=24, 3 tiles of 8) exercising online softmax ---
    P2 = 24
    past_key2 = jax.random.uniform(ks[11], (B, P2, H), jnp.float32)
    past_value2 = jax.random.uniform(ks[12], (B, P2, H), jnp.float32)
    out2 = gpt2_block(x, past_key2, past_value2, params,
                      num_heads=NUM_HEADS, block_p=8)
    out2 = jax.block_until_ready(out2)
    ref2 = gpt2_block_ref(x, past_key2, past_value2, params, num_heads=NUM_HEADS)
    assert bool(jnp.allclose(out2, ref2, rtol=1e-2, atol=1e-2)), (
        float(jnp.max(jnp.abs(out2 - ref2))))

    # --- bf16 weights / KV (bandwidth-bound decode), f32 accumulation ---
    out_bf16 = gpt2_block(x, past_key, past_value, params,
                          num_heads=NUM_HEADS, param_dtype=jnp.bfloat16)
    out_bf16 = jax.block_until_ready(out_bf16)
    assert bool(jnp.allclose(out_bf16, ref, rtol=1e-1, atol=1e-1)), (
        float(jnp.max(jnp.abs(out_bf16 - ref))))

    print("KERNEL_OK")
</pallas_src>

<mosaic_0001>
module attributes {stable_mosaic.version = 11 : i64} {
  func.func @gpt2_block_kernel(%arg0: i32, %arg1: i32, %arg2: memref<2x32xf32, #tpu.memory_space<vmem>>, %arg3: memref<2x7x32xf32, #tpu.memory_space<vmem>>, %arg4: memref<2x7x32xf32, #tpu.memory_space<vmem>>, %arg5: memref<32x4xf32, #tpu.memory_space<vmem>>, %arg6: memref<4x32xf32, #tpu.memory_space<vmem>>, %arg7: memref<1x32xf32, #tpu.memory_space<vmem>>, %arg8: memref<1x32xf32, #tpu.memory_space<vmem>>, %arg9: memref<32x96xf32, #tpu.memory_space<vmem>>, %arg10: memref<1x96xf32, #tpu.memory_space<vmem>>, %arg11: memref<32x32xf32, #tpu.memory_space<vmem>>, %arg12: memref<1x32xf32, #tpu.memory_space<vmem>>, %arg13: memref<1x32xf32, #tpu.memory_space<vmem>>, %arg14: memref<1x32xf32, #tpu.memory_space<vmem>>, %arg15: memref<32x128xf32, #tpu.memory_space<vmem>>, %arg16: memref<1x128xf32, #tpu.memory_space<vmem>>, %arg17: memref<128x32xf32, #tpu.memory_space<vmem>>, %arg18: memref<1x32xf32, #tpu.memory_space<vmem>>, %arg19: memref<2x32xf32, #tpu.memory_space<vmem>>, %arg20: memref<2x32xf32, #tpu.memory_space<vmem>>, %arg21: memref<2x32xf32, #tpu.memory_space<vmem>>, %arg22: memref<2x32xf32, #tpu.memory_space<vmem>>, %arg23: memref<2x4xf32, #tpu.memory_space<vmem>>, %arg24: memref<2x4xf32, #tpu.memory_space<vmem>>, %arg25: memref<2x32xf32, #tpu.memory_space<vmem>>) attributes {dimension_semantics = [#tpu.dimension_semantics<parallel>, #tpu.dimension_semantics<arbitrary>], iteration_bounds = array<i64: 1, 1>, scalar_prefetch = 0 : i64, scratch_operands = 4 : i64, tpu.core_type = #tpu.core_type<tc>, window_params = [{transform_indices = @transform_0, window_bounds = array<i64: 2, 32>}, {transform_indices = @transform_1, window_bounds = array<i64: 2, 7, 32>}, {transform_indices = @transform_2, window_bounds = array<i64: 2, 7, 32>}, {pipeline_mode = #tpu.pipeline_mode<synchronous>, transform_indices = @transform_3, window_bounds = array<i64: 32, 4>}, {pipeline_mode = #tpu.pipeline_mode<synchronous>, transform_indices = @transform_4, window_bounds = array<i64: 4, 32>}, {pipeline_mode = #tpu.pipeline_mode<synchronous>, transform_indices = @transform_5, window_bounds = array<i64: 1, 32>}, {pipeline_mode = #tpu.pipeline_mode<synchronous>, transform_indices = @transform_6, window_bounds = array<i64: 1, 32>}, {pipeline_mode = #tpu.pipeline_mode<synchronous>, transform_indices = @transform_7, window_bounds = array<i64: 32, 96>}, {pipeline_mode = #tpu.pipeline_mode<synchronous>, transform_indices = @transform_8, window_bounds = array<i64: 1, 96>}, {pipeline_mode = #tpu.pipeline_mode<synchronous>, transform_indices = @transform_9, window_bounds = array<i64: 32, 32>}, {pipeline_mode = #tpu.pipeline_mode<synchronous>, transform_indices = @transform_10, window_bounds = array<i64: 1, 32>}, {pipeline_mode = #tpu.pipeline_mode<synchronous>, transform_indices = @transform_11, window_bounds = array<i64: 1, 32>}, {pipeline_mode = #tpu.pipeline_mode<synchronous>, transform_indices = @transform_12, window_bounds = array<i64: 1, 32>}, {pipeline_mode = #tpu.pipeline_mode<synchronous>, transform_indices = @transform_13, window_bounds = array<i64: 32, 128>}, {pipeline_mode = #tpu.pipeline_mode<synchronous>, transform_indices = @transform_14, window_bounds = array<i64: 1, 128>}, {pipeline_mode = #tpu.pipeline_mode<synchronous>, transform_indices = @transform_15, window_bounds = array<i64: 128, 32>}, {pipeline_mode = #tpu.pipeline_mode<synchronous>, transform_indices = @transform_16, window_bounds = array<i64: 1, 32>}, {transform_indices = @transform_17, window_bounds = array<i64: 2, 32>}, {transform_indices = @transform_18, window_bounds = array<i64: 2, 32>}, {transform_indices = @transform_19, window_bounds = array<i64: 2, 32>}]} {
    %c0 = arith.constant 0 : index
    %c0_0 = arith.constant 0 : index
    %0 = vector.load %arg5[%c0, %c0_0] : memref<32x4xf32, #tpu.memory_space<vmem>>, vector<32x4xf32>
    %c0_1 = arith.constant 0 : index
    %c0_2 = arith.constant 0 : index
    %1 = vector.load %arg6[%c0_1, %c0_2] : memref<4x32xf32, #tpu.memory_space<vmem>>, vector<4x32xf32>
    %c0_i32 = arith.constant 0 : i32
    %2 = arith.cmpi eq, %arg1, %c0_i32 : i32
    %3 = arith.extui %2 : i1 to i32
    %c0_i32_3 = arith.constant 0 : i32
    %4 = arith.cmpi ne, %3, %c0_i32_3 : i32
    scf.if %4 {
      %c0_33 = arith.constant 0 : index
      %c0_34 = arith.constant 0 : index
      %43 = vector.load %arg2[%c0_33, %c0_34] : memref<2x32xf32, #tpu.memory_space<vmem>>, vector<2x32xf32>
      %cst_35 = arith.constant dense<0.000000e+00> : vector<2xf32>
      %44 = vector.multi_reduction <add>, %43, %cst_35 [1] : vector<2x32xf32> to vector<2xf32>
      %45 = vector.shape_cast %44 : vector<2xf32> to vector<2x1xf32>
      %cst_36 = arith.constant 3.200000e+01 : f32
      %46 = vector.broadcast %cst_36 : f32 to vector<2x1xf32>
      %47 = arith.divf %45, %46 : vector<2x1xf32>
      %48 = vector.broadcast %47 : vector<2x1xf32> to vector<2x32xf32>
      %49 = arith.subf %43, %48 : vector<2x32xf32>
      %50 = arith.mulf %49, %49 : vector<2x32xf32>
      %cst_37 = arith.constant dense<0.000000e+00> : vector<2xf32>
      %51 = vector.multi_reduction <add>, %50, %cst_37 [1] : vector<2x32xf32> to vector<2xf32>
      %52 = vector.shape_cast %51 : vector<2xf32> to vector<2x1xf32>
      %cst_38 = arith.constant 3.200000e+01 : f32
      %53 = vector.broadcast %cst_38 : f32 to vector<2x1xf32>
      %54 = arith.divf %52, %53 : vector<2x1xf32>
      %55 = vector.broadcast %47 : vector<2x1xf32> to vector<2x32xf32>
      %56 = arith.subf %43, %55 : vector<2x32xf32>
      %cst_39 = arith.constant 9.99999974E-6 : f32
      %57 = vector.broadcast %cst_39 : f32 to vector<2x1xf32>
      %58 = arith.addf %54, %57 : vector<2x1xf32>
      %59 = math.rsqrt %58 : vector<2x1xf32>
      %60 = vector.broadcast %59 : vector<2x1xf32> to vector<2x32xf32>
      %61 = arith.mulf %56, %60 : vector<2x32xf32>
      %c0_40 = arith.constant 0 : index
      %c0_41 = arith.constant 0 : index
      %62 = vector.load %arg7[%c0_40, %c0_41] : memref<1x32xf32, #tpu.memory_space<vmem>>, vector<1x32xf32>
      %63 = vector.broadcast %62 : vector<1x32xf32> to vector<2x32xf32>
      %64 = arith.mulf %61, %63 : vector<2x32xf32>
      %c0_42 = arith.constant 0 : index
      %c0_43 = arith.constant 0 : index
      %65 = vector.load %arg8[%c0_42, %c0_43] : memref<1x32xf32, #tpu.memory_space<vmem>>, vector<1x32xf32>
      %66 = vector.broadcast %65 : vector<1x32xf32> to vector<2x32xf32>
      %67 = arith.addf %64, %66 : vector<2x32xf32>
      %c0_44 = arith.constant 0 : index
      %c0_45 = arith.constant 0 : index
      %68 = vector.load %arg9[%c0_44, %c0_45] : memref<32x96xf32, #tpu.memory_space<vmem>>, vector<32x96xf32>
      %cst_46 = arith.constant dense<0.000000e+00> : vector<2x96xf32>
      %69 = tpu.matmul %67, %68, %cst_46 {dimension_numbers = #tpu.dot_dimension_numbers<[1], [0], [0], [1], [0, 0, 1, 1], [], []>} : vector<2x32xf32>, vector<32x96xf32>, vector<2x96xf32> -> vector<2x96xf32>
      %c0_47 = arith.constant 0 : index
      %c0_48 = arith.constant 0 : index
      %70 = vector.load %arg10[%c0_47, %c0_48] : memref<1x96xf32, #tpu.memory_space<vmem>>, vector<1x96xf32>
      %71 = vector.broadcast %70 : vector<1x96xf32> to vector<2x96xf32>
      %72 = arith.addf %69, %71 : vector<2x96xf32>
      %73 = vector.extract_strided_slice %72 {offsets = [0, 0], sizes = [2, 32], strides = [1, 1]} : vector<2x96xf32> to vector<2x32xf32>
      %cst_49 = arith.constant 0.353553385 : f32
      %74 = vector.broadcast %cst_49 : f32 to vector<2x32xf32>
      %75 = arith.mulf %73, %74 : vector<2x32xf32>
      %76 = vector.extract_strided_slice %72 {offsets = [0, 32], sizes = [2, 32], strides = [1, 1]} : vector<2x96xf32> to vector<2x32xf32>
      %77 = vector.extract_strided_slice %72 {offsets = [0, 64], sizes = [2, 32], strides = [1, 1]} : vector<2x96xf32> to vector<2x32xf32>
      %c0_50 = arith.constant 0 : index
      %c0_51 = arith.constant 0 : index
      %78 = vector.load %arg22[%c0_50, %c0_51] : memref<2x32xf32, #tpu.memory_space<vmem>>, vector<2x32xf32>
      tpu.vector_store %arg22[%c0_50, %c0_51], %75 {strides = array<i32>} : memref<2x32xf32, #tpu.memory_space<vmem>>, vector<2x32xf32>,
      %c0_52 = arith.constant 0 : index
      %c0_53 = arith.constant 0 : index
      %79 = vector.load %arg20[%c0_52, %c0_53] : memref<2x32xf32, #tpu.memory_space<vmem>>, vector<2x32xf32>
      tpu.vector_store %arg20[%c0_52, %c0_53], %76 {strides = array<i32>} : memref<2x32xf32, #tpu.memory_space<vmem>>, vector<2x32xf32>,
      %c0_54 = arith.constant 0 : index
      %c0_55 = arith.constant 0 : index
      %80 = vector.load %arg21[%c0_54, %c0_55] : memref<2x32xf32, #tpu.memory_space<vmem>>, vector<2x32xf32>
      tpu.vector_store %arg21[%c0_54, %c0_55], %77 {strides = array<i32>} : memref<2x32xf32, #tpu.memory_space<vmem>>, vector<2x32xf32>,
      %81 = arith.mulf %75, %76 : vector<2x32xf32>
      %cst_56 = arith.constant dense<0.000000e+00> : vector<2x4xf32>
      %82 = tpu.matmul %81, %0, %cst_56 {dimension_numbers = #tpu.dot_dimension_numbers<[1], [0], [0], [1], [0, 0, 1, 1], [], []>} : vector<2x32xf32>, vector<32x4xf32>, vector<2x4xf32> -> vector<2x4xf32>
      %c0_57 = arith.constant 0 : index
      %c0_58 = arith.constant 0 : index
      %83 = vector.load %arg23[%c0_57, %c0_58] : memref<2x4xf32, #tpu.memory_space<vmem>>, vector<2x4xf32>
      tpu.vector_store %arg23[%c0_57, %c0_58], %82 {strides = array<i32>} : memref<2x4xf32, #tpu.memory_space<vmem>>, vector<2x4xf32>,
      %cst_59 = arith.constant 1.000000e+00 : f32
      %84 = vector.broadcast %cst_59 : f32 to vector<2x4xf32>
      %c0_60 = arith.constant 0 : index
      %c0_61 = arith.constant 0 : index
      %85 = vector.load %arg24[%c0_60, %c0_61] : memref<2x4xf32, #tpu.memory_space<vmem>>, vector<2x4xf32>
      tpu.vector_store %arg24[%c0_60, %c0_61], %84 {strides = array<i32>} : memref<2x4xf32, #tpu.memory_space<vmem>>, vector<2x4xf32>,
      %c0_62 = arith.constant 0 : index
      %c0_63 = arith.constant 0 : index
      %86 = vector.load %arg25[%c0_62, %c0_63] : memref<2x32xf32, #tpu.memory_space<vmem>>, vector<2x32xf32>
      tpu.vector_store %arg25[%c0_62, %c0_63], %77 {strides = array<i32>} : memref<2x32xf32, #tpu.memory_space<vmem>>, vector<2x32xf32>,
    } else {
    }
    %c0_4 = arith.constant 0 : index
    %c0_5 = arith.constant 0 : index
    %5 = vector.load %arg22[%c0_4, %c0_5] : memref<2x32xf32, #tpu.memory_space<vmem>>, vector<2x32xf32>
    %c0_6 = arith.constant 0 : index
    %c0_7 = arith.constant 0 : index
    %c0_8 = arith.constant 0 : index
    %6 = vector.load %arg3[%c0_6, %c0_7, %c0_8] : memref<2x7x32xf32, #tpu.memory_space<vmem>>, vector<2x7x32xf32>
    %c0_9 = arith.constant 0 : index
    %c0_10 = arith.constant 0 : index
    %c0_11 = arith.constant 0 : index
    %7 = vector.load %arg4[%c0_9, %c0_10, %c0_11] : memref<2x7x32xf32, #tpu.memory_space<vmem>>, vector<2x7x32xf32>
    %8 = vector.shape_cast %5 : vector<2x32xf32> to vector<2x1x32xf32>
    %9 = vector.broadcast %8 : vector<2x1x32xf32> to vector<2x7x32xf32>
    %10 = arith.mulf %9, %6 : vector<2x7x32xf32>
    %11 = vector.shape_cast %10 : vector<2x7x32xf32> to vector<14x32xf32>
    %cst = arith.constant dense<0.000000e+00> : vector<14x4xf32>
    %12 = tpu.matmul %11, %0, %cst {dimension_numbers = #tpu.dot_dimension_numbers<[1], [0], [0], [1], [0, 0, 1, 1], [], []>} : vector<14x32xf32>, vector<32x4xf32>, vector<14x4xf32> -> vector<14x4xf32>
    %13 = vector.shape_cast %12 : vector<14x4xf32> to vector<2x7x4xf32>
    %c0_12 = arith.constant 0 : index
    %c0_13 = arith.constant 0 : index
    %14 = vector.load %arg23[%c0_12, %c0_13] : memref<2x4xf32, #tpu.memory_space<vmem>>, vector<2x4xf32>
    %cst_14 = arith.constant dense<0xFF800000> : vector<2x4xf32>
    %15 = vector.multi_reduction <maximumf>, %13, %cst_14 [1] : vector<2x7x4xf32> to vector<2x4xf32>
    %16 = arith.maximumf %14, %15 : vector<2x4xf32>
    %c0_15 = arith.constant 0 : index
    %c0_16 = arith.constant 0 : index
    %17 = vector.load %arg23[%c0_15, %c0_16] : memref<2x4xf32, #tpu.memory_space<vmem>>, vector<2x4xf32>
    %18 = arith.subf %17, %16 : vector<2x4xf32>
    %19 = math.exp %18 : vector<2x4xf32>
    %20 = vector.shape_cast %16 : vector<2x4xf32> to vector<2x1x4xf32>
    %21 = vector.broadcast %20 : vector<2x1x4xf32> to vector<2x7x4xf32>
    %22 = arith.subf %13, %21 : vector<2x7x4xf32>
    %23 = math.exp %22 : vector<2x7x4xf32>
    %c0_17 = arith.constant 0 : index
    %c0_18 = arith.constant 0 : index
    %24 = vector.load %arg24[%c0_17, %c0_18] : memref<2x4xf32, #tpu.memory_space<vmem>>, vector<2x4xf32>
    %25 = arith.mulf %19, %24 : vector<2x4xf32>
    %cst_19 = arith.constant dense<0.000000e+00> : vector<2x4xf32>
    %26 = vector.multi_reduction <add>, %23, %cst_19 [1] : vector<2x7x4xf32> to vector<2x4xf32>
    %27 = arith.addf %25, %26 : vector<2x4xf32>
    %c0_20 = arith.constant 0 : index
    %c0_21 = arith.constant 0 : index
    %28 = vector.load %arg24[%c0_20, %c0_21] : memref<2x4xf32, #tpu.memory_space<vmem>>, vector<2x4xf32>
    tpu.vector_store %arg24[%c0_20, %c0_21], %27 {strides = array<i32>} : memref<2x4xf32, #tpu.memory_space<vmem>>, vector<2x4xf32>,
    %29 = vector.shape_cast %23 : vector<2x7x4xf32> to vector<14x4xf32>
    %cst_22 = arith.constant dense<0.000000e+00> : vector<14x32xf32>
    %30 = tpu.matmul %29, %1, %cst_22 {dimension_numbers = #tpu.dot_dimension_numbers<[1], [0], [0], [1], [0, 0, 1, 1], [], []>} : vector<14x4xf32>, vector<4x32xf32>, vector<14x32xf32> -> vector<14x32xf32>
    %31 = vector.shape_cast %30 : vector<14x32xf32> to vector<2x7x32xf32>
    %cst_23 = arith.constant dense<0.000000e+00> : vector<2x32xf32>
    %32 = tpu.matmul %19, %1, %cst_23 {dimension_numbers = #tpu.dot_dimension_numbers<[1], [0], [0], [1], [0, 0, 1, 1], [], []>} : vector<2x4xf32>, vector<4x32xf32>, vector<2x32xf32> -> vector<2x32xf32>
    %c0_24 = arith.constant 0 : index
    %c0_25 = arith.constant 0 : index
    %33 = vector.load %arg25[%c0_24, %c0_25] : memref<2x32xf32, #tpu.memory_space<vmem>>, vector<2x32xf32>
    %34 = arith.mulf %32, %33 : vector<2x32xf32>
    %35 = arith.mulf %31, %7 : vector<2x7x32xf32>
    %cst_26 = arith.constant dense<0.000000e+00> : vector<2x32xf32>
    %36 = vector.multi_reduction <add>, %35, %cst_26 [1] : vector<2x7x32xf32> to vector<2x32xf32>
    %37 = arith.addf %34, %36 : vector<2x32xf32>
    %c0_27 = arith.constant 0 : index
    %c0_28 = arith.constant 0 : index
    %38 = vector.load %arg25[%c0_27, %c0_28] : memref<2x32xf32, #tpu.memory_space<vmem>>, vector<2x32xf32>
    tpu.vector_store %arg25[%c0_27, %c0_28], %37 {strides = array<i32>} : memref<2x32xf32, #tpu.memory_space<vmem>>, vector<2x32xf32>,
    %c0_29 = arith.constant 0 : index
    %c0_30 = arith.constant 0 : index
    %39 = vector.load %arg23[%c0_29, %c0_30] : memref<2x4xf32, #tpu.memory_space<vmem>>, vector<2x4xf32>
    tpu.vector_store %arg23[%c0_29, %c0_30], %16 {strides = array<i32>} : memref<2x4xf32, #tpu.memory_space<vmem>>, vector<2x4xf32>,
    %c0_i32_31 = arith.constant 0 : i32
    %40 = arith.cmpi eq, %arg1, %c0_i32_31 : i32
    %41 = arith.extui %40 : i1 to i32
    %c0_i32_32 = arith.constant 0 : i32
    %42 = arith.cmpi ne, %41, %c0_i32_32 : i32
    scf.if %42 {
      %c0_33 = arith.constant 0 : index
      %c0_34 = arith.constant 0 : index
      %43 = vector.load %arg24[%c0_33, %c0_34] : memref<2x4xf32, #tpu.memory_space<vmem>>, vector<2x4xf32>
      %44 = tpu.reciprocal %43 {approx = true} : vector<2x4xf32> -> vector<2x4xf32>
      %cst_35 = arith.constant dense<0.000000e+00> : vector<2x32xf32>
      %45 = tpu.matmul %44, %1, %cst_35 {dimension_numbers = #tpu.dot_dimension_numbers<[1], [0], [0], [1], [0, 0, 1, 1], [], []>} : vector<2x4xf32>, vector<4x32xf32>, vector<2x32xf32> -> vector<2x32xf32>
      %c0_36 = arith.constant 0 : index
      %c0_37 = arith.constant 0 : index
      %46 = vector.load %arg25[%c0_36, %c0_37] : memref<2x32xf32, #tpu.memory_space<vmem>>, vector<2x32xf32>
      %47 = arith.mulf %46, %45 : vector<2x32xf32>
      %c0_38 = arith.constant 0 : index
      %c0_39 = arith.constant 0 : index
      %48 = vector.load %arg11[%c0_38, %c0_39] : memref<32x32xf32, #tpu.memory_space<vmem>>, vector<32x32xf32>
      %cst_40 = arith.constant dense<0.000000e+00> : vector<2x32xf32>
      %49 = tpu.matmul %47, %48, %cst_40 {dimension_numbers = #tpu.dot_dimension_numbers<[1], [0], [0], [1], [0, 0, 1, 1], [], []>} : vector<2x32xf32>, vector<32x32xf32>, vector<2x32xf32> -> vector<2x32xf32>
      %c0_41 = arith.constant 0 : index
      %c0_42 = arith.constant 0 : index
      %50 = vector.load %arg12[%c0_41, %c0_42] : memref<1x32xf32, #tpu.memory_space<vmem>>, vector<1x32xf32>
      %51 = vector.broadcast %50 : vector<1x32xf32> to vector<2x32xf32>
      %52 = arith.addf %49, %51 : vector<2x32xf32>
      %c0_43 = arith.constant 0 : index
      %c0_44 = arith.constant 0 : index
      %53 = vector.load %arg2[%c0_43, %c0_44] : memref<2x32xf32, #tpu.memory_space<vmem>>, vector<2x32xf32>
      %54 = arith.addf %53, %52 : vector<2x32xf32>
      %cst_45 = arith.constant dense<0.000000e+00> : vector<2xf32>
      %55 = vector.multi_reduction <add>, %54, %cst_45 [1] : vector<2x32xf32> to vector<2xf32>
      %56 = vector.shape_cast %55 : vector<2xf32> to vector<2x1xf32>
      %cst_46 = arith.constant 3.200000e+01 : f32
      %57 = vector.broadcast %cst_46 : f32 to vector<2x1xf32>
      %58 = arith.divf %56, %57 : vector<2x1xf32>
      %59 = vector.broadcast %58 : vector<2x1xf32> to vector<2x32xf32>
      %60 = arith.subf %54, %59 : vector<2x32xf32>
      %61 = arith.mulf %60, %60 : vector<2x32xf32>
      %cst_47 = arith.constant dense<0.000000e+00> : vector<2xf32>
      %62 = vector.multi_reduction <add>, %61, %cst_47 [1] : vector<2x32xf32> to vector<2xf32>
      %63 = vector.shape_cast %62 : vector<2xf32> to vector<2x1xf32>
      %cst_48 = arith.constant 3.200000e+01 : f32
      %64 = vector.broadcast %cst_48 : f32 to vector<2x1xf32>
      %65 = arith.divf %63, %64 : vector<2x1xf32>
      %66 = vector.broadcast %58 : vector<2x1xf32> to vector<2x32xf32>
      %67 = arith.subf %54, %66 : vector<2x32xf32>
      %cst_49 = arith.constant 9.99999974E-6 : f32
      %68 = vector.broadcast %cst_49 : f32 to vector<2x1xf32>
      %69 = arith.addf %65, %68 : vector<2x1xf32>
      %70 = math.rsqrt %69 : vector<2x1xf32>
      %71 = vector.broadcast %70 : vector<2x1xf32> to vector<2x32xf32>
      %72 = arith.mulf %67, %71 : vector<2x32xf32>
      %c0_50 = arith.constant 0 : index
      %c0_51 = arith.constant 0 : index
      %73 = vector.load %arg13[%c0_50, %c0_51] : memref<1x32xf32, #tpu.memory_space<vmem>>, vector<1x32xf32>
      %74 = vector.broadcast %73 : vector<1x32xf32> to vector<2x32xf32>
      %75 = arith.mulf %72, %74 : vector<2x32xf32>
      %c0_52 = arith.constant 0 : index
      %c0_53 = arith.constant 0 : index
      %76 = vector.load %arg14[%c0_52, %c0_53] : memref<1x32xf32, #tpu.memory_space<vmem>>, vector<1x32xf32>
      %77 = vector.broadcast %76 : vector<1x32xf32> to vector<2x32xf32>
      %78 = arith.addf %75, %77 : vector<2x32xf32>
      %c0_54 = arith.constant 0 : index
      %c0_55 = arith.constant 0 : index
      %79 = vector.load %arg15[%c0_54, %c0_55] : memref<32x128xf32, #tpu.memory_space<vmem>>, vector<32x128xf32>
      %cst_56 = arith.constant dense<0.000000e+00> : vector<2x128xf32>
      %80 = tpu.matmul %78, %79, %cst_56 {dimension_numbers = #tpu.dot_dimension_numbers<[1], [0], [0], [1], [0, 0, 1, 1], [], []>} : vector<2x32xf32>, vector<32x128xf32>, vector<2x128xf32> -> vector<2x128xf32>
      %c0_57 = arith.constant 0 : index
      %c0_58 = arith.constant 0 : index
      %81 = vector.load %arg16[%c0_57, %c0_58] : memref<1x128xf32, #tpu.memory_space<vmem>>, vector<1x128xf32>
      %82 = vector.broadcast %81 : vector<1x128xf32> to vector<2x128xf32>
      %83 = arith.addf %80, %82 : vector<2x128xf32>
      %cst_59 = arith.constant 5.000000e-01 : f32
      %84 = vector.broadcast %cst_59 : f32 to vector<2x128xf32>
      %85 = arith.mulf %84, %83 : vector<2x128xf32>
      %cst_60 = arith.constant 0.707106769 : f32
      %86 = vector.broadcast %cst_60 : f32 to vector<2x128xf32>
      %87 = arith.mulf %83, %86 : vector<2x128xf32>
      %88 = math.erf %87 : vector<2x128xf32>
      %cst_61 = arith.constant 1.000000e+00 : f32
      %89 = vector.broadcast %cst_61 : f32 to vector<2x128xf32>
      %90 = arith.addf %89, %88 : vector<2x128xf32>
      %91 = arith.mulf %85, %90 : vector<2x128xf32>
      %c0_62 = arith.constant 0 : index
      %c0_63 = arith.constant 0 : index
      %92 = vector.load %arg17[%c0_62, %c0_63] : memref<128x32xf32, #tpu.memory_space<vmem>>, vector<128x32xf32>
      %cst_64 = arith.constant dense<0.000000e+00> : vector<2x32xf32>
      %93 = tpu.matmul %91, %92, %cst_64 {dimension_numbers = #tpu.dot_dimension_numbers<[1], [0], [0], [1], [0, 0, 1, 1], [], []>} : vector<2x128xf32>, vector<128x32xf32>, vector<2x32xf32> -> vector<2x32xf32>
      %c0_65 = arith.constant 0 : index
      %c0_66 = arith.constant 0 : index
      %94 = vector.load %arg18[%c0_65, %c0_66] : memref<1x32xf32, #tpu.memory_space<vmem>>, vector<1x32xf32>
      %95 = vector.broadcast %94 : vector<1x32xf32> to vector<2x32xf32>
      %96 = arith.addf %93, %95 : vector<2x32xf32>
      %97 = arith.addf %54, %96 : vector<2x32xf32>
      %c0_67 = arith.constant 0 : index
      %c0_68 = arith.constant 0 : index
      %98 = vector.load %arg19[%c0_67, %c0_68] : memref<2x32xf32, #tpu.memory_space<vmem>>, vector<2x32xf32>
      tpu.vector_store %arg19[%c0_67, %c0_68], %97 {strides = array<i32>} : memref<2x32xf32, #tpu.memory_space<vmem>>, vector<2x32xf32>,
    } else {
    }
    return
  }
  func.func @transform_0(%arg0: i32, %arg1: i32) -> (i32, i32) {
    %c0_i32 = arith.constant 0 : i32
    %c0_i32_0 = arith.constant 0 : i32
    return %arg0, %c0_i32 : i32, i32
  }
  func.func @transform_1(%arg0: i32, %arg1: i32) -> (i32, i32, i32) {
    %c0_i32 = arith.constant 0 : i32
    %c0_i32_0 = arith.constant 0 : i32
    return %arg0, %arg1, %c0_i32 : i32, i32, i32
  }
  func.func @transform_2(%arg0: i32, %arg1: i32) -> (i32, i32, i32) {
    %c0_i32 = arith.constant 0 : i32
    %c0_i32_0 = arith.constant 0 : i32
    return %arg0, %arg1, %c0_i32 : i32, i32, i32
  }
  func.func @transform_3(%arg0: i32, %arg1: i32) -> (i32, i32) {
    %c0_i32 = arith.constant 0 : i32
    %c0_i32_0 = arith.constant 0 : i32
    %c0_i32_1 = arith.constant 0 : i32
    return %c0_i32, %c0_i32_0 : i32, i32
  }
  func.func @transform_4(%arg0: i32, %arg1: i32) -> (i32, i32) {
    %c0_i32 = arith.constant 0 : i32
    %c0_i32_0 = arith.constant 0 : i32
    %c0_i32_1 = arith.constant 0 : i32
    return %c0_i32, %c0_i32_0 : i32, i32
  }
  func.func @transform_5(%arg0: i32, %arg1: i32) -> (i32, i32) {
    %c0_i32 = arith.constant 0 : i32
    %c0_i32_0 = arith.constant 0 : i32
    %c0_i32_1 = arith.constant 0 : i32
    return %c0_i32, %c0_i32_0 : i32, i32
  }
  func.func @transform_6(%arg0: i32, %arg1: i32) -> (i32, i32) {
    %c0_i32 = arith.constant 0 : i32
    %c0_i32_0 = arith.constant 0 : i32
    %c0_i32_1 = arith.constant 0 : i32
    return %c0_i32, %c0_i32_0 : i32, i32
  }
  func.func @transform_7(%arg0: i32, %arg1: i32) -> (i32, i32) {
    %c0_i32 = arith.constant 0 : i32
    %c0_i32_0 = arith.constant 0 : i32
    %c0_i32_1 = arith.constant 0 : i32
    return %c0_i32, %c0_i32_0 : i32, i32
  }
  func.func @transform_8(%arg0: i32, %arg1: i32) -> (i32, i32) {
    %c0_i32 = arith.constant 0 : i32
    %c0_i32_0 = arith.constant 0 : i32
    %c0_i32_1 = arith.constant 0 : i32
    return %c0_i32, %c0_i32_0 : i32, i32
  }
  func.func @transform_9(%arg0: i32, %arg1: i32) -> (i32, i32) {
    %c0_i32 = arith.constant 0 : i32
    %c0_i32_0 = arith.constant 0 : i32
    %c0_i32_1 = arith.constant 0 : i32
    return %c0_i32, %c0_i32_0 : i32, i32
  }
  func.func @transform_10(%arg0: i32, %arg1: i32) -> (i32, i32) {
    %c0_i32 = arith.constant 0 : i32
    %c0_i32_0 = arith.constant 0 : i32
    %c0_i32_1 = arith.constant 0 : i32
    return %c0_i32, %c0_i32_0 : i32, i32
  }
  func.func @transform_11(%arg0: i32, %arg1: i32) -> (i32, i32) {
    %c0_i32 = arith.constant 0 : i32
    %c0_i32_0 = arith.constant 0 : i32
    %c0_i32_1 = arith.constant 0 : i32
    return %c0_i32, %c0_i32_0 : i32, i32
  }
  func.func @transform_12(%arg0: i32, %arg1: i32) -> (i32, i32) {
    %c0_i32 = arith.constant 0 : i32
    %c0_i32_0 = arith.constant 0 : i32
    %c0_i32_1 = arith.constant 0 : i32
    return %c0_i32, %c0_i32_0 : i32, i32
  }
  func.func @transform_13(%arg0: i32, %arg1: i32) -> (i32, i32) {
    %c0_i32 = arith.constant 0 : i32
    %c0_i32_0 = arith.constant 0 : i32
    %c0_i32_1 = arith.constant 0 : i32
    return %c0_i32, %c0_i32_0 : i32, i32
  }
  func.func @transform_14(%arg0: i32, %arg1: i32) -> (i32, i32) {
    %c0_i32 = arith.constant 0 : i32
    %c0_i32_0 = arith.constant 0 : i32
    %c0_i32_1 = arith.constant 0 : i32
    return %c0_i32, %c0_i32_0 : i32, i32
  }
  func.func @transform_15(%arg0: i32, %arg1: i32) -> (i32, i32) {
    %c0_i32 = arith.constant 0 : i32
    %c0_i32_0 = arith.constant 0 : i32
    %c0_i32_1 = arith.constant 0 : i32
    return %c0_i32, %c0_i32_0 : i32, i32
  }
  func.func @transform_16(%arg0: i32, %arg1: i32) -> (i32, i32) {
    %c0_i32 = arith.constant 0 : i32
    %c0_i32_0 = arith.constant 0 : i32
    %c0_i32_1 = arith.constant 0 : i32
    return %c0_i32, %c0_i32_0 : i32, i32
  }
  func.func @transform_17(%arg0: i32, %arg1: i32) -> (i32, i32) {
    %c0_i32 = arith.constant 0 : i32
    %c0_i32_0 = arith.constant 0 : i32
    return %arg0, %c0_i32 : i32, i32
  }
  func.func @transform_18(%arg0: i32, %arg1: i32) -> (i32, i32) {
    %c0_i32 = arith.constant 0 : i32
    %c0_i32_0 = arith.constant 0 : i32
    return %arg0, %c0_i32 : i32, i32
  }
  func.func @transform_19(%arg0: i32, %arg1: i32) -> (i32, i32) {
    %c0_i32 = arith.constant 0 : i32
    %c0_i32_0 = arith.constant 0 : i32
    return %arg0, %c0_i32 : i32, i32
  }
}

module attributes {stable_mosaic.version = 11 : i64} {
  func.func @gpt2_block_kernel(%arg0: i32, %arg1: i32, %arg2: memref<2x32xf32, #tpu.memory_space<vmem>>, %arg3: memref<2x7x32xf32, #tpu.memory_space<vmem>>, %arg4: memref<2x7x32xf32, #tpu.memory_space<vmem>>, %arg5: memref<32x4xf32, #tpu.memory_space<vmem>>, %arg6: memref<4x32xf32, #tpu.memory_space<vmem>>, %arg7: memref<1x32xf32, #tpu.memory_space<vmem>>, %arg8: memref<1x32xf32, #tpu.memory_space<vmem>>, %arg9: memref<32x96xf32, #tpu.memory_space<vmem>>, %arg10: memref<1x96xf32, #tpu.memory_space<vmem>>, %arg11: memref<32x32xf32, #tpu.memory_space<vmem>>, %arg12: memref<1x32xf32, #tpu.memory_space<vmem>>, %arg13: memref<1x32xf32, #tpu.memory_space<vmem>>, %arg14: memref<1x32xf32, #tpu.memory_space<vmem>>, %arg15: memref<32x128xf32, #tpu.memory_space<vmem>>, %arg16: memref<1x128xf32, #tpu.memory_space<vmem>>, %arg17: memref<128x32xf32, #tpu.memory_space<vmem>>, %arg18: memref<1x32xf32, #tpu.memory_space<vmem>>, %arg19: memref<2x32xf32, #tpu.memory_space<vmem>>, %arg20: memref<2x32xf32, #tpu.memory_space<vmem>>, %arg21: memref<2x32xf32, #tpu.memory_space<vmem>>, %arg22: memref<2x32xf32, #tpu.memory_space<vmem>>, %arg23: memref<2x4xf32, #tpu.memory_space<vmem>>, %arg24: memref<2x4xf32, #tpu.memory_space<vmem>>, %arg25: memref<2x32xf32, #tpu.memory_space<vmem>>) attributes {dimension_semantics = [#tpu.dimension_semantics<parallel>, #tpu.dimension_semantics<arbitrary>], iteration_bounds = array<i64: 1, 1>, scalar_prefetch = 0 : i64, scratch_operands = 4 : i64, tpu.core_type = #tpu.core_type<tc>, window_params = [{transform_indices = @transform_0, window_bounds = array<i64: 2, 32>}, {transform_indices = @transform_1, window_bounds = array<i64: 2, 7, 32>}, {transform_indices = @transform_2, window_bounds = array<i64: 2, 7, 32>}, {pipeline_mode = #tpu.pipeline_mode<synchronous>, transform_indices = @transform_3, window_bounds = array<i64: 32, 4>}, {pipeline_mode = #tpu.pipeline_mode<synchronous>, transform_indices = @transform_4, window_bounds = array<i64: 4, 32>}, {pipeline_mode = #tpu.pipeline_mode<synchronous>, transform_indices = @transform_5, window_bounds = array<i64: 1, 32>}, {pipeline_mode = #tpu.pipeline_mode<synchronous>, transform_indices = @transform_6, window_bounds = array<i64: 1, 32>}, {pipeline_mode = #tpu.pipeline_mode<synchronous>, transform_indices = @transform_7, window_bounds = array<i64: 32, 96>}, {pipeline_mode = #tpu.pipeline_mode<synchronous>, transform_indices = @transform_8, window_bounds = array<i64: 1, 96>}, {pipeline_mode = #tpu.pipeline_mode<synchronous>, transform_indices = @transform_9, window_bounds = array<i64: 32, 32>}, {pipeline_mode = #tpu.pipeline_mode<synchronous>, transform_indices = @transform_10, window_bounds = array<i64: 1, 32>}, {pipeline_mode = #tpu.pipeline_mode<synchronous>, transform_indices = @transform_11, window_bounds = array<i64: 1, 32>}, {pipeline_mode = #tpu.pipeline_mode<synchronous>, transform_indices = @transform_12, window_bounds = array<i64: 1, 32>}, {pipeline_mode = #tpu.pipeline_mode<synchronous>, transform_indices = @transform_13, window_bounds = array<i64: 32, 128>}, {pipeline_mode = #tpu.pipeline_mode<synchronous>, transform_indices = @transform_14, window_bounds = array<i64: 1, 128>}, {pipeline_mode = #tpu.pipeline_mode<synchronous>, transform_indices = @transform_15, window_bounds = array<i64: 128, 32>}, {pipeline_mode = #tpu.pipeline_mode<synchronous>, transform_indices = @transform_16, window_bounds = array<i64: 1, 32>}, {transform_indices = @transform_17, window_bounds = array<i64: 2, 32>}, {transform_indices = @transform_18, window_bounds = array<i64: 2, 32>}, {transform_indices = @transform_19, window_bounds = array<i64: 2, 32>}]} {
    %c0 = arith.constant 0 : index
    %c0_0 = arith.constant 0 : index
    %0 = vector.load %arg5[%c0, %c0_0] : memref<32x4xf32, #tpu.memory_space<vmem>>, vector<32x4xf32>
    %c0_1 = arith.constant 0 : index
    %c0_2 = arith.constant 0 : index
    %1 = vector.load %arg6[%c0_1, %c0_2] : memref<4x32xf32, #tpu.memory_space<vmem>>, vector<4x32xf32>
    %c0_i32 = arith.constant 0 : i32
    %2 = arith.cmpi eq, %arg1, %c0_i32 : i32
    %3 = arith.extui %2 : i1 to i32
    %c0_i32_3 = arith.constant 0 : i32
    %4 = arith.cmpi ne, %3, %c0_i32_3 : i32
    scf.if %4 {
      %c0_33 = arith.constant 0 : index
      %c0_34 = arith.constant 0 : index
      %43 = vector.load %arg2[%c0_33, %c0_34] : memref<2x32xf32, #tpu.memory_space<vmem>>, vector<2x32xf32>
      %cst_35 = arith.constant dense<0.000000e+00> : vector<2xf32>
      %44 = vector.multi_reduction <add>, %43, %cst_35 [1] : vector<2x32xf32> to vector<2xf32>
      %45 = vector.shape_cast %44 : vector<2xf32> to vector<2x1xf32>
      %cst_36 = arith.constant 3.200000e+01 : f32
      %46 = vector.broadcast %cst_36 : f32 to vector<2x1xf32>
      %47 = arith.divf %45, %46 : vector<2x1xf32>
      %48 = vector.broadcast %47 : vector<2x1xf32> to vector<2x32xf32>
      %49 = arith.subf %43, %48 : vector<2x32xf32>
      %50 = arith.mulf %49, %49 : vector<2x32xf32>
      %cst_37 = arith.constant dense<0.000000e+00> : vector<2xf32>
      %51 = vector.multi_reduction <add>, %50, %cst_37 [1] : vector<2x32xf32> to vector<2xf32>
      %52 = vector.shape_cast %51 : vector<2xf32> to vector<2x1xf32>
      %cst_38 = arith.constant 3.200000e+01 : f32
      %53 = vector.broadcast %cst_38 : f32 to vector<2x1xf32>
      %54 = arith.divf %52, %53 : vector<2x1xf32>
      %55 = vector.broadcast %47 : vector<2x1xf32> to vector<2x32xf32>
      %56 = arith.subf %43, %55 : vector<2x32xf32>
      %cst_39 = arith.constant 9.99999974E-6 : f32
      %57 = vector.broadcast %cst_39 : f32 to vector<2x1xf32>
      %58 = arith.addf %54, %57 : vector<2x1xf32>
      %59 = math.rsqrt %58 : vector<2x1xf32>
      %60 = vector.broadcast %59 : vector<2x1xf32> to vector<2x32xf32>
      %61 = arith.mulf %56, %60 : vector<2x32xf32>
      %c0_40 = arith.constant 0 : index
      %c0_41 = arith.constant 0 : index
      %62 = vector.load %arg7[%c0_40, %c0_41] : memref<1x32xf32, #tpu.memory_space<vmem>>, vector<1x32xf32>
      %63 = vector.broadcast %62 : vector<1x32xf32> to vector<2x32xf32>
      %64 = arith.mulf %61, %63 : vector<2x32xf32>
      %c0_42 = arith.constant 0 : index
      %c0_43 = arith.constant 0 : index
      %65 = vector.load %arg8[%c0_42, %c0_43] : memref<1x32xf32, #tpu.memory_space<vmem>>, vector<1x32xf32>
      %66 = vector.broadcast %65 : vector<1x32xf32> to vector<2x32xf32>
      %67 = arith.addf %64, %66 : vector<2x32xf32>
      %c0_44 = arith.constant 0 : index
      %c0_45 = arith.constant 0 : index
      %68 = vector.load %arg9[%c0_44, %c0_45] : memref<32x96xf32, #tpu.memory_space<vmem>>, vector<32x96xf32>
      %cst_46 = arith.constant dense<0.000000e+00> : vector<2x96xf32>
      %69 = tpu.matmul %67, %68, %cst_46 {dimension_numbers = #tpu.dot_dimension_numbers<[1], [0], [0], [1], [0, 0, 1, 1], [], []>} : vector<2x32xf32>, vector<32x96xf32>, vector<2x96xf32> -> vector<2x96xf32>
      %c0_47 = arith.constant 0 : index
      %c0_48 = arith.constant 0 : index
      %70 = vector.load %arg10[%c0_47, %c0_48] : memref<1x96xf32, #tpu.memory_space<vmem>>, vector<1x96xf32>
      %71 = vector.broadcast %70 : vector<1x96xf32> to vector<2x96xf32>
      %72 = arith.addf %69, %71 : vector<2x96xf32>
      %73 = vector.extract_strided_slice %72 {offsets = [0, 0], sizes = [2, 32], strides = [1, 1]} : vector<2x96xf32> to vector<2x32xf32>
      %cst_49 = arith.constant 0.353553385 : f32
      %74 = vector.broadcast %cst_49 : f32 to vector<2x32xf32>
      %75 = arith.mulf %73, %74 : vector<2x32xf32>
      %76 = vector.extract_strided_slice %72 {offsets = [0, 32], sizes = [2, 32], strides = [1, 1]} : vector<2x96xf32> to vector<2x32xf32>
      %77 = vector.extract_strided_slice %72 {offsets = [0, 64], sizes = [2, 32], strides = [1, 1]} : vector<2x96xf32> to vector<2x32xf32>
      %c0_50 = arith.constant 0 : index
      %c0_51 = arith.constant 0 : index
      %78 = vector.load %arg22[%c0_50, %c0_51] : memref<2x32xf32, #tpu.memory_space<vmem>>, vector<2x32xf32>
      tpu.vector_store %arg22[%c0_50, %c0_51], %75 {strides = array<i32>} : memref<2x32xf32, #tpu.memory_space<vmem>>, vector<2x32xf32>,
      %c0_52 = arith.constant 0 : index
      %c0_53 = arith.constant 0 : index
      %79 = vector.load %arg20[%c0_52, %c0_53] : memref<2x32xf32, #tpu.memory_space<vmem>>, vector<2x32xf32>
      tpu.vector_store %arg20[%c0_52, %c0_53], %76 {strides = array<i32>} : memref<2x32xf32, #tpu.memory_space<vmem>>, vector<2x32xf32>,
      %c0_54 = arith.constant 0 : index
      %c0_55 = arith.constant 0 : index
      %80 = vector.load %arg21[%c0_54, %c0_55] : memref<2x32xf32, #tpu.memory_space<vmem>>, vector<2x32xf32>
      tpu.vector_store %arg21[%c0_54, %c0_55], %77 {strides = array<i32>} : memref<2x32xf32, #tpu.memory_space<vmem>>, vector<2x32xf32>,
      %81 = arith.mulf %75, %76 : vector<2x32xf32>
      %cst_56 = arith.constant dense<0.000000e+00> : vector<2x4xf32>
      %82 = tpu.matmul %81, %0, %cst_56 {dimension_numbers = #tpu.dot_dimension_numbers<[1], [0], [0], [1], [0, 0, 1, 1], [], []>} : vector<2x32xf32>, vector<32x4xf32>, vector<2x4xf32> -> vector<2x4xf32>
      %c0_57 = arith.constant 0 : index
      %c0_58 = arith.constant 0 : index
      %83 = vector.load %arg23[%c0_57, %c0_58] : memref<2x4xf32, #tpu.memory_space<vmem>>, vector<2x4xf32>
      tpu.vector_store %arg23[%c0_57, %c0_58], %82 {strides = array<i32>} : memref<2x4xf32, #tpu.memory_space<vmem>>, vector<2x4xf32>,
      %cst_59 = arith.constant 1.000000e+00 : f32
      %84 = vector.broadcast %cst_59 : f32 to vector<2x4xf32>
      %c0_60 = arith.constant 0 : index
      %c0_61 = arith.constant 0 : index
      %85 = vector.load %arg24[%c0_60, %c0_61] : memref<2x4xf32, #tpu.memory_space<vmem>>, vector<2x4xf32>
      tpu.vector_store %arg24[%c0_60, %c0_61], %84 {strides = array<i32>} : memref<2x4xf32, #tpu.memory_space<vmem>>, vector<2x4xf32>,
      %c0_62 = arith.constant 0 : index
      %c0_63 = arith.constant 0 : index
      %86 = vector.load %arg25[%c0_62, %c0_63] : memref<2x32xf32, #tpu.memory_space<vmem>>, vector<2x32xf32>
      tpu.vector_store %arg25[%c0_62, %c0_63], %77 {strides = array<i32>} : memref<2x32xf32, #tpu.memory_space<vmem>>, vector<2x32xf32>,
    } else {
    }
    %c0_4 = arith.constant 0 : index
    %c0_5 = arith.constant 0 : index
    %5 = vector.load %arg22[%c0_4, %c0_5] : memref<2x32xf32, #tpu.memory_space<vmem>>, vector<2x32xf32>
    %c0_6 = arith.constant 0 : index
    %c0_7 = arith.constant 0 : index
    %c0_8 = arith.constant 0 : index
    %6 = vector.load %arg3[%c0_6, %c0_7, %c0_8] : memref<2x7x32xf32, #tpu.memory_space<vmem>>, vector<2x7x32xf32>
    %c0_9 = arith.constant 0 : index
    %c0_10 = arith.constant 0 : index
    %c0_11 = arith.constant 0 : index
    %7 = vector.load %arg4[%c0_9, %c0_10, %c0_11] : memref<2x7x32xf32, #tpu.memory_space<vmem>>, vector<2x7x32xf32>
    %8 = vector.shape_cast %5 : vector<2x32xf32> to vector<2x1x32xf32>
    %9 = vector.broadcast %8 : vector<2x1x32xf32> to vector<2x7x32xf32>
    %10 = arith.mulf %9, %6 : vector<2x7x32xf32>
    %11 = vector.shape_cast %10 : vector<2x7x32xf32> to vector<14x32xf32>
    %cst = arith.constant dense<0.000000e+00> : vector<14x4xf32>
    %12 = tpu.matmul %11, %0, %cst {dimension_numbers = #tpu.dot_dimension_numbers<[1], [0], [0], [1], [0, 0, 1, 1], [], []>} : vector<14x32xf32>, vector<32x4xf32>, vector<14x4xf32> -> vector<14x4xf32>
    %13 = vector.shape_cast %12 : vector<14x4xf32> to vector<2x7x4xf32>
    %c0_12 = arith.constant 0 : index
    %c0_13 = arith.constant 0 : index
    %14 = vector.load %arg23[%c0_12, %c0_13] : memref<2x4xf32, #tpu.memory_space<vmem>>, vector<2x4xf32>
    %cst_14 = arith.constant dense<0xFF800000> : vector<2x4xf32>
    %15 = vector.multi_reduction <maximumf>, %13, %cst_14 [1] : vector<2x7x4xf32> to vector<2x4xf32>
    %16 = arith.maximumf %14, %15 : vector<2x4xf32>
    %c0_15 = arith.constant 0 : index
    %c0_16 = arith.constant 0 : index
    %17 = vector.load %arg23[%c0_15, %c0_16] : memref<2x4xf32, #tpu.memory_space<vmem>>, vector<2x4xf32>
    %18 = arith.subf %17, %16 : vector<2x4xf32>
    %19 = math.exp %18 : vector<2x4xf32>
    %20 = vector.shape_cast %16 : vector<2x4xf32> to vector<2x1x4xf32>
    %21 = vector.broadcast %20 : vector<2x1x4xf32> to vector<2x7x4xf32>
    %22 = arith.subf %13, %21 : vector<2x7x4xf32>
    %23 = math.exp %22 : vector<2x7x4xf32>
    %c0_17 = arith.constant 0 : index
    %c0_18 = arith.constant 0 : index
    %24 = vector.load %arg24[%c0_17, %c0_18] : memref<2x4xf32, #tpu.memory_space<vmem>>, vector<2x4xf32>
    %25 = arith.mulf %19, %24 : vector<2x4xf32>
    %cst_19 = arith.constant dense<0.000000e+00> : vector<2x4xf32>
    %26 = vector.multi_reduction <add>, %23, %cst_19 [1] : vector<2x7x4xf32> to vector<2x4xf32>
    %27 = arith.addf %25, %26 : vector<2x4xf32>
    %c0_20 = arith.constant 0 : index
    %c0_21 = arith.constant 0 : index
    %28 = vector.load %arg24[%c0_20, %c0_21] : memref<2x4xf32, #tpu.memory_space<vmem>>, vector<2x4xf32>
    tpu.vector_store %arg24[%c0_20, %c0_21], %27 {strides = array<i32>} : memref<2x4xf32, #tpu.memory_space<vmem>>, vector<2x4xf32>,
    %29 = vector.shape_cast %23 : vector<2x7x4xf32> to vector<14x4xf32>
    %cst_22 = arith.constant dense<0.000000e+00> : vector<14x32xf32>
    %30 = tpu.matmul %29, %1, %cst_22 {dimension_numbers = #tpu.dot_dimension_numbers<[1], [0], [0], [1], [0, 0, 1, 1], [], []>} : vector<14x4xf32>, vector<4x32xf32>, vector<14x32xf32> -> vector<14x32xf32>
    %31 = vector.shape_cast %30 : vector<14x32xf32> to vector<2x7x32xf32>
    %cst_23 = arith.constant dense<0.000000e+00> : vector<2x32xf32>
    %32 = tpu.matmul %19, %1, %cst_23 {dimension_numbers = #tpu.dot_dimension_numbers<[1], [0], [0], [1], [0, 0, 1, 1], [], []>} : vector<2x4xf32>, vector<4x32xf32>, vector<2x32xf32> -> vector<2x32xf32>
    %c0_24 = arith.constant 0 : index
    %c0_25 = arith.constant 0 : index
    %33 = vector.load %arg25[%c0_24, %c0_25] : memref<2x32xf32, #tpu.memory_space<vmem>>, vector<2x32xf32>
    %34 = arith.mulf %32, %33 : vector<2x32xf32>
    %35 = arith.mulf %31, %7 : vector<2x7x32xf32>
    %cst_26 = arith.constant dense<0.000000e+00> : vector<2x32xf32>
    %36 = vector.multi_reduction <add>, %35, %cst_26 [1] : vector<2x7x32xf32> to vector<2x32xf32>
    %37 = arith.addf %34, %36 : vector<2x32xf32>
    %c0_27 = arith.constant 0 : index
    %c0_28 = arith.constant 0 : index
    %38 = vector.load %arg25[%c0_27, %c0_28] : memref<2x32xf32, #tpu.memory_space<vmem>>, vector<2x32xf32>
    tpu.vector_store %arg25[%c0_27, %c0_28], %37 {strides = array<i32>} : memref<2x32xf32, #tpu.memory_space<vmem>>, vector<2x32xf32>,
    %c0_29 = arith.constant 0 : index
    %c0_30 = arith.constant 0 : index
    %39 = vector.load %arg23[%c0_29, %c0_30] : memref<2x4xf32, #tpu.memory_space<vmem>>, vector<2x4xf32>
    tpu.vector_store %arg23[%c0_29, %c0_30], %16 {strides = array<i32>} : memref<2x4xf32, #tpu.memory_space<vmem>>, vector<2x4xf32>,
    %c0_i32_31 = arith.constant 0 : i32
    %40 = arith.cmpi eq, %arg1, %c0_i32_31 : i32
    %41 = arith.extui %40 : i1 to i32
    %c0_i32_32 = arith.constant 0 : i32
    %42 = arith.cmpi ne, %41, %c0_i32_32 : i32
    scf.if %42 {
      %c0_33 = arith.constant 0 : index
      %c0_34 = arith.constant 0 : index
      %43 = vector.load %arg24[%c0_33, %c0_34] : memref<2x4xf32, #tpu.memory_space<vmem>>, vector<2x4xf32>
      %44 = tpu.reciprocal %43 {approx = true} : vector<2x4xf32> -> vector<2x4xf32>
      %cst_35 = arith.constant dense<0.000000e+00> : vector<2x32xf32>
      %45 = tpu.matmul %44, %1, %cst_35 {dimension_numbers = #tpu.dot_dimension_numbers<[1], [0], [0], [1], [0, 0, 1, 1], [], []>} : vector<2x4xf32>, vector<4x32xf32>, vector<2x32xf32> -> vector<2x32xf32>
      %c0_36 = arith.constant 0 : index
      %c0_37 = arith.constant 0 : index
      %46 = vector.load %arg25[%c0_36, %c0_37] : memref<2x32xf32, #tpu.memory_space<vmem>>, vector<2x32xf32>
      %47 = arith.mulf %46, %45 : vector<2x32xf32>
      %c0_38 = arith.constant 0 : index
      %c0_39 = arith.constant 0 : index
      %48 = vector.load %arg11[%c0_38, %c0_39] : memref<32x32xf32, #tpu.memory_space<vmem>>, vector<32x32xf32>
      %cst_40 = arith.constant dense<0.000000e+00> : vector<2x32xf32>
      %49 = tpu.matmul %47, %48, %cst_40 {dimension_numbers = #tpu.dot_dimension_numbers<[1], [0], [0], [1], [0, 0, 1, 1], [], []>} : vector<2x32xf32>, vector<32x32xf32>, vector<2x32xf32> -> vector<2x32xf32>
      %c0_41 = arith.constant 0 : index
      %c0_42 = arith.constant 0 : index
      %50 = vector.load %arg12[%c0_41, %c0_42] : memref<1x32xf32, #tpu.memory_space<vmem>>, vector<1x32xf32>
      %51 = vector.broadcast %50 : vector<1x32xf32> to vector<2x32xf32>
      %52 = arith.addf %49, %51 : vector<2x32xf32>
      %c0_43 = arith.constant 0 : index
      %c0_44 = arith.constant 0 : index
      %53 = vector.load %arg2[%c0_43, %c0_44] : memref<2x32xf32, #tpu.memory_space<vmem>>, vector<2x32xf32>
      %54 = arith.addf %53, %52 : vector<2x32xf32>
      %cst_45 = arith.constant dense<0.000000e+00> : vector<2xf32>
      %55 = vector.multi_reduction <add>, %54, %cst_45 [1] : vector<2x32xf32> to vector<2xf32>
      %56 = vector.shape_cast %55 : vector<2xf32> to vector<2x1xf32>
      %cst_46 = arith.constant 3.200000e+01 : f32
      %57 = vector.broadcast %cst_46 : f32 to vector<2x1xf32>
      %58 = arith.divf %56, %57 : vector<2x1xf32>
      %59 = vector.broadcast %58 : vector<2x1xf32> to vector<2x32xf32>
      %60 = arith.subf %54, %59 : vector<2x32xf32>
      %61 = arith.mulf %60, %60 : vector<2x32xf32>
      %cst_47 = arith.constant dense<0.000000e+00> : vector<2xf32>
      %62 = vector.multi_reduction <add>, %61, %cst_47 [1] : vector<2x32xf32> to vector<2xf32>
      %63 = vector.shape_cast %62 : vector<2xf32> to vector<2x1xf32>
      %cst_48 = arith.constant 3.200000e+01 : f32
      %64 = vector.broadcast %cst_48 : f32 to vector<2x1xf32>
      %65 = arith.divf %63, %64 : vector<2x1xf32>
      %66 = vector.broadcast %58 : vector<2x1xf32> to vector<2x32xf32>
      %67 = arith.subf %54, %66 : vector<2x32xf32>
      %cst_49 = arith.constant 9.99999974E-6 : f32
      %68 = vector.broadcast %cst_49 : f32 to vector<2x1xf32>
      %69 = arith.addf %65, %68 : vector<2x1xf32>
      %70 = math.rsqrt %69 : vector<2x1xf32>
      %71 = vector.broadcast %70 : vector<2x1xf32> to vector<2x32xf32>
      %72 = arith.mulf %67, %71 : vector<2x32xf32>
      %c0_50 = arith.constant 0 : index
      %c0_51 = arith.constant 0 : index
      %73 = vector.load %arg13[%c0_50, %c0_51] : memref<1x32xf32, #tpu.memory_space<vmem>>, vector<1x32xf32>
      %74 = vector.broadcast %73 : vector<1x32xf32> to vector<2x32xf32>
      %75 = arith.mulf %72, %74 : vector<2x32xf32>
      %c0_52 = arith.constant 0 : index
      %c0_53 = arith.constant 0 : index
      %76 = vector.load %arg14[%c0_52, %c0_53] : memref<1x32xf32, #tpu.memory_space<vmem>>, vector<1x32xf32>
      %77 = vector.broadcast %76 : vector<1x32xf32> to vector<2x32xf32>
      %78 = arith.addf %75, %77 : vector<2x32xf32>
      %c0_54 = arith.constant 0 : index
      %c0_55 = arith.constant 0 : index
      %79 = vector.load %arg15[%c0_54, %c0_55] : memref<32x128xf32, #tpu.memory_space<vmem>>, vector<32x128xf32>
      %cst_56 = arith.constant dense<0.000000e+00> : vector<2x128xf32>
      %80 = tpu.matmul %78, %79, %cst_56 {dimension_numbers = #tpu.dot_dimension_numbers<[1], [0], [0], [1], [0, 0, 1, 1], [], []>} : vector<2x32xf32>, vector<32x128xf32>, vector<2x128xf32> -> vector<2x128xf32>
      %c0_57 = arith.constant 0 : index
      %c0_58 = arith.constant 0 : index
      %81 = vector.load %arg16[%c0_57, %c0_58] : memref<1x128xf32, #tpu.memory_space<vmem>>, vector<1x128xf32>
      %82 = vector.broadcast %81 : vector<1x128xf32> to vector<2x128xf32>
      %83 = arith.addf %80, %82 : vector<2x128xf32>
      %cst_59 = arith.constant 5.000000e-01 : f32
      %84 = vector.broadcast %cst_59 : f32 to vector<2x128xf32>
      %85 = arith.mulf %84, %83 : vector<2x128xf32>
      %cst_60 = arith.constant 0.707106769 : f32
      %86 = vector.broadcast %cst_60 : f32 to vector<2x128xf32>
      %87 = arith.mulf %83, %86 : vector<2x128xf32>
      %88 = math.erf %87 : vector<2x128xf32>
      %cst_61 = arith.constant 1.000000e+00 : f32
      %89 = vector.broadcast %cst_61 : f32 to vector<2x128xf32>
      %90 = arith.addf %89, %88 : vector<2x128xf32>
      %91 = arith.mulf %85, %90 : vector<2x128xf32>
      %c0_62 = arith.constant 0 : index
      %c0_63 = arith.constant 0 : index
      %92 = vector.load %arg17[%c0_62, %c0_63] : memref<128x32xf32, #tpu.memory_space<vmem>>, vector<128x32xf32>
      %cst_64 = arith.constant dense<0.000000e+00> : vector<2x32xf32>
      %93 = tpu.matmul %91, %92, %cst_64 {dimension_numbers = #tpu.dot_dimension_numbers<[1], [0], [0], [1], [0, 0, 1, 1], [], []>} : vector<2x128xf32>, vector<128x32xf32>, vector<2x32xf32> -> vector<2x32xf32>
      %c0_65 = arith.constant 0 : index
      %c0_66 = arith.constant 0 : index
      %94 = vector.load %arg18[%c0_65, %c0_66] : memref<1x32xf32, #tpu.memory_space<vmem>>, vector<1x32xf32>
      %95 = vector.broadcast %94 : vector<1x32xf32> to vector<2x32xf32>
      %96 = arith.addf %93, %95 : vector<2x32xf32>
      %97 = arith.addf %54, %96 : vector<2x32xf32>
      %c0_67 = arith.constant 0 : index
      %c0_68 = arith.constant 0 : index
      %98 = vector.load %arg19[%c0_67, %c0_68] : memref<2x32xf32, #tpu.memory_space<vmem>>, vector<2x32xf32>
      tpu.vector_store %arg19[%c0_67, %c0_68], %97 {strides = array<i32>} : memref<2x32xf32, #tpu.memory_space<vmem>>, vector<2x32xf32>,
    } else {
    }
    return
  }
  func.func @transform_0(%arg0: i32, %arg1: i32) -> (i32, i32) {
    %c0_i32 = arith.constant 0 : i32
    %c0_i32_0 = arith.constant 0 : i32
    return %arg0, %c0_i32 : i32, i32
  }
  func.func @transform_1(%arg0: i32, %arg1: i32) -> (i32, i32, i32) {
    %c0_i32 = arith.constant 0 : i32
    %c0_i32_0 = arith.constant 0 : i32
    return %arg0, %arg1, %c0_i32 : i32, i32, i32
  }
  func.func @transform_2(%arg0: i32, %arg1: i32) -> (i32, i32, i32) {
    %c0_i32 = arith.constant 0 : i32
    %c0_i32_0 = arith.constant 0 : i32
    return %arg0, %arg1, %c0_i32 : i32, i32, i32
  }
  func.func @transform_3(%arg0: i32, %arg1: i32) -> (i32, i32) {
    %c0_i32 = arith.constant 0 : i32
    %c0_i32_0 = arith.constant 0 : i32
    %c0_i32_1 = arith.constant 0 : i32
    return %c0_i32, %c0_i32_0 : i32, i32
  }
  func.func @transform_4(%arg0: i32, %arg1: i32) -> (i32, i32) {
    %c0_i32 = arith.constant 0 : i32
    %c0_i32_0 = arith.constant 0 : i32
    %c0_i32_1 = arith.constant 0 : i32
    return %c0_i32, %c0_i32_0 : i32, i32
  }
  func.func @transform_5(%arg0: i32, %arg1: i32) -> (i32, i32) {
    %c0_i32 = arith.constant 0 : i32
    %c0_i32_0 = arith.constant 0 : i32
    %c0_i32_1 = arith.constant 0 : i32
    return %c0_i32, %c0_i32_0 : i32, i32
  }
  func.func @transform_6(%arg0: i32, %arg1: i32) -> (i32, i32) {
    %c0_i32 = arith.constant 0 : i32
    %c0_i32_0 = arith.constant 0 : i32
    %c0_i32_1 = arith.constant 0 : i32
    return %c0_i32, %c0_i32_0 : i32, i32
  }
  func.func @transform_7(%arg0: i32, %arg1: i32) -> (i32, i32) {
    %c0_i32 = arith.constant 0 : i32
    %c0_i32_0 = arith.constant 0 : i32
    %c0_i32_1 = arith.constant 0 : i32
    return %c0_i32, %c0_i32_0 : i32, i32
  }
  func.func @transform_8(%arg0: i32, %arg1: i32) -> (i32, i32) {
    %c0_i32 = arith.constant 0 : i32
    %c0_i32_0 = arith.constant 0 : i32
    %c0_i32_1 = arith.constant 0 : i32
    return %c0_i32, %c0_i32_0 : i32, i32
  }
  func.func @transform_9(%arg0: i32, %arg1: i32) -> (i32, i32) {
    %c0_i32 = arith.constant 0 : i32
    %c0_i32_0 = arith.constant 0 : i32
    %c0_i32_1 = arith.constant 0 : i32
    return %c0_i32, %c0_i32_0 : i32, i32
  }
  func.func @transform_10(%arg0: i32, %arg1: i32) -> (i32, i32) {
    %c0_i32 = arith.constant 0 : i32
    %c0_i32_0 = arith.constant 0 : i32
    %c0_i32_1 = arith.constant 0 : i32
    return %c0_i32, %c0_i32_0 : i32, i32
  }
  func.func @transform_11(%arg0: i32, %arg1: i32) -> (i32, i32) {
    %c0_i32 = arith.constant 0 : i32
    %c0_i32_0 = arith.constant 0 : i32
    %c0_i32_1 = arith.constant 0 : i32
    return %c0_i32, %c0_i32_0 : i32, i32
  }
  func.func @transform_12(%arg0: i32, %arg1: i32) -> (i32, i32) {
    %c0_i32 = arith.constant 0 : i32
    %c0_i32_0 = arith.constant 0 : i32
    %c0_i32_1 = arith.constant 0 : i32
    return %c0_i32, %c0_i32_0 : i32, i32
  }
  func.func @transform_13(%arg0: i32, %arg1: i32) -> (i32, i32) {
    %c0_i32 = arith.constant 0 : i32
    %c0_i32_0 = arith.constant 0 : i32
    %c0_i32_1 = arith.constant 0 : i32
    return %c0_i32, %c0_i32_0 : i32, i32
  }
  func.func @transform_14(%arg0: i32, %arg1: i32) -> (i32, i32) {
    %c0_i32 = arith.constant 0 : i32
    %c0_i32_0 = arith.constant 0 : i32
    %c0_i32_1 = arith.constant 0 : i32
    return %c0_i32, %c0_i32_0 : i32, i32
  }
  func.func @transform_15(%arg0: i32, %arg1: i32) -> (i32, i32) {
    %c0_i32 = arith.constant 0 : i32
    %c0_i32_0 = arith.constant 0 : i32
    %c0_i32_1 = arith.constant 0 : i32
    return %c0_i32, %c0_i32_0 : i32, i32
  }
  func.func @transform_16(%arg0: i32, %arg1: i32) -> (i32, i32) {
    %c0_i32 = arith.constant 0 : i32
    %c0_i32_0 = arith.constant 0 : i32
    %c0_i32_1 = arith.constant 0 : i32
    return %c0_i32, %c0_i32_0 : i32, i32
  }
  func.func @transform_17(%arg0: i32, %arg1: i32) -> (i32, i32) {
    %c0_i32 = arith.constant 0 : i32
    %c0_i32_0 = arith.constant 0 : i32
    return %arg0, %c0_i32 : i32, i32
  }
  func.func @transform_18(%arg0: i32, %arg1: i32) -> (i32, i32) {
    %c0_i32 = arith.constant 0 : i32
    %c0_i32_0 = arith.constant 0 : i32
    return %arg0, %c0_i32 : i32, i32
  }
  func.func @transform_19(%arg0: i32, %arg1: i32) -> (i32, i32) {
    %c0_i32 = arith.constant 0 : i32
    %c0_i32_0 = arith.constant 0 : i32
    return %arg0, %c0_i32 : i32, i32
  }
}

</mosaic_0001>

<llo_original>
// kernel: tpu_custom_call.1
$region0: #{tpu_custom_call.1}
  #allocation0 [shape = 'u32[]', space=smem, size = 0x4, offset = 0x4, fixed_abs, tag = 'smem constant byte address 0x4 - core index']
  #allocation1 [shape = 'u32[144,128]{1,0:T(1,128)}', space=vmem, size = 0x12000, scoped, tag = 'internal scratch']
  #allocation2 [shape = 'f32[2,32]{1,0:T(2,128)}', space=vmem, size = 0x400, scoped, tag = 'scratch operand']
  #allocation3 [shape = 'f32[2,4]{1,0:T(2,128)}', space=vmem, size = 0x400, scoped, tag = 'scratch operand']
  #allocation4 [shape = 'f32[2,4]{1,0:T(2,128)}', space=vmem, size = 0x400, scoped, tag = 'scratch operand']
  #allocation5 [shape = 'f32[2,32]{1,0:T(2,128)}', space=vmem, size = 0x400, scoped, tag = 'scratch operand']
  %s0 = inlined_call_operand.vmem [shape: f32[2,32], index: 0, kind: input, shape index: {}]
  %s1 = inlined_call_operand.vmem [shape: f32[2,7,32], index: 1, kind: input, shape index: {}]
  %s2 = inlined_call_operand.vmem [shape: f32[2,7,32], index: 2, kind: input, shape index: {}]
  %s3 = inlined_call_operand.vmem [shape: f32[32,4], index: 3, kind: input, shape index: {}]
  %s4 = inlined_call_operand.vmem [shape: f32[4,32], index: 4, kind: input, shape index: {}]
  %s5 = inlined_call_operand.vmem [shape: f32[1,32], index: 5, kind: input, shape index: {}]
  %s6 = inlined_call_operand.vmem [shape: f32[1,32], index: 6, kind: input, shape index: {}]
  %s7 = inlined_call_operand.vmem [shape: f32[32,96], index: 7, kind: input, shape index: {}]
  %s8 = inlined_call_operand.vmem [shape: f32[1,96], index: 8, kind: input, shape index: {}]
  %s9 = inlined_call_operand.vmem [shape: f32[32,32], index: 9, kind: input, shape index: {}]
  %s10 = inlined_call_operand.vmem [shape: f32[1,32], index: 10, kind: input, shape index: {}]
  %s11 = inlined_call_operand.vmem [shape: f32[1,32], index: 11, kind: input, shape index: {}]
  %s12 = inlined_call_operand.vmem [shape: f32[1,32], index: 12, kind: input, shape index: {}]
  %s13 = inlined_call_operand.vmem [shape: f32[32,128], index: 13, kind: input, shape index: {}]
  %s14 = inlined_call_operand.vmem [shape: f32[1,128], index: 14, kind: input, shape index: {}]
  %s15 = inlined_call_operand.vmem [shape: f32[128,32], index: 15, kind: input, shape index: {}]
  %s16 = inlined_call_operand.vmem [shape: f32[1,32], index: 16, kind: input, shape index: {}]
  %s17 = inlined_call_operand.hbm [shape: f32[2,32], index: 17, kind: output, shape index: {0}]
  %s18 = inlined_call_operand.hbm [shape: f32[2,32], index: 18, kind: output, shape index: {1}]
  %s19 = inlined_call_operand.hbm [shape: f32[2,32], index: 19, kind: output, shape index: {2}]
  %20 = xla_tuple %s17, %s18, %s19
  %s21 = sld [smem:[#allocation0]]
  $region102: #{tpu_custom_call.1} parent=0
    _
  %s23 = ssub.s32 1, %s21
  %s24 = scalar_select 0, %s23, %s21
  $region1: #{tpu_custom_call.1} parent=0
    #allocation6 [shape = 'u8[1024]{0}', space=vmem, size = 0x400, scoped, tag = 'output window, operand 0, single buffered']
    #allocation7 [shape = 's32[1]{0}', space=sflag, size = 0x4, scoped, tag = 'scoped memory for tpu_custom_call.1']
    #allocation8 [shape = 'u8[1024]{0}', space=vmem, size = 0x400, scoped, tag = 'output window, operand 1, single buffered']
    #allocation9 [shape = 's32[1]{0}', space=sflag, size = 0x4, scoped, tag = 'scoped memory for tpu_custom_call.1']
    #allocation10 [shape = 'u8[1024]{0}', space=vmem, size = 0x400, scoped, tag = 'output window, operand 2, single buffered']
    %25 = vsyncpa [#allocation7], 0
    %26 = vsyncpa [#allocation9], 0
    // Predicated region
    $region2: #{tpu_custom_call.1} parent=1 // pred_check
      _
    $region3: #{tpu_custom_call.1} parent=1 // pred_check_branch
      %28 = sbr.rel (0) target = $region5
    $region4: #{tpu_custom_call.1} parent=1 // pred_region
      _
    $region5: #{tpu_custom_call.1} parent=1 // pred_fallthru
      _
    // Predicated region
    $region6: #{tpu_custom_call.1} parent=1 // pred_check
      _
    $region7: #{tpu_custom_call.1} parent=1 // pred_check_branch
      %30 = sbr.rel (0) target = $region9
    $region8: #{tpu_custom_call.1} parent=1 // pred_region
      _
    $region9: #{tpu_custom_call.1} parent=1 // pred_fallthru
      _
    // Predicated region
    $region10: #{tpu_custom_call.1} parent=1 // pred_check
      _
    $region11: #{tpu_custom_call.1} parent=1 // pred_check_branch
      %32 = sbr.rel (0) target = $region13
    $region12: #{tpu_custom_call.1} parent=1 // pred_region
      _
    $region13: #{tpu_custom_call.1} parent=1 // pred_fallthru
      _
    // Predicated region
    $region14: #{tpu_custom_call.1} parent=1 // pred_check
      _
    $region15: #{tpu_custom_call.1} parent=1 // pred_check_branch
      %34 = sbr.rel (0) target = $region17
    $region16: #{tpu_custom_call.1} parent=1 // pred_region
      _
    $region17: #{tpu_custom_call.1} parent=1 // pred_fallthru
      _
    // Predicated region
    $region18: #{tpu_custom_call.1} parent=1 // pred_check
      _
    $region19: #{tpu_custom_call.1} parent=1 // pred_check_branch
      %36 = sbr.rel (0) target = $region21
    $region20: #{tpu_custom_call.1} parent=1 // pred_region
      _
    $region21: #{tpu_custom_call.1} parent=1 // pred_fallthru
      _
    // Predicated region
    $region22: #{tpu_custom_call.1} parent=1 // pred_check
      _
    $region23: #{tpu_custom_call.1} parent=1 // pred_check_branch
      %38 = sbr.rel (0) target = $region25
    $region24: #{tpu_custom_call.1} parent=1 // pred_region
      _
    $region25: #{tpu_custom_call.1} parent=1 // pred_fallthru
      _
    // Predicated region
    $region26: #{tpu_custom_call.1} parent=1 // pred_check
      _
    $region27: #{tpu_custom_call.1} parent=1 // pred_check_branch
      %40 = sbr.rel (0) target = $region29
    $region28: #{tpu_custom_call.1} parent=1 // pred_region
      _
    $region29: #{tpu_custom_call.1} parent=1 // pred_fallthru
      _
    // Predicated region
    $region30: #{tpu_custom_call.1} parent=1 // pred_check
      _
    $region31: #{tpu_custom_call.1} parent=1 // pred_check_branch
      %42 = sbr.rel (0) target = $region33
    $region32: #{tpu_custom_call.1} parent=1 // pred_region
      _
    $region33: #{tpu_custom_call.1} parent=1 // pred_fallthru
      _
    // Predicated region
    $region34: #{tpu_custom_call.1} parent=1 // pred_check
      _
    $region35: #{tpu_custom_call.1} parent=1 // pred_check_branch
      %44 = sbr.rel (0) target = $region37
    $region36: #{tpu_custom_call.1} parent=1 // pred_region
      _
    $region37: #{tpu_custom_call.1} parent=1 // pred_fallthru
      _
    // Predicated region
    $region38: #{tpu_custom_call.1} parent=1 // pred_check
      _
    $region39: #{tpu_custom_call.1} parent=1 // pred_check_branch
      %46 = sbr.rel (0) target = $region41
    $region40: #{tpu_custom_call.1} parent=1 // pred_region
      _
    $region41: #{tpu_custom_call.1} parent=1 // pred_fallthru
      _
    // Predicated region
    $region42: #{tpu_custom_call.1} parent=1 // pred_check
      _
    $region43: #{tpu_custom_call.1} parent=1 // pred_check_branch
      %48 = sbr.rel (0) target = $region45
    $region44: #{tpu_custom_call.1} parent=1 // pred_region
      _
    $region45: #{tpu_custom_call.1} parent=1 // pred_fallthru
      _
    // Predicated region
    $region46: #{tpu_custom_call.1} parent=1 // pred_check
      _
    $region47: #{tpu_custom_call.1} parent=1 // pred_check_branch
      %50 = sbr.rel (0) target = $region49
    $region48: #{tpu_custom_call.1} parent=1 // pred_region
      _
    $region49: #{tpu_custom_call.1} parent=1 // pred_fallthru
      _
    // Predicated region
    $region50: #{tpu_custom_call.1} parent=1 // pred_check
      _
    $region51: #{tpu_custom_call.1} parent=1 // pred_check_branch
      %52 = sbr.rel (0) target = $region53
    $region52: #{tpu_custom_call.1} parent=1 // pred_region
      _
    $region53: #{tpu_custom_call.1} parent=1 // pred_fallthru
      _
    // Predicated region
    $region54: #{tpu_custom_call.1} parent=1 // pred_check
      _
    $region55: #{tpu_custom_call.1} parent=1 // pred_check_branch
      %54 = sbr.rel (0) target = $region57
    $region56: #{tpu_custom_call.1} parent=1 // pred_region
      _
    $region57: #{tpu_custom_call.1} parent=1 // pred_fallthru
      _
    // Predicated region
    $region58: #{tpu_custom_call.1} parent=1 // pred_check
      _
    $region59: #{tpu_custom_call.1} parent=1 // pred_check_branch
      %56 = sbr.rel (0) target = $region61
    $region60: #{tpu_custom_call.1} parent=1 // pred_region
      _
    $region61: #{tpu_custom_call.1} parent=1 // pred_fallthru
      _
    // Predicated region
    $region62: #{tpu_custom_call.1} parent=1 // pred_check
      _
    $region63: #{tpu_custom_call.1} parent=1 // pred_check_branch
      %58 = sbr.rel (0) target = $region65
    $region64: #{tpu_custom_call.1} parent=1 // pred_region
      _
    $region65: #{tpu_custom_call.1} parent=1 // pred_fallthru
      _
    // Predicated region
    $region66: #{tpu_custom_call.1} parent=1 // pred_check
      _
    $region67: #{tpu_custom_call.1} parent=1 // pred_check_branch
      %60 = sbr.rel (0) target = $region69
    $region68: #{tpu_custom_call.1} parent=1 // pred_region
      _
    $region69: #{tpu_custom_call.1} parent=1 // pred_fallthru
      _
    %v61 = vld [vmem:[%s3] sm:$0xff]
    %v62 = vld [vmem:[%s3 + $0x8] sm:$0xff]
    %v63 = vld [vmem:[%s3 + $0x10] sm:$0xff]
    %v64 = vld [vmem:[%s3 + $0x18] sm:$0xff]
    %v65 = vld [vmem:[%s4] sm:$0xf]
    %p66 = scmp.eq.s32.totalorder 0, 0
    // Predicated region
    $region70: #{tpu_custom_call.1} parent=1 // pred_check
      %p67 = pneg %p66
    $region71: #{tpu_custom_call.1} parent=1 // pred_check_branch
      %69 = sbr.rel (%p67) target = $region73
    $region72: #{tpu_custom_call.1} parent=1 // pred_region
      %v70 = vld [vmem:[%s0] sm:$0x3]
      %vm71 = vcmask 254976
      %v72 = vsel %vm71, %v70, 0.0
      %73 = vadd.xlane.f32.xlu0 %v72
      %v74 = vpop.xlane.xlu0 %73
      %v75 = vrcp.pop 32.0
      %v76 = vmul.f32 %v74, %v75
      %v77 = vsub.f32 %v70, %v76
      %v78 = vmul.f32 %v77, %v77
      %v79 = vsel %vm71, %v78, 0.0
      %80 = vadd.xlane.f32.xlu0 %v79
      %v81 = vpop.xlane.xlu0 %80
      %v82 = vmul.f32 %v81, %v75
      %v83 = vadd.f32 %v82, 1e-05
      %v84 = vrsqrt.pop %v83
      %v85 = vmul.f32 %v77, %v84
      %v86 = vld [vmem:[%s5] sm:$0x1]
      %v88 = vlaneseq
      %v89 = vshrl.u32 %v88, 7
      %v90 = vsub.s32 0, %v89
      %v91 = vrot.slane %v86, %v90
      %v93 = vmul.f32 %v85, %v91
      %v94 = vld [vmem:[%s6] sm:$0x1]
      %v96 = vlaneseq
      %v97 = vshrl.u32 %v96, 7
      %v98 = vsub.s32 0, %v97
      %v99 = vrot.slane %v94, %v98
      %v101 = vadd.f32 %v93, %v99
      %v102 = vld [vmem:[%s7] sm:$0xff]
      %v103 = vld [vmem:[%s7 + $0x8] sm:$0xff]
      %v104 = vld [vmem:[%s7 + $0x10] sm:$0xff]
      %v105 = vld [vmem:[%s7 + $0x18] sm:$0xff]
      %v106 = vld [vmem:[%s8] sm:$0x1]
      %v108 = vlaneseq
      %v109 = vshrl.u32 %v108, 7
      %v110 = vsub.s32 0, %v109
      %v111 = vrot.slane %v106, %v110
      %vm113 = vcmask 261120
      %v115 = vsel %vm113, %v101, 0
      %117 = vmatprep.subr.mxu0 0.0
      %118 = vmatpush1.msra.mxu0 0.0
      %119 = vmatprep.subr.mxu0 0.0
      %120 = vmatpush1.msra.mxu0 0.0
      %121 = vmatprep.subr.mxu0 0.0
      %122 = vmatpush1.msra.mxu0 0.0
      %123 = vmatprep.subr.mxu0 0.0
      %124 = vmatpush1.msra.mxu0 0.0
      %125 = vmatprep.subr.mxu0 0.0
      %126 = vmatpush1.msra.mxu0 0.0
      %127 = vmatprep.subr.mxu0 0.0
      %128 = vmatpush1.msra.mxu0 0.0
      %129 = vmatprep.subr.mxu0 0.0
      %130 = vmatpush1.msra.mxu0 0.0
      %131 = vmatprep.subr.mxu0 0.0
      %132 = vmatpush1.msra.mxu0 0.0
      %133 = vmatprep.subr.mxu0 0.0
      %134 = vmatpush1.msra.mxu0 0.0
      %135 = vmatprep.subr.mxu0 0.0
      %136 = vmatpush1.msra.mxu0 0.0
      %137 = vmatprep.subr.mxu0 0.0
      %138 = vmatpush1.msra.mxu0 0.0
      %139 = vmatprep.subr.mxu0 0.0
      %140 = vmatpush1.msra.mxu0 0.0
      %141 = vmatprep.subr.mxu0 0.0
      %142 = vmatpush1.msra.mxu0 %v105
      %143 = vmatprep.subr.mxu0 0.0
      %144 = vmatpush1.msra.mxu0 %v104
      %145 = vmatprep.subr.mxu0 0.0
      %146 = vmatpush1.msra.mxu0 %v103
      %147 = vmatprep.subr.mxu0 0.0
      %148 = vmatpush1.msra.mxu0 %v102
      %149 = vmatprep.subr.mxu0 0.0
      %150 = vmatpush2.msra.mxu0 0.0
      %151 = vmatprep.subr.mxu0 0.0
      %152 = vmatpush2.msra.mxu0 0.0
      %153 = vmatprep.subr.mxu0 0.0
      %154 = vmatpush2.msra.mxu0 0.0
      %155 = vmatprep.subr.mxu0 0.0
      %156 = vmatpush2.msra.mxu0 0.0
      %157 = vmatprep.subr.mxu0 0.0
      %158 = vmatpush2.msra.mxu0 0.0
      %159 = vmatprep.subr.mxu0 0.0
      %160 = vmatpush2.msra.mxu0 0.0
      %161 = vmatprep.subr.mxu0 0.0
      %162 = vmatpush2.msra.mxu0 0.0
      %163 = vmatprep.subr.mxu0 0.0
      %164 = vmatpush2.msra.mxu0 0.0
      %165 = vmatprep.subr.mxu0 0.0
      %166 = vmatpush2.msra.mxu0 0.0
      %167 = vmatprep.subr.mxu0 0.0
      %168 = vmatpush2.msra.mxu0 0.0
      %169 = vmatprep.subr.mxu0 0.0
      %170 = vmatpush2.msra.mxu0 0.0
      %171 = vmatprep.subr.mxu0 0.0
      %172 = vmatpush2.msra.mxu0 0.0
      %173 = vmatprep.subr.mxu0 0.0
      %174 = vmatpush2.msra.mxu0 0.0
      %175 = vmatprep.subr.mxu0 0.0
      %176 = vmatpush2.msra.mxu0 0.0
      %177 = vmatprep.subr.mxu0 0.0
      %178 = vmatpush2.msra.mxu0 0.0
      %179 = vmatprep.subr.mxu0 0.0
      %180 = vmatpush2.msra.mxu0 0.0
      %181 = vmatprep.mubr.f32.mxu0 0.0
      %182 = vmatmul.mubr.f32.gmra.mxu0 %v115
      %v183 = vpop.f32.mrf.mxu0
      %v184 = vadd.f32 %v111, %v183
      %v185 = vpop.f32.mrf.mxu0
      %186 = vdwg.mxu0
      %v187 = vmul.f32 %v184, 0.35355338
      %188 = vst.msk [vmem:[#allocation2] sm:$0x3] %vm71, %v187
      %190 = vrot.lane.b32.xlu0 %v184, 96
      %v191 = vpop.permute.xlu0 %190
      %193 = vst.msk [vmem:[#allocation8] sm:$0x3] %vm71, %v191
      %194 = vrot.lane.b32.xlu0 %v184, 64
      %v195 = vpop.permute.xlu0 %194
      %197 = vst.msk [vmem:[#allocation10] sm:$0x3] %vm71, %v195
      %v198 = vmul.f32 %v187, %v191
      %v200 = vsel %vm113, %v198, 0
      %202 = vmatprep.subr.mxu0 0.0
      %203 = vmatpush1.msra.mxu0 0.0
      %204 = vmatprep.subr.mxu0 0.0
      %205 = vmatpush1.msra.mxu0 0.0
      %206 = vmatprep.subr.mxu0 0.0
      %207 = vmatpush1.msra.mxu0 0.0
      %208 = vmatprep.subr.mxu0 0.0
      %209 = vmatpush1.msra.mxu0 0.0
      %210 = vmatprep.subr.mxu0 0.0
      %211 = vmatpush1.msra.mxu0 0.0
      %212 = vmatprep.subr.mxu0 0.0
      %213 = vmatpush1.msra.mxu0 0.0
      %214 = vmatprep.subr.mxu0 0.0
      %215 = vmatpush1.msra.mxu0 0.0
      %216 = vmatprep.subr.mxu0 0.0
      %217 = vmatpush1.msra.mxu0 0.0
      %218 = vmatprep.subr.mxu0 0.0
      %219 = vmatpush1.msra.mxu0 0.0
      %220 = vmatprep.subr.mxu0 0.0
      %221 = vmatpush1.msra.mxu0 0.0
      %222 = vmatprep.subr.mxu0 0.0
      %223 = vmatpush1.msra.mxu0 0.0
      %224 = vmatprep.subr.mxu0 0.0
      %225 = vmatpush1.msra.mxu0 0.0
      %226 = vmatprep.subr.mxu0 0.0
      %227 = vmatpush1.msra.mxu0 %v64
      %228 = vmatprep.subr.mxu0 0.0
      %229 = vmatpush1.msra.mxu0 %v63
      %230 = vmatprep.subr.mxu0 0.0
      %231 = vmatpush1.msra.mxu0 %v62
      %232 = vmatprep.subr.mxu0 0.0
      %233 = vmatpush1.msra.mxu0 %v61
      %234 = vmatprep.subr.mxu0 0.0
      %235 = vmatpush2.msra.mxu0 0.0
      %236 = vmatprep.subr.mxu0 0.0
      %237 = vmatpush2.msra.mxu0 0.0
      %238 = vmatprep.subr.mxu0 0.0
      %239 = vmatpush2.msra.mxu0 0.0
      %240 = vmatprep.subr.mxu0 0.0
      %241 = vmatpush2.msra.mxu0 0.0
      %242 = vmatprep.subr.mxu0 0.0
      %243 = vmatpush2.msra.mxu0 0.0
      %244 = vmatprep.subr.mxu0 0.0
      %245 = vmatpush2.msra.mxu0 0.0
      %246 = vmatprep.subr.mxu0 0.0
      %247 = vmatpush2.msra.mxu0 0.0
      %248 = vmatprep.subr.mxu0 0.0
      %249 = vmatpush2.msra.mxu0 0.0
      %250 = vmatprep.subr.mxu0 0.0
      %251 = vmatpush2.msra.mxu0 0.0
      %252 = vmatprep.subr.mxu0 0.0
      %253 = vmatpush2.msra.mxu0 0.0
      %254 = vmatprep.subr.mxu0 0.0
      %255 = vmatpush2.msra.mxu0 0.0
      %256 = vmatprep.subr.mxu0 0.0
      %257 = vmatpush2.msra.mxu0 0.0
      %258 = vmatprep.subr.mxu0 0.0
      %259 = vmatpush2.msra.mxu0 0.0
      %260 = vmatprep.subr.mxu0 0.0
      %261 = vmatpush2.msra.mxu0 0.0
      %262 = vmatprep.subr.mxu0 0.0
      %263 = vmatpush2.msra.mxu0 0.0
      %264 = vmatprep.subr.mxu0 0.0
      %265 = vmatpush2.msra.mxu0 0.0
      %266 = vmatprep.mubr.f32.mxu0 0.0
      %267 = vmatmul.mubr.f32.gmra.mxu0 %v200
      %v268 = vpop.f32.mrf.mxu0
      %v269 = vadd.f32 0.0, %v268
      %v270 = vpop.f32.mrf.mxu0
      %271 = vdwg.mxu0
      %vm272 = vcmask 25600
      %273 = vst.msk [vmem:[#allocation3] sm:$0x3] %vm272, %v269
      %274 = vst.msk [vmem:[#allocation4] sm:$0x3] %vm272, 1.0
      %275 = vst.msk [vmem:[#allocation5] sm:$0x3] %vm71, %v195
    $region73: #{tpu_custom_call.1} parent=1 // pred_fallthru
      _
    %v276 = vld [vmem:[#allocation2] sm:$0x3]
    %v277 = vld [vmem:[%s1] sm:$0x7f]
    %v278 = vld [vmem:[%s1 + $0x8] sm:$0x7f]
    %v279 = vld [vmem:[%s2] sm:$0x7f]
    %v280 = vld [vmem:[%s2 + $0x8] sm:$0x7f]
    %v283 = vunpack.c.l.s4 1966171168
    %v284 = vunpack.c.0.s8 %v283
    %v285 = vlaneseq
    %v286 = vshrl.u32 %v285, 7
    %v287 = vsub.s32 %v284, %v286
    %v288 = vrot.slane %v276, %v287
    %v289 = vcombine.high %v288, %v288
    %v291 = vunpack.c.l.s4 1966171168
    %v292 = vunpack.c.0.s8 %v291
    %v293 = vlaneseq
    %v294 = vshrl.u32 %v293, 7
    %v295 = vsub.s32 %v292, %v294
    %v296 = vrot.slane %v288, %v295
    %v298 = vunpack.c.l.s4 1966171168
    %v299 = vunpack.c.0.s8 %v298
    %v300 = vlaneseq
    %v301 = vshrl.u32 %v300, 7
    %v302 = vsub.s32 %v299, %v301
    %v303 = vrot.slane %v289, %v302
    %v304 = vlaneseq
    %v305 = vshrl.u32 %v304, 7
    %v306 = vsub.s32 0, %v305
    %v307 = vrot.slane %v296, %v306
    %v308 = vlaneseq
    %v309 = vshrl.u32 %v308, 7
    %v310 = vsub.s32 0, %v309
    %v311 = vrot.slane %v303, %v310
    %v314 = vmul.f32 %v307, %v277
    %v315 = vmul.f32 %v311, %v278
    %v318 = vcombine.high %v314, %v314
    %v320 = vunpack.c.l.s4 1966171168
    %v321 = vunpack.c.0.s8 %v320
    %v322 = vlaneseq
    %v323 = vshrl.u32 %v322, 7
    %v324 = vsub.s32 %v321, %v323
    %v325 = vrot.slane %v314, %v324
    %v327 = vunpack.c.l.s4 1966171168
    %v328 = vunpack.c.0.s8 %v327
    %v329 = vlaneseq
    %v330 = vshrl.u32 %v329, 7
    %v331 = vsub.s32 %v328, %v330
    %v332 = vrot.slane %v318, %v331
    %v333 = vcombine.high %v325, %v325
    %v334 = vcombine.high %v332, %v332
    %v336 = vunpack.c.l.s4 1966171168
    %v337 = vunpack.c.0.s8 %v336
    %v338 = vlaneseq
    %v339 = vshrl.u32 %v338, 7
    %v340 = vsub.s32 %v337, %v339
    %v341 = vrot.slane %v325, %v340
    %v343 = vunpack.c.l.s4 1966171168
    %v344 = vunpack.c.0.s8 %v343
    %v345 = vlaneseq
    %v346 = vshrl.u32 %v345, 7
    %v347 = vsub.s32 %v344, %v346
    %v348 = vrot.slane %v332, %v347
    %v350 = vunpack.c.l.s4 1966171168
    %v351 = vunpack.c.0.s8 %v350
    %v352 = vlaneseq
    %v353 = vshrl.u32 %v352, 7
    %v354 = vsub.s32 %v351, %v353
    %v355 = vrot.slane %v333, %v354
    %v357 = vunpack.c.l.s4 1966171168
    %v358 = vunpack.c.0.s8 %v357
    %v359 = vlaneseq
    %v360 = vshrl.u32 %v359, 7
    %v361 = vsub.s32 %v358, %v360
    %v362 = vrot.slane %v334, %v361
    %v363 = vcombine.high %v341, %v341
    %v364 = vcombine.high %v348, %v348
    %v365 = vcombine.high %v355, %v355
    %v366 = vcombine.high %v315, %v315
    %v368 = vunpack.c.l.s4 1966171168
    %v369 = vunpack.c.0.s8 %v368
    %v370 = vlaneseq
    %v371 = vshrl.u32 %v370, 7
    %v372 = vsub.s32 %v369, %v371
    %v373 = vrot.slane %v315, %v372
    %v375 = vunpack.c.l.s4 1966171168
    %v376 = vunpack.c.0.s8 %v375
    %v377 = vlaneseq
    %v378 = vshrl.u32 %v377, 7
    %v379 = vsub.s32 %v376, %v378
    %v380 = vrot.slane %v366, %v379
    %v381 = vcombine.high %v373, %v373
    %v382 = vcombine.high %v380, %v380
    %v384 = vunpack.c.l.s4 1966171168
    %v385 = vunpack.c.0.s8 %v384
    %v386 = vlaneseq
    %v387 = vshrl.u32 %v386, 7
    %v388 = vsub.s32 %v385, %v387
    %v389 = vrot.slane %v373, %v388
    %v391 = vunpack.c.l.s4 1966171168
    %v392 = vunpack.c.0.s8 %v391
    %v393 = vlaneseq
    %v394 = vshrl.u32 %v393, 7
    %v395 = vsub.s32 %v392, %v394
    %v396 = vrot.slane %v380, %v395
    %v398 = vunpack.c.l.s4 1966171168
    %v399 = vunpack.c.0.s8 %v398
    %v400 = vlaneseq
    %v401 = vshrl.u32 %v400, 7
    %v402 = vsub.s32 %v399, %v401
    %v403 = vrot.slane %v381, %v402
    %v405 = vunpack.c.l.s4 1966171168
    %v406 = vunpack.c.0.s8 %v405
    %v407 = vlaneseq
    %v408 = vshrl.u32 %v407, 7
    %v409 = vsub.s32 %v406, %v408
    %v410 = vrot.slane %v382, %v409
    %v411 = vcombine.high %v389, %v389
    %v412 = vcombine.high %v396, %v396
    %v413 = vcombine.high %v403, %v403
    %v414 = vcombine.low %v341, %v355
    %v415 = vcombine.low %v363, %v365
    %v416 = vcombine.low %v348, %v362
    %v417 = vcombine.low %v364, %v389
    %v419 = vunpack.c.l.s4 1966171168
    %v420 = vunpack.c.0.s8 %v419
    %v421 = vlaneseq
    %v422 = vshrl.u32 %v421, 7
    %v423 = vsub.s32 %v420, %v422
    %v424 = vrot.slane %v414, %v423
    %v426 = vunpack.c.l.s4 1966171168
    %v427 = vunpack.c.0.s8 %v426
    %v428 = vlaneseq
    %v429 = vshrl.u32 %v428, 7
    %v430 = vsub.s32 %v427, %v429
    %v431 = vrot.slane %v415, %v430
    %v433 = vunpack.c.l.s4 1966171168
    %v434 = vunpack.c.0.s8 %v433
    %v435 = vlaneseq
    %v436 = vshrl.u32 %v435, 7
    %v437 = vsub.s32 %v434, %v436
    %v438 = vrot.slane %v416, %v437
    %v440 = vunpack.c.l.s4 1966171168
    %v441 = vunpack.c.0.s8 %v440
    %v442 = vlaneseq
    %v443 = vshrl.u32 %v442, 7
    %v444 = vsub.s32 %v441, %v443
    %v445 = vrot.slane %v417, %v444
    %v446 = vcombine.low %v424, %v431
    %v447 = vcombine.low %v438, %v445
    %v449 = vunpack.c.l.s4 1966171168
    %v450 = vunpack.c.0.s8 %v449
    %v451 = vlaneseq
    %v452 = vshrl.u32 %v451, 7
    %v453 = vsub.s32 %v450, %v452
    %v454 = vrot.slane %v446, %v453
    %v456 = vunpack.c.l.s4 1966171168
    %v457 = vunpack.c.0.s8 %v456
    %v458 = vlaneseq
    %v459 = vshrl.u32 %v458, 7
    %v460 = vsub.s32 %v457, %v459
    %v461 = vrot.slane %v447, %v460
    %v462 = vcombine.low %v454, %v461
    %v463 = vcombine.low %v403, %v411
    %v464 = vcombine.low %v413, %v396
    %v465 = vcombine.low %v410, %v412
    %v467 = vunpack.c.l.s4 1966171168
    %v468 = vunpack.c.0.s8 %v467
    %v469 = vlaneseq
    %v470 = vshrl.u32 %v469, 7
    %v471 = vsub.s32 %v468, %v470
    %v472 = vrot.slane %v463, %v471
    %v474 = vunpack.c.l.s4 1966171168
    %v475 = vunpack.c.0.s8 %v474
    %v476 = vlaneseq
    %v477 = vshrl.u32 %v476, 7
    %v478 = vsub.s32 %v475, %v477
    %v479 = vrot.slane %v464, %v478
    %v481 = vunpack.c.l.s4 1966171168
    %v482 = vunpack.c.0.s8 %v481
    %v483 = vlaneseq
    %v484 = vshrl.u32 %v483, 7
    %v485 = vsub.s32 %v482, %v484
    %v486 = vrot.slane %v465, %v485
    %v487 = vcombine.low %v472, %v479
    %v489 = vunpack.c.l.s4 1966171168
    %v490 = vunpack.c.0.s8 %v489
    %v491 = vlaneseq
    %v492 = vshrl.u32 %v491, 7
    %v493 = vsub.s32 %v490, %v492
    %v494 = vrot.slane %v487, %v493
    %v496 = vunpack.c.l.s4 1966171168
    %v497 = vunpack.c.0.s8 %v496
    %v498 = vlaneseq
    %v499 = vshrl.u32 %v498, 7
    %v500 = vsub.s32 %v497, %v499
    %v501 = vrot.slane %v486, %v500
    %v502 = vcombine.low %v494, %v501
    %vm503 = vcmask 261120
    %v504 = vsel %vm503, %v462, 0
    %v506 = vsel %vm503, %v502, 0
    %508 = vmatprep.subr.mxu0 0.0
    %509 = vmatpush1.msra.mxu0 0.0
    %510 = vmatprep.subr.mxu0 0.0
    %511 = vmatpush1.msra.mxu0 0.0
    %512 = vmatprep.subr.mxu0 0.0
    %513 = vmatpush1.msra.mxu0 0.0
    %514 = vmatprep.subr.mxu0 0.0
    %515 = vmatpush1.msra.mxu0 0.0
    %516 = vmatprep.subr.mxu0 0.0
    %517 = vmatpush1.msra.mxu0 0.0
    %518 = vmatprep.subr.mxu0 0.0
    %519 = vmatpush1.msra.mxu0 0.0
    %520 = vmatprep.subr.mxu0 0.0
    %521 = vmatpush1.msra.mxu0 0.0
    %522 = vmatprep.subr.mxu0 0.0
    %523 = vmatpush1.msra.mxu0 0.0
    %524 = vmatprep.subr.mxu0 0.0
    %525 = vmatpush1.msra.mxu0 0.0
    %526 = vmatprep.subr.mxu0 0.0
    %527 = vmatpush1.msra.mxu0 0.0
    %528 = vmatprep.subr.mxu0 0.0
    %529 = vmatpush1.msra.mxu0 0.0
    %530 = vmatprep.subr.mxu0 0.0
    %531 = vmatpush1.msra.mxu0 0.0
    %532 = vmatprep.subr.mxu0 0.0
    %533 = vmatpush1.msra.mxu0 %v64
    %534 = vmatprep.subr.mxu0 0.0
    %535 = vmatpush1.msra.mxu0 %v63
    %536 = vmatprep.subr.mxu0 0.0
    %537 = vmatpush1.msra.mxu0 %v62
    %538 = vmatprep.subr.mxu0 0.0
    %539 = vmatpush1.msra.mxu0 %v61
    %540 = vmatprep.subr.mxu0 0.0
    %541 = vmatpush2.msra.mxu0 0.0
    %542 = vmatprep.subr.mxu0 0.0
    %543 = vmatpush2.msra.mxu0 0.0
    %544 = vmatprep.subr.mxu0 0.0
    %545 = vmatpush2.msra.mxu0 0.0
    %546 = vmatprep.subr.mxu0 0.0
    %547 = vmatpush2.msra.mxu0 0.0
    %548 = vmatprep.subr.mxu0 0.0
    %549 = vmatpush2.msra.mxu0 0.0
    %550 = vmatprep.subr.mxu0 0.0
    %551 = vmatpush2.msra.mxu0 0.0
    %552 = vmatprep.subr.mxu0 0.0
    %553 = vmatpush2.msra.mxu0 0.0
    %554 = vmatprep.subr.mxu0 0.0
    %555 = vmatpush2.msra.mxu0 0.0
    %556 = vmatprep.subr.mxu0 0.0
    %557 = vmatpush2.msra.mxu0 0.0
    %558 = vmatprep.subr.mxu0 0.0
    %559 = vmatpush2.msra.mxu0 0.0
    %560 = vmatprep.subr.mxu0 0.0
    %561 = vmatpush2.msra.mxu0 0.0
    %562 = vmatprep.subr.mxu0 0.0
    %563 = vmatpush2.msra.mxu0 0.0
    %564 = vmatprep.subr.mxu0 0.0
    %565 = vmatpush2.msra.mxu0 0.0
    %566 = vmatprep.subr.mxu0 0.0
    %567 = vmatpush2.msra.mxu0 0.0
    %568 = vmatprep.subr.mxu0 0.0
    %569 = vmatpush2.msra.mxu0 0.0
    %570 = vmatprep.subr.mxu0 0.0
    %571 = vmatpush2.msra.mxu0 0.0
    %572 = vmatprep.mubr.f32.mxu0 0.0
    %573 = vmatmul.mubr.f32.gmra.mxu0 %v504
    %v574 = vpop.f32.mrf.mxu0
    %v575 = vadd.f32 0.0, %v574
    %v576 = vpop.f32.mrf.mxu0
    %577 = vmatprep.mubr.f32.mxu0 0.0
    %578 = vmatmul.mubr.f32.gmra.mxu0 %v506
    %v579 = vpop.f32.mrf.mxu0
    %v580 = vadd.f32 0.0, %v579
    %v581 = vpop.f32.mrf.mxu0
    %582 = vdwg.mxu0
    %v585 = vcombine.high %v575, %v575
    %v587 = vunpack.c.l.s4 1966171168
    %v588 = vunpack.c.0.s8 %v587
    %v589 = vlaneseq
    %v590 = vshrl.u32 %v589, 7
    %v591 = vsub.s32 %v588, %v590
    %v592 = vrot.slane %v575, %v591
    %v594 = vunpack.c.l.s4 1966171168
    %v595 = vunpack.c.0.s8 %v594
    %v596 = vlaneseq
    %v597 = vshrl.u32 %v596, 7
    %v598 = vsub.s32 %v595, %v597
    %v599 = vrot.slane %v585, %v598
    %v600 = vcombine.high %v592, %v592
    %v601 = vcombine.high %v599, %v599
    %v603 = vunpack.c.l.s4 1966171168
    %v604 = vunpack.c.0.s8 %v603
    %v605 = vlaneseq
    %v606 = vshrl.u32 %v605, 7
    %v607 = vsub.s32 %v604, %v606
    %v608 = vrot.slane %v592, %v607
    %v610 = vunpack.c.l.s4 1966171168
    %v611 = vunpack.c.0.s8 %v610
    %v612 = vlaneseq
    %v613 = vshrl.u32 %v612, 7
    %v614 = vsub.s32 %v611, %v613
    %v615 = vrot.slane %v599, %v614
    %v617 = vunpack.c.l.s4 1966171168
    %v618 = vunpack.c.0.s8 %v617
    %v619 = vlaneseq
    %v620 = vshrl.u32 %v619, 7
    %v621 = vsub.s32 %v618, %v620
    %v622 = vrot.slane %v600, %v621
    %v624 = vunpack.c.l.s4 1966171168
    %v625 = vunpack.c.0.s8 %v624
    %v626 = vlaneseq
    %v627 = vshrl.u32 %v626, 7
    %v628 = vsub.s32 %v625, %v627
    %v629 = vrot.slane %v601, %v628
    %v630 = vcombine.high %v608, %v608
    %v631 = vcombine.high %v615, %v615
    %v632 = vcombine.high %v622, %v622
    %v633 = vcombine.high %v629, %v629
    %v634 = vcombine.high %v580, %v580
    %v636 = vunpack.c.l.s4 1966171168
    %v637 = vunpack.c.0.s8 %v636
    %v638 = vlaneseq
    %v639 = vshrl.u32 %v638, 7
    %v640 = vsub.s32 %v637, %v639
    %v641 = vrot.slane %v580, %v640
    %v643 = vunpack.c.l.s4 1966171168
    %v644 = vunpack.c.0.s8 %v643
    %v645 = vlaneseq
    %v646 = vshrl.u32 %v645, 7
    %v647 = vsub.s32 %v644, %v646
    %v648 = vrot.slane %v634, %v647
    %v649 = vcombine.high %v641, %v641
    %v650 = vcombine.high %v648, %v648
    %v652 = vunpack.c.l.s4 1966171168
    %v653 = vunpack.c.0.s8 %v652
    %v654 = vlaneseq
    %v655 = vshrl.u32 %v654, 7
    %v656 = vsub.s32 %v653, %v655
    %v657 = vrot.slane %v641, %v656
    %v659 = vunpack.c.l.s4 1966171168
    %v660 = vunpack.c.0.s8 %v659
    %v661 = vlaneseq
    %v662 = vshrl.u32 %v661, 7
    %v663 = vsub.s32 %v660, %v662
    %v664 = vrot.slane %v648, %v663
    %v666 = vunpack.c.l.s4 1966171168
    %v667 = vunpack.c.0.s8 %v666
    %v668 = vlaneseq
    %v669 = vshrl.u32 %v668, 7
    %v670 = vsub.s32 %v667, %v669
    %v671 = vrot.slane %v649, %v670
    %v673 = vunpack.c.l.s4 1966171168
    %v674 = vunpack.c.0.s8 %v673
    %v675 = vlaneseq
    %v676 = vshrl.u32 %v675, 7
    %v677 = vsub.s32 %v674, %v676
    %v678 = vrot.slane %v650, %v677
    %v679 = vcombine.high %v657, %v657
    %v680 = vcombine.high %v671, %v671
    %v695 = vld [vmem:[#allocation3] sm:$0x3]
    %v696 = vcombine.low %v608, %v622
    %v697 = vcombine.low %v630, %v632
    %v698 = vcombine.low %v615, %v629
    %v700 = vunpack.c.l.s4 1966171168
    %v701 = vunpack.c.0.s8 %v700
    %v702 = vlaneseq
    %v703 = vshrl.u32 %v702, 7
    %v704 = vsub.s32 %v701, %v703
    %v705 = vrot.slane %v696, %v704
    %v707 = vunpack.c.l.s4 1966171168
    %v708 = vunpack.c.0.s8 %v707
    %v709 = vlaneseq
    %v710 = vshrl.u32 %v709, 7
    %v711 = vsub.s32 %v708, %v710
    %v712 = vrot.slane %v697, %v711
    %v714 = vunpack.c.l.s4 1966171168
    %v715 = vunpack.c.0.s8 %v714
    %v716 = vlaneseq
    %v717 = vshrl.u32 %v716, 7
    %v718 = vsub.s32 %v715, %v717
    %v719 = vrot.slane %v698, %v718
    %v721 = vunpack.c.l.s4 1966171168
    %v722 = vunpack.c.0.s8 %v721
    %v723 = vlaneseq
    %v724 = vshrl.u32 %v723, 7
    %v725 = vsub.s32 %v722, %v724
    %v726 = vrot.slane %v631, %v725
    %v727 = vcombine.low %v705, %v712
    %v728 = vcombine.low %v719, %v726
    %v730 = vunpack.c.l.s4 1966171168
    %v731 = vunpack.c.0.s8 %v730
    %v732 = vlaneseq
    %v733 = vshrl.u32 %v732, 7
    %v734 = vsub.s32 %v731, %v733
    %v735 = vrot.slane %v727, %v734
    %v737 = vunpack.c.l.s4 1966171168
    %v738 = vunpack.c.0.s8 %v737
    %v739 = vlaneseq
    %v740 = vshrl.u32 %v739, 7
    %v741 = vsub.s32 %v738, %v740
    %v742 = vrot.slane %v728, %v741
    %v743 = vcombine.low %v735, %v742
    %v744 = vcombine.low %v633, %v657
    %v745 = vcombine.low %v671, %v679
    %v746 = vcombine.low %v680, %v664
    %v748 = vunpack.c.l.s4 1966171168
    %v749 = vunpack.c.0.s8 %v748
    %v750 = vlaneseq
    %v751 = vshrl.u32 %v750, 7
    %v752 = vsub.s32 %v749, %v751
    %v753 = vrot.slane %v744, %v752
    %v755 = vunpack.c.l.s4 1966171168
    %v756 = vunpack.c.0.s8 %v755
    %v757 = vlaneseq
    %v758 = vshrl.u32 %v757, 7
    %v759 = vsub.s32 %v756, %v758
    %v760 = vrot.slane %v745, %v759
    %v762 = vunpack.c.l.s4 1966171168
    %v763 = vunpack.c.0.s8 %v762
    %v764 = vlaneseq
    %v765 = vshrl.u32 %v764, 7
    %v766 = vsub.s32 %v763, %v765
    %v767 = vrot.slane %v746, %v766
    %v769 = vunpack.c.l.s4 1966171168
    %v770 = vunpack.c.0.s8 %v769
    %v771 = vlaneseq
    %v772 = vshrl.u32 %v771, 7
    %v773 = vsub.s32 %v770, %v772
    %v774 = vrot.slane %v678, %v773
    %v775 = vcombine.low %v753, %v760
    %v776 = vcombine.low %v767, %v774
    %v778 = vunpack.c.l.s4 1966171168
    %v779 = vunpack.c.0.s8 %v778
    %v780 = vlaneseq
    %v781 = vshrl.u32 %v780, 7
    %v782 = vsub.s32 %v779, %v781
    %v783 = vrot.slane %v775, %v782
    %v785 = vunpack.c.l.s4 1966171168
    %v786 = vunpack.c.0.s8 %v785
    %v787 = vlaneseq
    %v788 = vshrl.u32 %v787, 7
    %v789 = vsub.s32 %v786, %v788
    %v790 = vrot.slane %v776, %v789
    %v791 = vcombine.low %v783, %v790
    %vm794 = vcmask 30720
    %v795 = vsel %vm794, %v743, -inf
    %v796 = vrot.slane %v795, 4
    %v797 = vmax.f32 %v795, %v796
    %v798 = vrot.slane %v797, 2
    %v799 = vmax.f32 %v797, %v798
    %v800 = vrot.slane %v799, 1
    %v801 = vmax.f32 %v799, %v800
    %v802 = vsel %vm794, %v791, -inf
    %v803 = vrot.slane %v802, 4
    %v804 = vmax.f32 %v802, %v803
    %v805 = vrot.slane %v804, 2
    %v806 = vmax.f32 %v804, %v805
    %v807 = vrot.slane %v806, 1
    %v808 = vmax.f32 %v806, %v807
    %vm811 = vcmask 1041409
    %v812 = vsel %vm811, %v808, %v801
    %v814 = vmax.f32 %v695, %v812
    %v815 = vsub.f32 %v695, %v814
    %v816 = vmul.f32 %v815, 1.442695
    %v817 = vpow.pop %v816
    %v820 = vunpack.c.l.s4 1966171168
    %v821 = vunpack.c.0.s8 %v820
    %v822 = vlaneseq
    %v823 = vshrl.u32 %v822, 7
    %v824 = vsub.s32 %v821, %v823
    %v825 = vrot.slane %v814, %v824
    %v826 = vcombine.high %v825, %v825
    %v828 = vunpack.c.l.s4 1966171168
    %v829 = vunpack.c.0.s8 %v828
    %v830 = vlaneseq
    %v831 = vshrl.u32 %v830, 7
    %v832 = vsub.s32 %v829, %v831
    %v833 = vrot.slane %v825, %v832
    %v835 = vunpack.c.l.s4 1966171168
    %v836 = vunpack.c.0.s8 %v835
    %v837 = vlaneseq
    %v838 = vshrl.u32 %v837, 7
    %v839 = vsub.s32 %v836, %v838
    %v840 = vrot.slane %v826, %v839
    %v841 = vlaneseq
    %v842 = vshrl.u32 %v841, 7
    %v843 = vsub.s32 0, %v842
    %v844 = vrot.slane %v833, %v843
    %v845 = vlaneseq
    %v846 = vshrl.u32 %v845, 7
    %v847 = vsub.s32 0, %v846
    %v848 = vrot.slane %v840, %v847
    %v849 = vcombine.high %v844, %v844
    %v851 = vunpack.c.l.s4 1966171168
    %v852 = vunpack.c.0.s8 %v851
    %v853 = vlaneseq
    %v854 = vshrl.u32 %v853, 7
    %v855 = vsub.s32 %v852, %v854
    %v856 = vrot.slane %v844, %v855
    %v858 = vunpack.c.l.s4 1966171168
    %v859 = vunpack.c.0.s8 %v858
    %v860 = vlaneseq
    %v861 = vshrl.u32 %v860, 7
    %v862 = vsub.s32 %v859, %v861
    %v863 = vrot.slane %v849, %v862
    %v864 = vcombine.high %v856, %v856
    %v865 = vcombine.high %v863, %v863
    %v867 = vunpack.c.l.s4 1966171168
    %v868 = vunpack.c.0.s8 %v867
    %v869 = vlaneseq
    %v870 = vshrl.u32 %v869, 7
    %v871 = vsub.s32 %v868, %v870
    %v872 = vrot.slane %v856, %v871
    %v874 = vunpack.c.l.s4 1966171168
    %v875 = vunpack.c.0.s8 %v874
    %v876 = vlaneseq
    %v877 = vshrl.u32 %v876, 7
    %v878 = vsub.s32 %v875, %v877
    %v879 = vrot.slane %v863, %v878
    %v881 = vunpack.c.l.s4 1966171168
    %v882 = vunpack.c.0.s8 %v881
    %v883 = vlaneseq
    %v884 = vshrl.u32 %v883, 7
    %v885 = vsub.s32 %v882, %v884
    %v886 = vrot.slane %v864, %v885
    %v888 = vunpack.c.l.s4 1966171168
    %v889 = vunpack.c.0.s8 %v888
    %v890 = vlaneseq
    %v891 = vshrl.u32 %v890, 7
    %v892 = vsub.s32 %v889, %v891
    %v893 = vrot.slane %v865, %v892
    %v894 = vcombine.high %v872, %v872
    %v895 = vcombine.high %v879, %v879
    %v896 = vcombine.high %v886, %v886
    %v897 = vcombine.high %v848, %v848
    %v899 = vunpack.c.l.s4 1966171168
    %v900 = vunpack.c.0.s8 %v899
    %v901 = vlaneseq
    %v902 = vshrl.u32 %v901, 7
    %v903 = vsub.s32 %v900, %v902
    %v904 = vrot.slane %v848, %v903
    %v906 = vunpack.c.l.s4 1966171168
    %v907 = vunpack.c.0.s8 %v906
    %v908 = vlaneseq
    %v909 = vshrl.u32 %v908, 7
    %v910 = vsub.s32 %v907, %v909
    %v911 = vrot.slane %v897, %v910
    %v912 = vcombine.high %v904, %v904
    %v913 = vcombine.high %v911, %v911
    %v915 = vunpack.c.l.s4 1966171168
    %v916 = vunpack.c.0.s8 %v915
    %v917 = vlaneseq
    %v918 = vshrl.u32 %v917, 7
    %v919 = vsub.s32 %v916, %v918
    %v920 = vrot.slane %v904, %v919
    %v922 = vunpack.c.l.s4 1966171168
    %v923 = vunpack.c.0.s8 %v922
    %v924 = vlaneseq
    %v925 = vshrl.u32 %v924, 7
    %v926 = vsub.s32 %v923, %v925
    %v927 = vrot.slane %v911, %v926
    %v929 = vunpack.c.l.s4 1966171168
    %v930 = vunpack.c.0.s8 %v929
    %v931 = vlaneseq
    %v932 = vshrl.u32 %v931, 7
    %v933 = vsub.s32 %v930, %v932
    %v934 = vrot.slane %v912, %v933
    %v936 = vunpack.c.l.s4 1966171168
    %v937 = vunpack.c.0.s8 %v936
    %v938 = vlaneseq
    %v939 = vshrl.u32 %v938, 7
    %v940 = vsub.s32 %v937, %v939
    %v941 = vrot.slane %v913, %v940
    %v942 = vcombine.high %v920, %v920
    %v943 = vcombine.high %v927, %v927
    %v944 = vcombine.high %v934, %v934
    %v959 = vsub.f32 %v608, %v872
    %v960 = vsub.f32 %v622, %v886
    %v961 = vsub.f32 %v630, %v894
    %v962 = vsub.f32 %v632, %v896
    %v963 = vsub.f32 %v615, %v879
    %v964 = vsub.f32 %v629, %v893
    %v965 = vsub.f32 %v631, %v895
    %v966 = vsub.f32 %v633, %v920
    %v967 = vsub.f32 %v657, %v934
    %v968 = vsub.f32 %v671, %v942
    %v969 = vsub.f32 %v679, %v944
    %v970 = vsub.f32 %v680, %v927
    %v971 = vsub.f32 %v664, %v941
    %v972 = vsub.f32 %v678, %v943
    %v973 = vmul.f32 %v959, 1.442695
    %v974 = vpow.pop %v973
    %v975 = vmul.f32 %v960, 1.442695
    %v976 = vpow.pop %v975
    %v977 = vmul.f32 %v961, 1.442695
    %v978 = vpow.pop %v977
    %v979 = vmul.f32 %v962, 1.442695
    %v980 = vpow.pop %v979
    %v981 = vmul.f32 %v963, 1.442695
    %v982 = vpow.pop %v981
    %v983 = vmul.f32 %v964, 1.442695
    %v984 = vpow.pop %v983
    %v985 = vmul.f32 %v965, 1.442695
    %v986 = vpow.pop %v985
    %v987 = vmul.f32 %v966, 1.442695
    %v988 = vpow.pop %v987
    %v989 = vmul.f32 %v967, 1.442695
    %v990 = vpow.pop %v989
    %v991 = vmul.f32 %v968, 1.442695
    %v992 = vpow.pop %v991
    %v993 = vmul.f32 %v969, 1.442695
    %v994 = vpow.pop %v993
    %v995 = vmul.f32 %v970, 1.442695
    %v996 = vpow.pop %v995
    %v997 = vmul.f32 %v971, 1.442695
    %v998 = vpow.pop %v997
    %v999 = vmul.f32 %v972, 1.442695
    %v1000 = vpow.pop %v999
    %v1001 = vld [vmem:[#allocation4] sm:$0x3]
    %v1002 = vmul.f32 %v817, %v1001
    %v1017 = vcombine.low %v974, %v976
    %v1018 = vcombine.low %v978, %v980
    %v1019 = vcombine.low %v982, %v984
    %v1021 = vunpack.c.l.s4 1966171168
    %v1022 = vunpack.c.0.s8 %v1021
    %v1023 = vlaneseq
    %v1024 = vshrl.u32 %v1023, 7
    %v1025 = vsub.s32 %v1022, %v1024
    %v1026 = vrot.slane %v1017, %v1025
    %v1028 = vunpack.c.l.s4 1966171168
    %v1029 = vunpack.c.0.s8 %v1028
    %v1030 = vlaneseq
    %v1031 = vshrl.u32 %v1030, 7
    %v1032 = vsub.s32 %v1029, %v1031
    %v1033 = vrot.slane %v1018, %v1032
    %v1035 = vunpack.c.l.s4 1966171168
    %v1036 = vunpack.c.0.s8 %v1035
    %v1037 = vlaneseq
    %v1038 = vshrl.u32 %v1037, 7
    %v1039 = vsub.s32 %v1036, %v1038
    %v1040 = vrot.slane %v1019, %v1039
    %v1042 = vunpack.c.l.s4 1966171168
    %v1043 = vunpack.c.0.s8 %v1042
    %v1044 = vlaneseq
    %v1045 = vshrl.u32 %v1044, 7
    %v1046 = vsub.s32 %v1043, %v1045
    %v1047 = vrot.slane %v986, %v1046
    %v1048 = vcombine.low %v1026, %v1033
    %v1049 = vcombine.low %v1040, %v1047
    %v1051 = vunpack.c.l.s4 1966171168
    %v1052 = vunpack.c.0.s8 %v1051
    %v1053 = vlaneseq
    %v1054 = vshrl.u32 %v1053, 7
    %v1055 = vsub.s32 %v1052, %v1054
    %v1056 = vrot.slane %v1048, %v1055
    %v1058 = vunpack.c.l.s4 1966171168
    %v1059 = vunpack.c.0.s8 %v1058
    %v1060 = vlaneseq
    %v1061 = vshrl.u32 %v1060, 7
    %v1062 = vsub.s32 %v1059, %v1061
    %v1063 = vrot.slane %v1049, %v1062
    %v1064 = vcombine.low %v1056, %v1063
    %v1065 = vcombine.low %v988, %v990
    %v1066 = vcombine.low %v992, %v994
    %v1067 = vcombine.low %v996, %v998
    %v1069 = vunpack.c.l.s4 1966171168
    %v1070 = vunpack.c.0.s8 %v1069
    %v1071 = vlaneseq
    %v1072 = vshrl.u32 %v1071, 7
    %v1073 = vsub.s32 %v1070, %v1072
    %v1074 = vrot.slane %v1065, %v1073
    %v1076 = vunpack.c.l.s4 1966171168
    %v1077 = vunpack.c.0.s8 %v1076
    %v1078 = vlaneseq
    %v1079 = vshrl.u32 %v1078, 7
    %v1080 = vsub.s32 %v1077, %v1079
    %v1081 = vrot.slane %v1066, %v1080
    %v1083 = vunpack.c.l.s4 1966171168
    %v1084 = vunpack.c.0.s8 %v1083
    %v1085 = vlaneseq
    %v1086 = vshrl.u32 %v1085, 7
    %v1087 = vsub.s32 %v1084, %v1086
    %v1088 = vrot.slane %v1067, %v1087
    %v1090 = vunpack.c.l.s4 1966171168
    %v1091 = vunpack.c.0.s8 %v1090
    %v1092 = vlaneseq
    %v1093 = vshrl.u32 %v1092, 7
    %v1094 = vsub.s32 %v1091, %v1093
    %v1095 = vrot.slane %v1000, %v1094
    %v1096 = vcombine.low %v1074, %v1081
    %v1097 = vcombine.low %v1088, %v1095
    %v1099 = vunpack.c.l.s4 1966171168
    %v1100 = vunpack.c.0.s8 %v1099
    %v1101 = vlaneseq
    %v1102 = vshrl.u32 %v1101, 7
    %v1103 = vsub.s32 %v1100, %v1102
    %v1104 = vrot.slane %v1096, %v1103
    %v1106 = vunpack.c.l.s4 1966171168
    %v1107 = vunpack.c.0.s8 %v1106
    %v1108 = vlaneseq
    %v1109 = vshrl.u32 %v1108, 7
    %v1110 = vsub.s32 %v1107, %v1109
    %v1111 = vrot.slane %v1097, %v1110
    %v1112 = vcombine.low %v1104, %v1111
    %v1115 = vsel %vm794, %v1064, 0.0
    %v1116 = vrot.slane %v1115, 4
    %v1117 = vadd.f32 %v1115, %v1116
    %v1118 = vrot.slane %v1117, 2
    %v1119 = vadd.f32 %v1117, %v1118
    %v1120 = vrot.slane %v1119, 1
    %v1121 = vadd.f32 %v1119, %v1120
    %v1122 = vsel %vm794, %v1112, 0.0
    %v1123 = vrot.slane %v1122, 4
    %v1124 = vadd.f32 %v1122, %v1123
    %v1125 = vrot.slane %v1124, 2
    %v1126 = vadd.f32 %v1124, %v1125
    %v1127 = vrot.slane %v1126, 1
    %v1128 = vadd.f32 %v1126, %v1127
    %v1131 = vsel %vm811, %v1128, %v1121
    %v1133 = vadd.f32 %v1002, %v1131
    %vm1134 = vcmask 25600
    %1135 = vst.msk [vmem:[#allocation4] sm:$0x3] %vm1134, %v1133
    %v1136 = vcombine.low %v986, %v988
    %v1138 = vunpack.c.l.s4 1966171168
    %v1139 = vunpack.c.0.s8 %v1138
    %v1140 = vlaneseq
    %v1141 = vshrl.u32 %v1140, 7
    %v1142 = vsub.s32 %v1139, %v1141
    %v1143 = vrot.slane %v1136, %v1142
    %v1144 = vcombine.low %v1040, %v1143
    %v1146 = vunpack.c.l.s4 1966171168
    %v1147 = vunpack.c.0.s8 %v1146
    %v1148 = vlaneseq
    %v1149 = vshrl.u32 %v1148, 7
    %v1150 = vsub.s32 %v1147, %v1149
    %v1151 = vrot.slane %v1144, %v1150
    %v1152 = vcombine.low %v1056, %v1151
    %v1153 = vcombine.low %v990, %v992
    %v1154 = vcombine.low %v994, %v996
    %v1155 = vcombine.low %v998, %v1000
    %v1157 = vunpack.c.l.s4 1966171168
    %v1158 = vunpack.c.0.s8 %v1157
    %v1159 = vlaneseq
    %v1160 = vshrl.u32 %v1159, 7
    %v1161 = vsub.s32 %v1158, %v1160
    %v1162 = vrot.slane %v1153, %v1161
    %v1164 = vunpack.c.l.s4 1966171168
    %v1165 = vunpack.c.0.s8 %v1164
    %v1166 = vlaneseq
    %v1167 = vshrl.u32 %v1166, 7
    %v1168 = vsub.s32 %v1165, %v1167
    %v1169 = vrot.slane %v1154, %v1168
    %v1171 = vunpack.c.l.s4 1966171168
    %v1172 = vunpack.c.0.s8 %v1171
    %v1173 = vlaneseq
    %v1174 = vshrl.u32 %v1173, 7
    %v1175 = vsub.s32 %v1172, %v1174
    %v1176 = vrot.slane %v1155, %v1175
    %v1177 = vcombine.low %v1162, %v1169
    %v1179 = vunpack.c.l.s4 1966171168
    %v1180 = vunpack.c.0.s8 %v1179
    %v1181 = vlaneseq
    %v1182 = vshrl.u32 %v1181, 7
    %v1183 = vsub.s32 %v1180, %v1182
    %v1184 = vrot.slane %v1177, %v1183
    %v1186 = vunpack.c.l.s4 1966171168
    %v1187 = vunpack.c.0.s8 %v1186
    %v1188 = vlaneseq
    %v1189 = vshrl.u32 %v1188, 7
    %v1190 = vsub.s32 %v1187, %v1189
    %v1191 = vrot.slane %v1176, %v1190
    %v1192 = vcombine.low %v1184, %v1191
    %vm1193 = vcmask 31744
    %v1194 = vsel %vm1193, %v1152, 0
    %v1196 = vsel %vm1193, %v1192, 0
    %vm1198 = vcmask 1043456
    %v1200 = vsel %vm1198, %v65, 0
    %1202 = vmatprep.subr.mxu0 0.0
    %1203 = vmatpush1.msra.mxu0 0.0
    %1204 = vmatprep.subr.mxu0 0.0
    %1205 = vmatpush1.msra.mxu0 0.0
    %1206 = vmatprep.subr.mxu0 0.0
    %1207 = vmatpush1.msra.mxu0 0.0
    %1208 = vmatprep.subr.mxu0 0.0
    %1209 = vmatpush1.msra.mxu0 0.0
    %1210 = vmatprep.subr.mxu0 0.0
    %1211 = vmatpush1.msra.mxu0 0.0
    %1212 = vmatprep.subr.mxu0 0.0
    %1213 = vmatpush1.msra.mxu0 0.0
    %1214 = vmatprep.subr.mxu0 0.0
    %1215 = vmatpush1.msra.mxu0 0.0
    %1216 = vmatprep.subr.mxu0 0.0
    %1217 = vmatpush1.msra.mxu0 0.0
    %1218 = vmatprep.subr.mxu0 0.0
    %1219 = vmatpush1.msra.mxu0 0.0
    %1220 = vmatprep.subr.mxu0 0.0
    %1221 = vmatpush1.msra.mxu0 0.0
    %1222 = vmatprep.subr.mxu0 0.0
    %1223 = vmatpush1.msra.mxu0 0.0
    %1224 = vmatprep.subr.mxu0 0.0
    %1225 = vmatpush1.msra.mxu0 0.0
    %1226 = vmatprep.subr.mxu0 0.0
    %1227 = vmatpush1.msra.mxu0 0.0
    %1228 = vmatprep.subr.mxu0 0.0
    %1229 = vmatpush1.msra.mxu0 0.0
    %1230 = vmatprep.subr.mxu0 0.0
    %1231 = vmatpush1.msra.mxu0 0.0
    %1232 = vmatprep.subr.mxu0 0.0
    %1233 = vmatpush1.msra.mxu0 %v1200
    %1234 = vmatprep.subr.mxu0 0.0
    %1235 = vmatpush2.msra.mxu0 0.0
    %1236 = vmatprep.subr.mxu0 0.0
    %1237 = vmatpush2.msra.mxu0 0.0
    %1238 = vmatprep.subr.mxu0 0.0
    %1239 = vmatpush2.msra.mxu0 0.0
    %1240 = vmatprep.subr.mxu0 0.0
    %1241 = vmatpush2.msra.mxu0 0.0
    %1242 = vmatprep.subr.mxu0 0.0
    %1243 = vmatpush2.msra.mxu0 0.0
    %1244 = vmatprep.subr.mxu0 0.0
    %1245 = vmatpush2.msra.mxu0 0.0
    %1246 = vmatprep.subr.mxu0 0.0
    %1247 = vmatpush2.msra.mxu0 0.0
    %1248 = vmatprep.subr.mxu0 0.0
    %1249 = vmatpush2.msra.mxu0 0.0
    %1250 = vmatprep.subr.mxu0 0.0
    %1251 = vmatpush2.msra.mxu0 0.0
    %1252 = vmatprep.subr.mxu0 0.0
    %1253 = vmatpush2.msra.mxu0 0.0
    %1254 = vmatprep.subr.mxu0 0.0
    %1255 = vmatpush2.msra.mxu0 0.0
    %1256 = vmatprep.subr.mxu0 0.0
    %1257 = vmatpush2.msra.mxu0 0.0
    %1258 = vmatprep.subr.mxu0 0.0
    %1259 = vmatpush2.msra.mxu0 0.0
    %1260 = vmatprep.subr.mxu0 0.0
    %1261 = vmatpush2.msra.mxu0 0.0
    %1262 = vmatprep.subr.mxu0 0.0
    %1263 = vmatpush2.msra.mxu0 0.0
    %1264 = vmatprep.subr.mxu0 0.0
    %1265 = vmatpush2.msra.mxu0 0.0
    %1266 = vmatprep.mubr.f32.mxu0 0.0
    %1267 = vmatmul.mubr.f32.gmra.mxu0 %v1194
    %v1268 = vpop.f32.mrf.mxu0
    %v1269 = vadd.f32 0.0, %v1268
    %v1270 = vpop.f32.mrf.mxu0
    %1271 = vmatprep.mubr.f32.mxu0 0.0
    %1272 = vmatmul.mubr.f32.gmra.mxu0 %v1196
    %v1273 = vpop.f32.mrf.mxu0
    %v1274 = vadd.f32 0.0, %v1273
    %v1275 = vpop.f32.mrf.mxu0
    %1276 = vdwg.mxu0
    %v1279 = vcombine.high %v1269, %v1269
    %v1281 = vunpack.c.l.s4 1966171168
    %v1282 = vunpack.c.0.s8 %v1281
    %v1283 = vlaneseq
    %v1284 = vshrl.u32 %v1283, 7
    %v1285 = vsub.s32 %v1282, %v1284
    %v1286 = vrot.slane %v1269, %v1285
    %v1288 = vunpack.c.l.s4 1966171168
    %v1289 = vunpack.c.0.s8 %v1288
    %v1290 = vlaneseq
    %v1291 = vshrl.u32 %v1290, 7
    %v1292 = vsub.s32 %v1289, %v1291
    %v1293 = vrot.slane %v1279, %v1292
    %v1294 = vcombine.high %v1286, %v1286
    %v1295 = vcombine.high %v1293, %v1293
    %v1297 = vunpack.c.l.s4 1966171168
    %v1298 = vunpack.c.0.s8 %v1297
    %v1299 = vlaneseq
    %v1300 = vshrl.u32 %v1299, 7
    %v1301 = vsub.s32 %v1298, %v1300
    %v1302 = vrot.slane %v1286, %v1301
    %v1304 = vunpack.c.l.s4 1966171168
    %v1305 = vunpack.c.0.s8 %v1304
    %v1306 = vlaneseq
    %v1307 = vshrl.u32 %v1306, 7
    %v1308 = vsub.s32 %v1305, %v1307
    %v1309 = vrot.slane %v1293, %v1308
    %v1311 = vunpack.c.l.s4 1966171168
    %v1312 = vunpack.c.0.s8 %v1311
    %v1313 = vlaneseq
    %v1314 = vshrl.u32 %v1313, 7
    %v1315 = vsub.s32 %v1312, %v1314
    %v1316 = vrot.slane %v1294, %v1315
    %v1318 = vunpack.c.l.s4 1966171168
    %v1319 = vunpack.c.0.s8 %v1318
    %v1320 = vlaneseq
    %v1321 = vshrl.u32 %v1320, 7
    %v1322 = vsub.s32 %v1319, %v1321
    %v1323 = vrot.slane %v1295, %v1322
    %v1324 = vcombine.high %v1302, %v1302
    %v1325 = vcombine.high %v1309, %v1309
    %v1326 = vcombine.high %v1316, %v1316
    %v1327 = vcombine.high %v1323, %v1323
    %v1328 = vcombine.high %v1274, %v1274
    %v1330 = vunpack.c.l.s4 1966171168
    %v1331 = vunpack.c.0.s8 %v1330
    %v1332 = vlaneseq
    %v1333 = vshrl.u32 %v1332, 7
    %v1334 = vsub.s32 %v1331, %v1333
    %v1335 = vrot.slane %v1274, %v1334
    %v1337 = vunpack.c.l.s4 1966171168
    %v1338 = vunpack.c.0.s8 %v1337
    %v1339 = vlaneseq
    %v1340 = vshrl.u32 %v1339, 7
    %v1341 = vsub.s32 %v1338, %v1340
    %v1342 = vrot.slane %v1328, %v1341
    %v1343 = vcombine.high %v1335, %v1335
    %v1344 = vcombine.high %v1342, %v1342
    %v1346 = vunpack.c.l.s4 1966171168
    %v1347 = vunpack.c.0.s8 %v1346
    %v1348 = vlaneseq
    %v1349 = vshrl.u32 %v1348, 7
    %v1350 = vsub.s32 %v1347, %v1349
    %v1351 = vrot.slane %v1335, %v1350
    %v1353 = vunpack.c.l.s4 1966171168
    %v1354 = vunpack.c.0.s8 %v1353
    %v1355 = vlaneseq
    %v1356 = vshrl.u32 %v1355, 7
    %v1357 = vsub.s32 %v1354, %v1356
    %v1358 = vrot.slane %v1342, %v1357
    %v1360 = vunpack.c.l.s4 1966171168
    %v1361 = vunpack.c.0.s8 %v1360
    %v1362 = vlaneseq
    %v1363 = vshrl.u32 %v1362, 7
    %v1364 = vsub.s32 %v1361, %v1363
    %v1365 = vrot.slane %v1343, %v1364
    %v1367 = vunpack.c.l.s4 1966171168
    %v1368 = vunpack.c.0.s8 %v1367
    %v1369 = vlaneseq
    %v1370 = vshrl.u32 %v1369, 7
    %v1371 = vsub.s32 %v1368, %v1370
    %v1372 = vrot.slane %v1344, %v1371
    %v1373 = vcombine.high %v1351, %v1351
    %v1374 = vcombine.high %v1365, %v1365
    %v1390 = vsel %vm1193, %v817, 0
    %1392 = vmatprep.subr.mxu0 0.0
    %1393 = vmatpush1.msra.mxu0 0.0
    %1394 = vmatprep.subr.mxu0 0.0
    %1395 = vmatpush1.msra.mxu0 0.0
    %1396 = vmatprep.subr.mxu0 0.0
    %1397 = vmatpush1.msra.mxu0 0.0
    %1398 = vmatprep.subr.mxu0 0.0
    %1399 = vmatpush1.msra.mxu0 0.0
    %1400 = vmatprep.subr.mxu0 0.0
    %1401 = vmatpush1.msra.mxu0 0.0
    %1402 = vmatprep.subr.mxu0 0.0
    %1403 = vmatpush1.msra.mxu0 0.0
    %1404 = vmatprep.subr.mxu0 0.0
    %1405 = vmatpush1.msra.mxu0 0.0
    %1406 = vmatprep.subr.mxu0 0.0
    %1407 = vmatpush1.msra.mxu0 0.0
    %1408 = vmatprep.subr.mxu0 0.0
    %1409 = vmatpush1.msra.mxu0 0.0
    %1410 = vmatprep.subr.mxu0 0.0
    %1411 = vmatpush1.msra.mxu0 0.0
    %1412 = vmatprep.subr.mxu0 0.0
    %1413 = vmatpush1.msra.mxu0 0.0
    %1414 = vmatprep.subr.mxu0 0.0
    %1415 = vmatpush1.msra.mxu0 0.0
    %1416 = vmatprep.subr.mxu0 0.0
    %1417 = vmatpush1.msra.mxu0 0.0
    %1418 = vmatprep.subr.mxu0 0.0
    %1419 = vmatpush1.msra.mxu0 0.0
    %1420 = vmatprep.subr.mxu0 0.0
    %1421 = vmatpush1.msra.mxu0 0.0
    %1422 = vmatprep.subr.mxu0 0.0
    %1423 = vmatpush1.msra.mxu0 %v1200
    %1424 = vmatprep.subr.mxu0 0.0
    %1425 = vmatpush2.msra.mxu0 0.0
    %1426 = vmatprep.subr.mxu0 0.0
    %1427 = vmatpush2.msra.mxu0 0.0
    %1428 = vmatprep.subr.mxu0 0.0
    %1429 = vmatpush2.msra.mxu0 0.0
    %1430 = vmatprep.subr.mxu0 0.0
    %1431 = vmatpush2.msra.mxu0 0.0
    %1432 = vmatprep.subr.mxu0 0.0
    %1433 = vmatpush2.msra.mxu0 0.0
    %1434 = vmatprep.subr.mxu0 0.0
    %1435 = vmatpush2.msra.mxu0 0.0
    %1436 = vmatprep.subr.mxu0 0.0
    %1437 = vmatpush2.msra.mxu0 0.0
    %1438 = vmatprep.subr.mxu0 0.0
    %1439 = vmatpush2.msra.mxu0 0.0
    %1440 = vmatprep.subr.mxu0 0.0
    %1441 = vmatpush2.msra.mxu0 0.0
    %1442 = vmatprep.subr.mxu0 0.0
    %1443 = vmatpush2.msra.mxu0 0.0
    %1444 = vmatprep.subr.mxu0 0.0
    %1445 = vmatpush2.msra.mxu0 0.0
    %1446 = vmatprep.subr.mxu0 0.0
    %1447 = vmatpush2.msra.mxu0 0.0
    %1448 = vmatprep.subr.mxu0 0.0
    %1449 = vmatpush2.msra.mxu0 0.0
    %1450 = vmatprep.subr.mxu0 0.0
    %1451 = vmatpush2.msra.mxu0 0.0
    %1452 = vmatprep.subr.mxu0 0.0
    %1453 = vmatpush2.msra.mxu0 0.0
    %1454 = vmatprep.subr.mxu0 0.0
    %1455 = vmatpush2.msra.mxu0 0.0
    %1456 = vmatprep.mubr.f32.mxu0 0.0
    %1457 = vmatmul.mubr.f32.gmra.mxu0 %v1390
    %v1458 = vpop.f32.mrf.mxu0
    %v1459 = vadd.f32 0.0, %v1458
    %v1460 = vpop.f32.mrf.mxu0
    %1461 = vdwg.mxu0
    %v1462 = vld [vmem:[#allocation5] sm:$0x3]
    %v1463 = vmul.f32 %v1459, %v1462
    %v1466 = vcombine.high %v279, %v279
    %v1468 = vunpack.c.l.s4 1966171168
    %v1469 = vunpack.c.0.s8 %v1468
    %v1470 = vlaneseq
    %v1471 = vshrl.u32 %v1470, 7
    %v1472 = vsub.s32 %v1469, %v1471
    %v1473 = vrot.slane %v279, %v1472
    %v1475 = vunpack.c.l.s4 1966171168
    %v1476 = vunpack.c.0.s8 %v1475
    %v1477 = vlaneseq
    %v1478 = vshrl.u32 %v1477, 7
    %v1479 = vsub.s32 %v1476, %v1478
    %v1480 = vrot.slane %v1466, %v1479
    %v1481 = vcombine.high %v1473, %v1473
    %v1482 = vcombine.high %v1480, %v1480
    %v1484 = vunpack.c.l.s4 1966171168
    %v1485 = vunpack.c.0.s8 %v1484
    %v1486 = vlaneseq
    %v1487 = vshrl.u32 %v1486, 7
    %v1488 = vsub.s32 %v1485, %v1487
    %v1489 = vrot.slane %v1473, %v1488
    %v1491 = vunpack.c.l.s4 1966171168
    %v1492 = vunpack.c.0.s8 %v1491
    %v1493 = vlaneseq
    %v1494 = vshrl.u32 %v1493, 7
    %v1495 = vsub.s32 %v1492, %v1494
    %v1496 = vrot.slane %v1480, %v1495
    %v1498 = vunpack.c.l.s4 1966171168
    %v1499 = vunpack.c.0.s8 %v1498
    %v1500 = vlaneseq
    %v1501 = vshrl.u32 %v1500, 7
    %v1502 = vsub.s32 %v1499, %v1501
    %v1503 = vrot.slane %v1481, %v1502
    %v1505 = vunpack.c.l.s4 1966171168
    %v1506 = vunpack.c.0.s8 %v1505
    %v1507 = vlaneseq
    %v1508 = vshrl.u32 %v1507, 7
    %v1509 = vsub.s32 %v1506, %v1508
    %v1510 = vrot.slane %v1482, %v1509
    %v1511 = vcombine.high %v1489, %v1489
    %v1512 = vcombine.high %v1496, %v1496
    %v1513 = vcombine.high %v1503, %v1503
    %v1514 = vcombine.high %v280, %v280
    %v1516 = vunpack.c.l.s4 1966171168
    %v1517 = vunpack.c.0.s8 %v1516
    %v1518 = vlaneseq
    %v1519 = vshrl.u32 %v1518, 7
    %v1520 = vsub.s32 %v1517, %v1519
    %v1521 = vrot.slane %v280, %v1520
    %v1523 = vunpack.c.l.s4 1966171168
    %v1524 = vunpack.c.0.s8 %v1523
    %v1525 = vlaneseq
    %v1526 = vshrl.u32 %v1525, 7
    %v1527 = vsub.s32 %v1524, %v1526
    %v1528 = vrot.slane %v1514, %v1527
    %v1529 = vcombine.high %v1521, %v1521
    %v1530 = vcombine.high %v1528, %v1528
    %v1532 = vunpack.c.l.s4 1966171168
    %v1533 = vunpack.c.0.s8 %v1532
    %v1534 = vlaneseq
    %v1535 = vshrl.u32 %v1534, 7
    %v1536 = vsub.s32 %v1533, %v1535
    %v1537 = vrot.slane %v1521, %v1536
    %v1539 = vunpack.c.l.s4 1966171168
    %v1540 = vunpack.c.0.s8 %v1539
    %v1541 = vlaneseq
    %v1542 = vshrl.u32 %v1541, 7
    %v1543 = vsub.s32 %v1540, %v1542
    %v1544 = vrot.slane %v1528, %v1543
    %v1546 = vunpack.c.l.s4 1966171168
    %v1547 = vunpack.c.0.s8 %v1546
    %v1548 = vlaneseq
    %v1549 = vshrl.u32 %v1548, 7
    %v1550 = vsub.s32 %v1547, %v1549
    %v1551 = vrot.slane %v1529, %v1550
    %v1553 = vunpack.c.l.s4 1966171168
    %v1554 = vunpack.c.0.s8 %v1553
    %v1555 = vlaneseq
    %v1556 = vshrl.u32 %v1555, 7
    %v1557 = vsub.s32 %v1554, %v1556
    %v1558 = vrot.slane %v1530, %v1557
    %v1559 = vcombine.high %v1537, %v1537
    %v1560 = vcombine.high %v1544, %v1544
    %v1561 = vcombine.high %v1551, %v1551
    %v1576 = vmul.f32 %v1302, %v1489
    %v1577 = vmul.f32 %v1316, %v1503
    %v1578 = vmul.f32 %v1324, %v1511
    %v1579 = vmul.f32 %v1326, %v1513
    %v1580 = vmul.f32 %v1309, %v1496
    %v1581 = vmul.f32 %v1323, %v1510
    %v1582 = vmul.f32 %v1325, %v1512
    %v1583 = vmul.f32 %v1327, %v1537
    %v1584 = vmul.f32 %v1351, %v1551
    %v1585 = vmul.f32 %v1365, %v1559
    %v1586 = vmul.f32 %v1373, %v1561
    %v1587 = vmul.f32 %v1374, %v1544
    %v1588 = vmul.f32 %v1358, %v1558
    %v1589 = vmul.f32 %v1372, %v1560
    %v1604 = vcombine.low %v1576, %v1577
    %v1605 = vcombine.low %v1578, %v1579
    %v1606 = vcombine.low %v1580, %v1581
    %v1608 = vunpack.c.l.s4 1966171168
    %v1609 = vunpack.c.0.s8 %v1608
    %v1610 = vlaneseq
    %v1611 = vshrl.u32 %v1610, 7
    %v1612 = vsub.s32 %v1609, %v1611
    %v1613 = vrot.slane %v1604, %v1612
    %v1615 = vunpack.c.l.s4 1966171168
    %v1616 = vunpack.c.0.s8 %v1615
    %v1617 = vlaneseq
    %v1618 = vshrl.u32 %v1617, 7
    %v1619 = vsub.s32 %v1616, %v1618
    %v1620 = vrot.slane %v1605, %v1619
    %v1622 = vunpack.c.l.s4 1966171168
    %v1623 = vunpack.c.0.s8 %v1622
    %v1624 = vlaneseq
    %v1625 = vshrl.u32 %v1624, 7
    %v1626 = vsub.s32 %v1623, %v1625
    %v1627 = vrot.slane %v1606, %v1626
    %v1629 = vunpack.c.l.s4 1966171168
    %v1630 = vunpack.c.0.s8 %v1629
    %v1631 = vlaneseq
    %v1632 = vshrl.u32 %v1631, 7
    %v1633 = vsub.s32 %v1630, %v1632
    %v1634 = vrot.slane %v1582, %v1633
    %v1635 = vcombine.low %v1613, %v1620
    %v1636 = vcombine.low %v1627, %v1634
    %v1638 = vunpack.c.l.s4 1966171168
    %v1639 = vunpack.c.0.s8 %v1638
    %v1640 = vlaneseq
    %v1641 = vshrl.u32 %v1640, 7
    %v1642 = vsub.s32 %v1639, %v1641
    %v1643 = vrot.slane %v1635, %v1642
    %v1645 = vunpack.c.l.s4 1966171168
    %v1646 = vunpack.c.0.s8 %v1645
    %v1647 = vlaneseq
    %v1648 = vshrl.u32 %v1647, 7
    %v1649 = vsub.s32 %v1646, %v1648
    %v1650 = vrot.slane %v1636, %v1649
    %v1651 = vcombine.low %v1643, %v1650
    %v1652 = vcombine.low %v1583, %v1584
    %v1653 = vcombine.low %v1585, %v1586
    %v1654 = vcombine.low %v1587, %v1588
    %v1656 = vunpack.c.l.s4 1966171168
    %v1657 = vunpack.c.0.s8 %v1656
    %v1658 = vlaneseq
    %v1659 = vshrl.u32 %v1658, 7
    %v1660 = vsub.s32 %v1657, %v1659
    %v1661 = vrot.slane %v1652, %v1660
    %v1663 = vunpack.c.l.s4 1966171168
    %v1664 = vunpack.c.0.s8 %v1663
    %v1665 = vlaneseq
    %v1666 = vshrl.u32 %v1665, 7
    %v1667 = vsub.s32 %v1664, %v1666
    %v1668 = vrot.slane %v1653, %v1667
    %v1670 = vunpack.c.l.s4 1966171168
    %v1671 = vunpack.c.0.s8 %v1670
    %v1672 = vlaneseq
    %v1673 = vshrl.u32 %v1672, 7
    %v1674 = vsub.s32 %v1671, %v1673
    %v1675 = vrot.slane %v1654, %v1674
    %v1677 = vunpack.c.l.s4 1966171168
    %v1678 = vunpack.c.0.s8 %v1677
    %v1679 = vlaneseq
    %v1680 = vshrl.u32 %v1679, 7
    %v1681 = vsub.s32 %v1678, %v1680
    %v1682 = vrot.slane %v1589, %v1681
    %v1683 = vcombine.low %v1661, %v1668
    %v1684 = vcombine.low %v1675, %v1682
    %v1686 = vunpack.c.l.s4 1966171168
    %v1687 = vunpack.c.0.s8 %v1686
    %v1688 = vlaneseq
    %v1689 = vshrl.u32 %v1688, 7
    %v1690 = vsub.s32 %v1687, %v1689
    %v1691 = vrot.slane %v1683, %v1690
    %v1693 = vunpack.c.l.s4 1966171168
    %v1694 = vunpack.c.0.s8 %v1693
    %v1695 = vlaneseq
    %v1696 = vshrl.u32 %v1695, 7
    %v1697 = vsub.s32 %v1694, %v1696
    %v1698 = vrot.slane %v1684, %v1697
    %v1699 = vcombine.low %v1691, %v1698
    %vm1702 = vcmask 260096
    %v1703 = vsel %vm1702, %v1651, 0.0
    %v1704 = vrot.slane %v1703, 4
    %v1705 = vadd.f32 %v1703, %v1704
    %v1706 = vrot.slane %v1705, 2
    %v1707 = vadd.f32 %v1705, %v1706
    %v1708 = vrot.slane %v1707, 1
    %v1709 = vadd.f32 %v1707, %v1708
    %v1710 = vsel %vm1702, %v1699, 0.0
    %v1711 = vrot.slane %v1710, 4
    %v1712 = vadd.f32 %v1710, %v1711
    %v1713 = vrot.slane %v1712, 2
    %v1714 = vadd.f32 %v1712, %v1713
    %v1715 = vrot.slane %v1714, 1
    %v1716 = vadd.f32 %v1714, %v1715
    %v1719 = vsel %vm811, %v1716, %v1709
    %v1721 = vadd.f32 %v1463, %v1719
    %vm1722 = vcmask 254976
    %1723 = vst.msk [vmem:[#allocation5] sm:$0x3] %vm1722, %v1721
    %1724 = vst.msk [vmem:[#allocation3] sm:$0x3] %vm1134, %v814
    // Predicated region
    $region74: #{tpu_custom_call.1} parent=1 // pred_check
      %p1725 = pneg %p66
    $region75: #{tpu_custom_call.1} parent=1 // pred_check_branch
      %1727 = sbr.rel (%p1725) target = $region77
    $region76: #{tpu_custom_call.1} parent=1 // pred_region
      %v1728 = vld [vmem:[#allocation4] sm:$0x3]
      %v1729 = vrcp.pop %v1728
      %v1731 = vsel %vm1193, %v1729, 0
      %1733 = vmatprep.subr.mxu0 0.0
      %1734 = vmatpush1.msra.mxu0 0.0
      %1735 = vmatprep.subr.mxu0 0.0
      %1736 = vmatpush1.msra.mxu0 0.0
      %1737 = vmatprep.subr.mxu0 0.0
      %1738 = vmatpush1.msra.mxu0 0.0
      %1739 = vmatprep.subr.mxu0 0.0
      %1740 = vmatpush1.msra.mxu0 0.0
      %1741 = vmatprep.subr.mxu0 0.0
      %1742 = vmatpush1.msra.mxu0 0.0
      %1743 = vmatprep.subr.mxu0 0.0
      %1744 = vmatpush1.msra.mxu0 0.0
      %1745 = vmatprep.subr.mxu0 0.0
      %1746 = vmatpush1.msra.mxu0 0.0
      %1747 = vmatprep.subr.mxu0 0.0
      %1748 = vmatpush1.msra.mxu0 0.0
      %1749 = vmatprep.subr.mxu0 0.0
      %1750 = vmatpush1.msra.mxu0 0.0
      %1751 = vmatprep.subr.mxu0 0.0
      %1752 = vmatpush1.msra.mxu0 0.0
      %1753 = vmatprep.subr.mxu0 0.0
      %1754 = vmatpush1.msra.mxu0 0.0
      %1755 = vmatprep.subr.mxu0 0.0
      %1756 = vmatpush1.msra.mxu0 0.0
      %1757 = vmatprep.subr.mxu0 0.0
      %1758 = vmatpush1.msra.mxu0 0.0
      %1759 = vmatprep.subr.mxu0 0.0
      %1760 = vmatpush1.msra.mxu0 0.0
      %1761 = vmatprep.subr.mxu0 0.0
      %1762 = vmatpush1.msra.mxu0 0.0
      %1763 = vmatprep.subr.mxu0 0.0
      %1764 = vmatpush1.msra.mxu0 %v1200
      %1765 = vmatprep.subr.mxu0 0.0
      %1766 = vmatpush2.msra.mxu0 0.0
      %1767 = vmatprep.subr.mxu0 0.0
      %1768 = vmatpush2.msra.mxu0 0.0
      %1769 = vmatprep.subr.mxu0 0.0
      %1770 = vmatpush2.msra.mxu0 0.0
      %1771 = vmatprep.subr.mxu0 0.0
      %1772 = vmatpush2.msra.mxu0 0.0
      %1773 = vmatprep.subr.mxu0 0.0
      %1774 = vmatpush2.msra.mxu0 0.0
      %1775 = vmatprep.subr.mxu0 0.0
      %1776 = vmatpush2.msra.mxu0 0.0
      %1777 = vmatprep.subr.mxu0 0.0
      %1778 = vmatpush2.msra.mxu0 0.0
      %1779 = vmatprep.subr.mxu0 0.0
      %1780 = vmatpush2.msra.mxu0 0.0
      %1781 = vmatprep.subr.mxu0 0.0
      %1782 = vmatpush2.msra.mxu0 0.0
      %1783 = vmatprep.subr.mxu0 0.0
      %1784 = vmatpush2.msra.mxu0 0.0
      %1785 = vmatprep.subr.mxu0 0.0
      %1786 = vmatpush2.msra.mxu0 0.0
      %1787 = vmatprep.subr.mxu0 0.0
      %1788 = vmatpush2.msra.mxu0 0.0
      %1789 = vmatprep.subr.mxu0 0.0
      %1790 = vmatpush2.msra.mxu0 0.0
      %1791 = vmatprep.subr.mxu0 0.0
      %1792 = vmatpush2.msra.mxu0 0.0
      %1793 = vmatprep.subr.mxu0 0.0
      %1794 = vmatpush2.msra.mxu0 0.0
      %1795 = vmatprep.subr.mxu0 0.0
      %1796 = vmatpush2.msra.mxu0 0.0
      %1797 = vmatprep.mubr.f32.mxu0 0.0
      %1798 = vmatmul.mubr.f32.gmra.mxu0 %v1731
      %v1799 = vpop.f32.mrf.mxu0
      %v1800 = vadd.f32 0.0, %v1799
      %v1801 = vpop.f32.mrf.mxu0
      %1802 = vdwg.mxu0
      %v1803 = vld [vmem:[#allocation5] sm:$0x3]
      %v1804 = vmul.f32 %v1803, %v1800
      %v1805 = vld [vmem:[%s9] sm:$0xff]
      %v1806 = vld [vmem:[%s9 + $0x8] sm:$0xff]
      %v1807 = vld [vmem:[%s9 + $0x10] sm:$0xff]
      %v1808 = vld [vmem:[%s9 + $0x18] sm:$0xff]
      %v1809 = vld [vmem:[%s10] sm:$0x1]
      %v1811 = vlaneseq
      %v1812 = vshrl.u32 %v1811, 7
      %v1813 = vsub.s32 0, %v1812
      %v1814 = vrot.slane %v1809, %v1813
      %v1817 = vsel %vm503, %v1804, 0
      %1819 = vmatprep.subr.mxu0 0.0
      %1820 = vmatpush1.msra.mxu0 0.0
      %1821 = vmatprep.subr.mxu0 0.0
      %1822 = vmatpush1.msra.mxu0 0.0
      %1823 = vmatprep.subr.mxu0 0.0
      %1824 = vmatpush1.msra.mxu0 0.0
      %1825 = vmatprep.subr.mxu0 0.0
      %1826 = vmatpush1.msra.mxu0 0.0
      %1827 = vmatprep.subr.mxu0 0.0
      %1828 = vmatpush1.msra.mxu0 0.0
      %1829 = vmatprep.subr.mxu0 0.0
      %1830 = vmatpush1.msra.mxu0 0.0
      %1831 = vmatprep.subr.mxu0 0.0
      %1832 = vmatpush1.msra.mxu0 0.0
      %1833 = vmatprep.subr.mxu0 0.0
      %1834 = vmatpush1.msra.mxu0 0.0
      %1835 = vmatprep.subr.mxu0 0.0
      %1836 = vmatpush1.msra.mxu0 0.0
      %1837 = vmatprep.subr.mxu0 0.0
      %1838 = vmatpush1.msra.mxu0 0.0
      %1839 = vmatprep.subr.mxu0 0.0
      %1840 = vmatpush1.msra.mxu0 0.0
      %1841 = vmatprep.subr.mxu0 0.0
      %1842 = vmatpush1.msra.mxu0 0.0
      %1843 = vmatprep.subr.mxu0 0.0
      %1844 = vmatpush1.msra.mxu0 %v1808
      %1845 = vmatprep.subr.mxu0 0.0
      %1846 = vmatpush1.msra.mxu0 %v1807
      %1847 = vmatprep.subr.mxu0 0.0
      %1848 = vmatpush1.msra.mxu0 %v1806
      %1849 = vmatprep.subr.mxu0 0.0
      %1850 = vmatpush1.msra.mxu0 %v1805
      %1851 = vmatprep.subr.mxu0 0.0
      %1852 = vmatpush2.msra.mxu0 0.0
      %1853 = vmatprep.subr.mxu0 0.0
      %1854 = vmatpush2.msra.mxu0 0.0
      %1855 = vmatprep.subr.mxu0 0.0
      %1856 = vmatpush2.msra.mxu0 0.0
      %1857 = vmatprep.subr.mxu0 0.0
      %1858 = vmatpush2.msra.mxu0 0.0
      %1859 = vmatprep.subr.mxu0 0.0
      %1860 = vmatpush2.msra.mxu0 0.0
      %1861 = vmatprep.subr.mxu0 0.0
      %1862 = vmatpush2.msra.mxu0 0.0
      %1863 = vmatprep.subr.mxu0 0.0
      %1864 = vmatpush2.msra.mxu0 0.0
      %1865 = vmatprep.subr.mxu0 0.0
      %1866 = vmatpush2.msra.mxu0 0.0
      %1867 = vmatprep.subr.mxu0 0.0
      %1868 = vmatpush2.msra.mxu0 0.0
      %1869 = vmatprep.subr.mxu0 0.0
      %1870 = vmatpush2.msra.mxu0 0.0
      %1871 = vmatprep.subr.mxu0 0.0
      %1872 = vmatpush2.msra.mxu0 0.0
      %1873 = vmatprep.subr.mxu0 0.0
      %1874 = vmatpush2.msra.mxu0 0.0
      %1875 = vmatprep.subr.mxu0 0.0
      %1876 = vmatpush2.msra.mxu0 0.0
      %1877 = vmatprep.subr.mxu0 0.0
      %1878 = vmatpush2.msra.mxu0 0.0
      %1879 = vmatprep.subr.mxu0 0.0
      %1880 = vmatpush2.msra.mxu0 0.0
      %1881 = vmatprep.subr.mxu0 0.0
      %1882 = vmatpush2.msra.mxu0 0.0
      %1883 = vmatprep.mubr.f32.mxu0 0.0
      %1884 = vmatmul.mubr.f32.gmra.mxu0 %v1817
      %v1885 = vpop.f32.mrf.mxu0
      %v1886 = vadd.f32 %v1814, %v1885
      %v1887 = vpop.f32.mrf.mxu0
      %1888 = vdwg.mxu0
      %v1889 = vld [vmem:[%s0] sm:$0x3]
      %v1890 = vadd.f32 %v1889, %v1886
      %v1891 = vsel %vm1722, %v1890, 0.0
      %1892 = vadd.xlane.f32.xlu0 %v1891
      %v1893 = vpop.xlane.xlu0 %1892
      %v1894 = vrcp.pop 32.0
      %v1895 = vmul.f32 %v1893, %v1894
      %v1896 = vsub.f32 %v1890, %v1895
      %v1897 = vmul.f32 %v1896, %v1896
      %v1898 = vsel %vm1722, %v1897, 0.0
      %1899 = vadd.xlane.f32.xlu0 %v1898
      %v1900 = vpop.xlane.xlu0 %1899
      %v1901 = vmul.f32 %v1900, %v1894
      %v1902 = vadd.f32 %v1901, 1e-05
      %v1903 = vrsqrt.pop %v1902
      %v1904 = vmul.f32 %v1896, %v1903
      %v1905 = vld [vmem:[%s11] sm:$0x1]
      %v1907 = vlaneseq
      %v1908 = vshrl.u32 %v1907, 7
      %v1909 = vsub.s32 0, %v1908
      %v1910 = vrot.slane %v1905, %v1909
      %v1912 = vmul.f32 %v1904, %v1910
      %v1913 = vld [vmem:[%s12] sm:$0x1]
      %v1915 = vlaneseq
      %v1916 = vshrl.u32 %v1915, 7
      %v1917 = vsub.s32 0, %v1916
      %v1918 = vrot.slane %v1913, %v1917
      %v1920 = vadd.f32 %v1912, %v1918
      %v1921 = vld [vmem:[%s13] sm:$0xff]
      %v1922 = vld [vmem:[%s13 + $0x8] sm:$0xff]
      %v1923 = vld [vmem:[%s13 + $0x10] sm:$0xff]
      %v1924 = vld [vmem:[%s13 + $0x18] sm:$0xff]
      %v1925 = vld [vmem:[%s14] sm:$0x1]
      %v1927 = vlaneseq
      %v1928 = vshrl.u32 %v1927, 7
      %v1929 = vsub.s32 0, %v1928
      %v1930 = vrot.slane %v1925, %v1929
      %v1933 = vsel %vm503, %v1920, 0
      %1935 = vmatprep.subr.mxu0 0.0
      %1936 = vmatpush1.msra.mxu0 0.0
      %1937 = vmatprep.subr.mxu0 0.0
      %1938 = vmatpush1.msra.mxu0 0.0
      %1939 = vmatprep.subr.mxu0 0.0
      %1940 = vmatpush1.msra.mxu0 0.0
      %1941 = vmatprep.subr.mxu0 0.0
      %1942 = vmatpush1.msra.mxu0 0.0
      %1943 = vmatprep.subr.mxu0 0.0
      %1944 = vmatpush1.msra.mxu0 0.0
      %1945 = vmatprep.subr.mxu0 0.0
      %1946 = vmatpush1.msra.mxu0 0.0
      %1947 = vmatprep.subr.mxu0 0.0
      %1948 = vmatpush1.msra.mxu0 0.0
      %1949 = vmatprep.subr.mxu0 0.0
      %1950 = vmatpush1.msra.mxu0 0.0
      %1951 = vmatprep.subr.mxu0 0.0
      %1952 = vmatpush1.msra.mxu0 0.0
      %1953 = vmatprep.subr.mxu0 0.0
      %1954 = vmatpush1.msra.mxu0 0.0
      %1955 = vmatprep.subr.mxu0 0.0
      %1956 = vmatpush1.msra.mxu0 0.0
      %1957 = vmatprep.subr.mxu0 0.0
      %1958 = vmatpush1.msra.mxu0 0.0
      %1959 = vmatprep.subr.mxu0 0.0
      %1960 = vmatpush1.msra.mxu0 %v1924
      %1961 = vmatprep.subr.mxu0 0.0
      %1962 = vmatpush1.msra.mxu0 %v1923
      %1963 = vmatprep.subr.mxu0 0.0
      %1964 = vmatpush1.msra.mxu0 %v1922
      %1965 = vmatprep.subr.mxu0 0.0
      %1966 = vmatpush1.msra.mxu0 %v1921
      %1967 = vmatprep.subr.mxu0 0.0
      %1968 = vmatpush2.msra.mxu0 0.0
      %1969 = vmatprep.subr.mxu0 0.0
      %1970 = vmatpush2.msra.mxu0 0.0
      %1971 = vmatprep.subr.mxu0 0.0
      %1972 = vmatpush2.msra.mxu0 0.0
      %1973 = vmatprep.subr.mxu0 0.0
      %1974 = vmatpush2.msra.mxu0 0.0
      %1975 = vmatprep.subr.mxu0 0.0
      %1976 = vmatpush2.msra.mxu0 0.0
      %1977 = vmatprep.subr.mxu0 0.0
      %1978 = vmatpush2.msra.mxu0 0.0
      %1979 = vmatprep.subr.mxu0 0.0
      %1980 = vmatpush2.msra.mxu0 0.0
      %1981 = vmatprep.subr.mxu0 0.0
      %1982 = vmatpush2.msra.mxu0 0.0
      %1983 = vmatprep.subr.mxu0 0.0
      %1984 = vmatpush2.msra.mxu0 0.0
      %1985 = vmatprep.subr.mxu0 0.0
      %1986 = vmatpush2.msra.mxu0 0.0
      %1987 = vmatprep.subr.mxu0 0.0
      %1988 = vmatpush2.msra.mxu0 0.0
      %1989 = vmatprep.subr.mxu0 0.0
      %1990 = vmatpush2.msra.mxu0 0.0
      %1991 = vmatprep.subr.mxu0 0.0
      %1992 = vmatpush2.msra.mxu0 0.0
      %1993 = vmatprep.subr.mxu0 0.0
      %1994 = vmatpush2.msra.mxu0 0.0
      %1995 = vmatprep.subr.mxu0 0.0
      %1996 = vmatpush2.msra.mxu0 0.0
      %1997 = vmatprep.subr.mxu0 0.0
      %1998 = vmatpush2.msra.mxu0 0.0
      %1999 = vmatprep.mubr.f32.mxu0 0.0
      %2000 = vmatmul.mubr.f32.gmra.mxu0 %v1933
      %v2001 = vpop.f32.mrf.mxu0
      %v2002 = vadd.f32 %v1930, %v2001
      %v2003 = vpop.f32.mrf.mxu0
      %2004 = vdwg.mxu0
      %v2005 = vmul.f32 %v2002, 0.5
      %v2006 = vmul.f32 %v2002, 0.70710677
      %v2007 = verf.f32.pop %v2006
      %v2008 = vadd.f32 %v2007, 1.0
      %v2009 = vmul.f32 %v2005, %v2008
      %v2010 = vld [vmem:[%s15] sm:$0xff]
      %v2011 = vld [vmem:[%s15 + $0x8] sm:$0xff]
      %v2012 = vld [vmem:[%s15 + $0x10] sm:$0xff]
      %v2013 = vld [vmem:[%s15 + $0x18] sm:$0xff]
      %v2014 = vld [vmem:[%s15 + $0x20] sm:$0xff]
      %v2015 = vld [vmem:[%s15 + $0x28] sm:$0xff]
      %v2016 = vld [vmem:[%s15 + $0x30] sm:$0xff]
      %v2017 = vld [vmem:[%s15 + $0x38] sm:$0xff]
      %v2018 = vld [vmem:[%s15 + $0x40] sm:$0xff]
      %v2019 = vld [vmem:[%s15 + $0x48] sm:$0xff]
      %v2020 = vld [vmem:[%s15 + $0x50] sm:$0xff]
      %v2021 = vld [vmem:[%s15 + $0x58] sm:$0xff]
      %v2022 = vld [vmem:[%s15 + $0x60] sm:$0xff]
      %v2023 = vld [vmem:[%s15 + $0x68] sm:$0xff]
      %v2024 = vld [vmem:[%s15 + $0x70] sm:$0xff]
      %v2025 = vld [vmem:[%s15 + $0x78] sm:$0xff]
      %v2026 = vld [vmem:[%s16] sm:$0x1]
      %v2028 = vlaneseq
      %v2029 = vshrl.u32 %v2028, 7
      %v2030 = vsub.s32 0, %v2029
      %v2031 = vrot.slane %v2026, %v2030
      %2033 = vmatprep.subr.mxu0 0.0
      %2034 = vmatpush1.msra.mxu0 %v2025
      %2035 = vmatprep.subr.mxu0 0.0
      %2036 = vmatpush1.msra.mxu0 %v2024
      %2037 = vmatprep.subr.mxu0 0.0
      %2038 = vmatpush1.msra.mxu0 %v2023
      %2039 = vmatprep.subr.mxu0 0.0
      %2040 = vmatpush1.msra.mxu0 %v2022
      %2041 = vmatprep.subr.mxu0 0.0
      %2042 = vmatpush1.msra.mxu0 %v2021
      %2043 = vmatprep.subr.mxu0 0.0
      %2044 = vmatpush1.msra.mxu0 %v2020
      %2045 = vmatprep.subr.mxu0 0.0
      %2046 = vmatpush1.msra.mxu0 %v2019
      %2047 = vmatprep.subr.mxu0 0.0
      %2048 = vmatpush1.msra.mxu0 %v2018
      %2049 = vmatprep.subr.mxu0 0.0
      %2050 = vmatpush1.msra.mxu0 %v2017
      %2051 = vmatprep.subr.mxu0 0.0
      %2052 = vmatpush1.msra.mxu0 %v2016
      %2053 = vmatprep.subr.mxu0 0.0
      %2054 = vmatpush1.msra.mxu0 %v2015
      %2055 = vmatprep.subr.mxu0 0.0
      %2056 = vmatpush1.msra.mxu0 %v2014
      %2057 = vmatprep.subr.mxu0 0.0
      %2058 = vmatpush1.msra.mxu0 %v2013
      %2059 = vmatprep.subr.mxu0 0.0
      %2060 = vmatpush1.msra.mxu0 %v2012
      %2061 = vmatprep.subr.mxu0 0.0
      %2062 = vmatpush1.msra.mxu0 %v2011
      %2063 = vmatprep.subr.mxu0 0.0
      %2064 = vmatpush1.msra.mxu0 %v2010
      %2065 = vmatprep.subr.mxu0 0.0
      %2066 = vmatpush2.msra.mxu0 0.0
      %2067 = vmatprep.subr.mxu0 0.0
      %2068 = vmatpush2.msra.mxu0 0.0
      %2069 = vmatprep.subr.mxu0 0.0
      %2070 = vmatpush2.msra.mxu0 0.0
      %2071 = vmatprep.subr.mxu0 0.0
      %2072 = vmatpush2.msra.mxu0 0.0
      %2073 = vmatprep.subr.mxu0 0.0
      %2074 = vmatpush2.msra.mxu0 0.0
      %2075 = vmatprep.subr.mxu0 0.0
      %2076 = vmatpush2.msra.mxu0 0.0
      %2077 = vmatprep.subr.mxu0 0.0
      %2078 = vmatpush2.msra.mxu0 0.0
      %2079 = vmatprep.subr.mxu0 0.0
      %2080 = vmatpush2.msra.mxu0 0.0
      %2081 = vmatprep.subr.mxu0 0.0
      %2082 = vmatpush2.msra.mxu0 0.0
      %2083 = vmatprep.subr.mxu0 0.0
      %2084 = vmatpush2.msra.mxu0 0.0
      %2085 = vmatprep.subr.mxu0 0.0
      %2086 = vmatpush2.msra.mxu0 0.0
      %2087 = vmatprep.subr.mxu0 0.0
      %2088 = vmatpush2.msra.mxu0 0.0
      %2089 = vmatprep.subr.mxu0 0.0
      %2090 = vmatpush2.msra.mxu0 0.0
      %2091 = vmatprep.subr.mxu0 0.0
      %2092 = vmatpush2.msra.mxu0 0.0
      %2093 = vmatprep.subr.mxu0 0.0
      %2094 = vmatpush2.msra.mxu0 0.0
      %2095 = vmatprep.subr.mxu0 0.0
      %2096 = vmatpush2.msra.mxu0 0.0
      %2097 = vmatprep.mubr.f32.mxu0 0.0
      %2098 = vmatmul.mubr.f32.gmra.mxu0 %v2009
      %v2099 = vpop.f32.mrf.mxu0
      %v2100 = vadd.f32 %v2031, %v2099
      %v2101 = vpop.f32.mrf.mxu0
      %2102 = vdwg.mxu0
      %v2103 = vadd.f32 %v1890, %v2100
      %2104 = vst.msk [vmem:[#allocation6] sm:$0x3] %vm1722, %v2103
    $region77: #{tpu_custom_call.1} parent=1 // pred_fallthru
      _
    // Predicated region
    $region78: #{tpu_custom_call.1} parent=1 // pred_check
      _
    $region79: #{tpu_custom_call.1} parent=1 // pred_check_branch
      %2106 = sbr.rel (0) target = $region81
    $region80: #{tpu_custom_call.1} parent=1 // pred_region
      %s2108 = ssub.s32 32, 32
      %2109 = vsyncadd [#allocation7], %s2108
      %s2111 = sshll.u32 [#allocation6], 4
      %s2112 = int_to_ptr.vmem [resolvable:$true] %s2111
      %2114 = dma.vmem_to_hbm [thread:$0]  %s2112, 32, %s17, [#allocation7]
    $region81: #{tpu_custom_call.1} parent=1 // pred_fallthru
      _
    // Predicated region
    $region82: #{tpu_custom_call.1} parent=1 // pred_check
      _
    $region83: #{tpu_custom_call.1} parent=1 // pred_check_branch
      %2116 = sbr.rel (0) target = $region85
    $region84: #{tpu_custom_call.1} parent=1 // pred_region
      %s2118 = ssub.s32 32, 32
      %2119 = vsyncadd [#allocation9], %s2118
      %s2121 = sshll.u32 [#allocation8], 4
      %s2122 = int_to_ptr.vmem [resolvable:$true] %s2121
      %2124 = dma.vmem_to_hbm [thread:$0]  %s2122, 32, %s18, [#allocation9]
    $region85: #{tpu_custom_call.1} parent=1 // pred_fallthru
      _
    // Predicated region
    $region86: #{tpu_custom_call.1} parent=1 // pred_check
      _
    $region87: #{tpu_custom_call.1} parent=1 // pred_check_branch
      %2126 = sbr.rel (0) target = $region89
    $region88: #{tpu_custom_call.1} parent=1 // pred_region
      %s2128 = ssub.s32 32, 32
      %2129 = vsyncadd [#allocation9], %s2128
      %s2131 = sshll.u32 [#allocation10], 4
      %s2132 = int_to_ptr.vmem [resolvable:$true] %s2131
      %2134 = dma.vmem_to_hbm [thread:$0]  %s2132, 32, %s19, [#allocation9]
    $region89: #{tpu_custom_call.1} parent=1 // pred_fallthru
      _
    // Predicated region
    $region90: #{tpu_custom_call.1} parent=1 // pred_check
      _
    $region91: #{tpu_custom_call.1} parent=1 // pred_check_branch
      %2136 = sbr.rel (0) target = $region93
    $region92: #{tpu_custom_call.1} parent=1 // pred_region
      %2137 = dma.done [#allocation7], 32
    $region93: #{tpu_custom_call.1} parent=1 // pred_fallthru
      _
    // Predicated region
    $region94: #{tpu_custom_call.1} parent=1 // pred_check
      _
    $region95: #{tpu_custom_call.1} parent=1 // pred_check_branch
      %2139 = sbr.rel (0) target = $region97
    $region96: #{tpu_custom_call.1} parent=1 // pred_region
      %2140 = dma.done [#allocation9], 32
    $region97: #{tpu_custom_call.1} parent=1 // pred_fallthru
      _
    // Predicated region
    $region98: #{tpu_custom_call.1} parent=1 // pred_check
      _
    $region99: #{tpu_custom_call.1} parent=1 // pred_check_branch
      %2142 = sbr.rel (0) target = $region101
    $region100: #{tpu_custom_call.1} parent=1 // pred_region
      %2143 = dma.done [#allocation9], 32
    $region101: #{tpu_custom_call.1} parent=1 // pred_fallthru
      _
    %2144 = vsyncpa [#allocation7], 1
    %2145 = vsyncpa [#allocation9], 1

// kernel: tpu_custom_call.1
$region0: #{tpu_custom_call.1}
  #allocation0 [shape = 'u32[]', space=smem, size = 0x4, offset = 0x4, fixed_abs, tag = 'smem constant byte address 0x4 - core index']
  #allocation1 [shape = 'u32[144,128]{1,0:T(1,128)}', space=vmem, size = 0x12000, scoped, tag = 'internal scratch']
  #allocation2 [shape = 'f32[2,32]{1,0:T(2,128)}', space=vmem, size = 0x400, scoped, tag = 'scratch operand']
  #allocation3 [shape = 'f32[2,4]{1,0:T(2,128)}', space=vmem, size = 0x400, scoped, tag = 'scratch operand']
  #allocation4 [shape = 'f32[2,4]{1,0:T(2,128)}', space=vmem, size = 0x400, scoped, tag = 'scratch operand']
  #allocation5 [shape = 'f32[2,32]{1,0:T(2,128)}', space=vmem, size = 0x400, scoped, tag = 'scratch operand']
  %s0 = inlined_call_operand.vmem [shape: f32[2,32], index: 0, kind: input, shape index: {}]
  %s1 = inlined_call_operand.vmem [shape: f32[2,7,32], index: 1, kind: input, shape index: {}]
  %s2 = inlined_call_operand.vmem [shape: f32[2,7,32], index: 2, kind: input, shape index: {}]
  %s3 = inlined_call_operand.vmem [shape: f32[32,4], index: 3, kind: input, shape index: {}]
  %s4 = inlined_call_operand.vmem [shape: f32[4,32], index: 4, kind: input, shape index: {}]
  %s5 = inlined_call_operand.vmem [shape: f32[1,32], index: 5, kind: input, shape index: {}]
  %s6 = inlined_call_operand.vmem [shape: f32[1,32], index: 6, kind: input, shape index: {}]
  %s7 = inlined_call_operand.vmem [shape: f32[32,96], index: 7, kind: input, shape index: {}]
  %s8 = inlined_call_operand.vmem [shape: f32[1,96], index: 8, kind: input, shape index: {}]
  %s9 = inlined_call_operand.vmem [shape: f32[32,32], index: 9, kind: input, shape index: {}]
  %s10 = inlined_call_operand.vmem [shape: f32[1,32], index: 10, kind: input, shape index: {}]
  %s11 = inlined_call_operand.vmem [shape: f32[1,32], index: 11, kind: input, shape index: {}]
  %s12 = inlined_call_operand.vmem [shape: f32[1,32], index: 12, kind: input, shape index: {}]
  %s13 = inlined_call_operand.vmem [shape: f32[32,128], index: 13, kind: input, shape index: {}]
  %s14 = inlined_call_operand.vmem [shape: f32[1,128], index: 14, kind: input, shape index: {}]
  %s15 = inlined_call_operand.vmem [shape: f32[128,32], index: 15, kind: input, shape index: {}]
  %s16 = inlined_call_operand.vmem [shape: f32[1,32], index: 16, kind: input, shape index: {}]
  %s17 = inlined_call_operand.hbm [shape: f32[2,32], index: 17, kind: output, shape index: {0}]
  %s18 = inlined_call_operand.hbm [shape: f32[2,32], index: 18, kind: output, shape index: {1}]
  %s19 = inlined_call_operand.hbm [shape: f32[2,32], index: 19, kind: output, shape index: {2}]
  %20 = xla_tuple %s17, %s18, %s19
  %s21 = sld [smem:[#allocation0]]
  $region102: #{tpu_custom_call.1} parent=0
    _
  %s23 = ssub.s32 1, %s21
  %s24 = scalar_select 0, %s23, %s21
  $region1: #{tpu_custom_call.1} parent=0
    #allocation6 [shape = 'u8[1024]{0}', space=vmem, size = 0x400, scoped, tag = 'output window, operand 0, single buffered']
    #allocation7 [shape = 's32[1]{0}', space=sflag, size = 0x4, scoped, tag = 'scoped memory for tpu_custom_call.1']
    #allocation8 [shape = 'u8[1024]{0}', space=vmem, size = 0x400, scoped, tag = 'output window, operand 1, single buffered']
    #allocation9 [shape = 's32[1]{0}', space=sflag, size = 0x4, scoped, tag = 'scoped memory for tpu_custom_call.1']
    #allocation10 [shape = 'u8[1024]{0}', space=vmem, size = 0x400, scoped, tag = 'output window, operand 2, single buffered']
    %25 = vsyncpa [#allocation7], 0
    %26 = vsyncpa [#allocation9], 0
    // Predicated region
    $region2: #{tpu_custom_call.1} parent=1 // pred_check
      _
    $region3: #{tpu_custom_call.1} parent=1 // pred_check_branch
      %28 = sbr.rel (0) target = $region5
    $region4: #{tpu_custom_call.1} parent=1 // pred_region
      _
    $region5: #{tpu_custom_call.1} parent=1 // pred_fallthru
      _
    // Predicated region
    $region6: #{tpu_custom_call.1} parent=1 // pred_check
      _
    $region7: #{tpu_custom_call.1} parent=1 // pred_check_branch
      %30 = sbr.rel (0) target = $region9
    $region8: #{tpu_custom_call.1} parent=1 // pred_region
      _
    $region9: #{tpu_custom_call.1} parent=1 // pred_fallthru
      _
    // Predicated region
    $region10: #{tpu_custom_call.1} parent=1 // pred_check
      _
    $region11: #{tpu_custom_call.1} parent=1 // pred_check_branch
      %32 = sbr.rel (0) target = $region13
    $region12: #{tpu_custom_call.1} parent=1 // pred_region
      _
    $region13: #{tpu_custom_call.1} parent=1 // pred_fallthru
      _
    // Predicated region
    $region14: #{tpu_custom_call.1} parent=1 // pred_check
      _
    $region15: #{tpu_custom_call.1} parent=1 // pred_check_branch
      %34 = sbr.rel (0) target = $region17
    $region16: #{tpu_custom_call.1} parent=1 // pred_region
      _
    $region17: #{tpu_custom_call.1} parent=1 // pred_fallthru
      _
    // Predicated region
    $region18: #{tpu_custom_call.1} parent=1 // pred_check
      _
    $region19: #{tpu_custom_call.1} parent=1 // pred_check_branch
      %36 = sbr.rel (0) target = $region21
    $region20: #{tpu_custom_call.1} parent=1 // pred_region
      _
    $region21: #{tpu_custom_call.1} parent=1 // pred_fallthru
      _
    // Predicated region
    $region22: #{tpu_custom_call.1} parent=1 // pred_check
      _
    $region23: #{tpu_custom_call.1} parent=1 // pred_check_branch
      %38 = sbr.rel (0) target = $region25
    $region24: #{tpu_custom_call.1} parent=1 // pred_region
      _
    $region25: #{tpu_custom_call.1} parent=1 // pred_fallthru
      _
    // Predicated region
    $region26: #{tpu_custom_call.1} parent=1 // pred_check
      _
    $region27: #{tpu_custom_call.1} parent=1 // pred_check_branch
      %40 = sbr.rel (0) target = $region29
    $region28: #{tpu_custom_call.1} parent=1 // pred_region
      _
    $region29: #{tpu_custom_call.1} parent=1 // pred_fallthru
      _
    // Predicated region
    $region30: #{tpu_custom_call.1} parent=1 // pred_check
      _
    $region31: #{tpu_custom_call.1} parent=1 // pred_check_branch
      %42 = sbr.rel (0) target = $region33
    $region32: #{tpu_custom_call.1} parent=1 // pred_region
      _
    $region33: #{tpu_custom_call.1} parent=1 // pred_fallthru
      _
    // Predicated region
    $region34: #{tpu_custom_call.1} parent=1 // pred_check
      _
    $region35: #{tpu_custom_call.1} parent=1 // pred_check_branch
      %44 = sbr.rel (0) target = $region37
    $region36: #{tpu_custom_call.1} parent=1 // pred_region
      _
    $region37: #{tpu_custom_call.1} parent=1 // pred_fallthru
      _
    // Predicated region
    $region38: #{tpu_custom_call.1} parent=1 // pred_check
      _
    $region39: #{tpu_custom_call.1} parent=1 // pred_check_branch
      %46 = sbr.rel (0) target = $region41
    $region40: #{tpu_custom_call.1} parent=1 // pred_region
      _
    $region41: #{tpu_custom_call.1} parent=1 // pred_fallthru
      _
    // Predicated region
    $region42: #{tpu_custom_call.1} parent=1 // pred_check
      _
    $region43: #{tpu_custom_call.1} parent=1 // pred_check_branch
      %48 = sbr.rel (0) target = $region45
    $region44: #{tpu_custom_call.1} parent=1 // pred_region
      _
    $region45: #{tpu_custom_call.1} parent=1 // pred_fallthru
      _
    // Predicated region
    $region46: #{tpu_custom_call.1} parent=1 // pred_check
      _
    $region47: #{tpu_custom_call.1} parent=1 // pred_check_branch
      %50 = sbr.rel (0) target = $region49
    $region48: #{tpu_custom_call.1} parent=1 // pred_region
      _
    $region49: #{tpu_custom_call.1} parent=1 // pred_fallthru
      _
    // Predicated region
    $region50: #{tpu_custom_call.1} parent=1 // pred_check
      _
    $region51: #{tpu_custom_call.1} parent=1 // pred_check_branch
      %52 = sbr.rel (0) target = $region53
    $region52: #{tpu_custom_call.1} parent=1 // pred_region
      _
    $region53: #{tpu_custom_call.1} parent=1 // pred_fallthru
      _
    // Predicated region
    $region54: #{tpu_custom_call.1} parent=1 // pred_check
      _
    $region55: #{tpu_custom_call.1} parent=1 // pred_check_branch
      %54 = sbr.rel (0) target = $region57
    $region56: #{tpu_custom_call.1} parent=1 // pred_region
      _
    $region57: #{tpu_custom_call.1} parent=1 // pred_fallthru
      _
    // Predicated region
    $region58: #{tpu_custom_call.1} parent=1 // pred_check
      _
    $region59: #{tpu_custom_call.1} parent=1 // pred_check_branch
      %56 = sbr.rel (0) target = $region61
    $region60: #{tpu_custom_call.1} parent=1 // pred_region
      _
    $region61: #{tpu_custom_call.1} parent=1 // pred_fallthru
      _
    // Predicated region
    $region62: #{tpu_custom_call.1} parent=1 // pred_check
      _
    $region63: #{tpu_custom_call.1} parent=1 // pred_check_branch
      %58 = sbr.rel (0) target = $region65
    $region64: #{tpu_custom_call.1} parent=1 // pred_region
      _
    $region65: #{tpu_custom_call.1} parent=1 // pred_fallthru
      _
    // Predicated region
    $region66: #{tpu_custom_call.1} parent=1 // pred_check
      _
    $region67: #{tpu_custom_call.1} parent=1 // pred_check_branch
      %60 = sbr.rel (0) target = $region69
    $region68: #{tpu_custom_call.1} parent=1 // pred_region
      _
    $region69: #{tpu_custom_call.1} parent=1 // pred_fallthru
      _
    %v61 = vld [vmem:[%s3] sm:$0xff]
    %v62 = vld [vmem:[%s3 + $0x8] sm:$0xff]
    %v63 = vld [vmem:[%s3 + $0x10] sm:$0xff]
    %v64 = vld [vmem:[%s3 + $0x18] sm:$0xff]
    %v65 = vld [vmem:[%s4] sm:$0xf]
    %p66 = scmp.eq.s32.totalorder 0, 0
    // Predicated region
    $region70: #{tpu_custom_call.1} parent=1 // pred_check
      %p67 = pneg %p66
    $region71: #{tpu_custom_call.1} parent=1 // pred_check_branch
      %69 = sbr.rel (%p67) target = $region73
    $region72: #{tpu_custom_call.1} parent=1 // pred_region
      %v70 = vld [vmem:[%s0] sm:$0x3]
      %vm71 = vcmask 254976
      %v72 = vsel %vm71, %v70, 0.0
      %73 = vadd.xlane.f32.xlu0 %v72
      %v74 = vpop.xlane.xlu0 %73
      %v75 = vrcp.pop 32.0
      %v76 = vmul.f32 %v74, %v75
      %v77 = vsub.f32 %v70, %v76
      %v78 = vmul.f32 %v77, %v77
      %v79 = vsel %vm71, %v78, 0.0
      %80 = vadd.xlane.f32.xlu0 %v79
      %v81 = vpop.xlane.xlu0 %80
      %v82 = vmul.f32 %v81, %v75
      %v83 = vadd.f32 %v82, 1e-05
      %v84 = vrsqrt.pop %v83
      %v85 = vmul.f32 %v77, %v84
      %v86 = vld [vmem:[%s5] sm:$0x1]
      %v88 = vlaneseq
      %v89 = vshrl.u32 %v88, 7
      %v90 = vsub.s32 0, %v89
      %v91 = vrot.slane %v86, %v90
      %v93 = vmul.f32 %v85, %v91
      %v94 = vld [vmem:[%s6] sm:$0x1]
      %v96 = vlaneseq
      %v97 = vshrl.u32 %v96, 7
      %v98 = vsub.s32 0, %v97
      %v99 = vrot.slane %v94, %v98
      %v101 = vadd.f32 %v93, %v99
      %v102 = vld [vmem:[%s7] sm:$0xff]
      %v103 = vld [vmem:[%s7 + $0x8] sm:$0xff]
      %v104 = vld [vmem:[%s7 + $0x10] sm:$0xff]
      %v105 = vld [vmem:[%s7 + $0x18] sm:$0xff]
      %v106 = vld [vmem:[%s8] sm:$0x1]
      %v108 = vlaneseq
      %v109 = vshrl.u32 %v108, 7
      %v110 = vsub.s32 0, %v109
      %v111 = vrot.slane %v106, %v110
      %vm113 = vcmask 261120
      %v115 = vsel %vm113, %v101, 0
      %117 = vmatprep.subr.mxu0 0.0
      %118 = vmatpush1.msra.mxu0 0.0
      %119 = vmatprep.subr.mxu0 0.0
      %120 = vmatpush1.msra.mxu0 0.0
      %121 = vmatprep.subr.mxu0 0.0
      %122 = vmatpush1.msra.mxu0 0.0
      %123 = vmatprep.subr.mxu0 0.0
      %124 = vmatpush1.msra.mxu0 0.0
      %125 = vmatprep.subr.mxu0 0.0
      %126 = vmatpush1.msra.mxu0 0.0
      %127 = vmatprep.subr.mxu0 0.0
      %128 = vmatpush1.msra.mxu0 0.0
      %129 = vmatprep.subr.mxu0 0.0
      %130 = vmatpush1.msra.mxu0 0.0
      %131 = vmatprep.subr.mxu0 0.0
      %132 = vmatpush1.msra.mxu0 0.0
      %133 = vmatprep.subr.mxu0 0.0
      %134 = vmatpush1.msra.mxu0 0.0
      %135 = vmatprep.subr.mxu0 0.0
      %136 = vmatpush1.msra.mxu0 0.0
      %137 = vmatprep.subr.mxu0 0.0
      %138 = vmatpush1.msra.mxu0 0.0
      %139 = vmatprep.subr.mxu0 0.0
      %140 = vmatpush1.msra.mxu0 0.0
      %141 = vmatprep.subr.mxu0 0.0
      %142 = vmatpush1.msra.mxu0 %v105
      %143 = vmatprep.subr.mxu0 0.0
      %144 = vmatpush1.msra.mxu0 %v104
      %145 = vmatprep.subr.mxu0 0.0
      %146 = vmatpush1.msra.mxu0 %v103
      %147 = vmatprep.subr.mxu0 0.0
      %148 = vmatpush1.msra.mxu0 %v102
      %149 = vmatprep.subr.mxu0 0.0
      %150 = vmatpush2.msra.mxu0 0.0
      %151 = vmatprep.subr.mxu0 0.0
      %152 = vmatpush2.msra.mxu0 0.0
      %153 = vmatprep.subr.mxu0 0.0
      %154 = vmatpush2.msra.mxu0 0.0
      %155 = vmatprep.subr.mxu0 0.0
      %156 = vmatpush2.msra.mxu0 0.0
      %157 = vmatprep.subr.mxu0 0.0
      %158 = vmatpush2.msra.mxu0 0.0
      %159 = vmatprep.subr.mxu0 0.0
      %160 = vmatpush2.msra.mxu0 0.0
      %161 = vmatprep.subr.mxu0 0.0
      %162 = vmatpush2.msra.mxu0 0.0
      %163 = vmatprep.subr.mxu0 0.0
      %164 = vmatpush2.msra.mxu0 0.0
      %165 = vmatprep.subr.mxu0 0.0
      %166 = vmatpush2.msra.mxu0 0.0
      %167 = vmatprep.subr.mxu0 0.0
      %168 = vmatpush2.msra.mxu0 0.0
      %169 = vmatprep.subr.mxu0 0.0
      %170 = vmatpush2.msra.mxu0 0.0
      %171 = vmatprep.subr.mxu0 0.0
      %172 = vmatpush2.msra.mxu0 0.0
      %173 = vmatprep.subr.mxu0 0.0
      %174 = vmatpush2.msra.mxu0 0.0
      %175 = vmatprep.subr.mxu0 0.0
      %176 = vmatpush2.msra.mxu0 0.0
      %177 = vmatprep.subr.mxu0 0.0
      %178 = vmatpush2.msra.mxu0 0.0
      %179 = vmatprep.subr.mxu0 0.0
      %180 = vmatpush2.msra.mxu0 0.0
      %181 = vmatprep.mubr.f32.mxu0 0.0
      %182 = vmatmul.mubr.f32.gmra.mxu0 %v115
      %v183 = vpop.f32.mrf.mxu0
      %v184 = vadd.f32 %v111, %v183
      %v185 = vpop.f32.mrf.mxu0
      %186 = vdwg.mxu0
      %v187 = vmul.f32 %v184, 0.35355338
      %188 = vst.msk [vmem:[#allocation2] sm:$0x3] %vm71, %v187
      %190 = vrot.lane.b32.xlu0 %v184, 96
      %v191 = vpop.permute.xlu0 %190
      %193 = vst.msk [vmem:[#allocation8] sm:$0x3] %vm71, %v191
      %194 = vrot.lane.b32.xlu0 %v184, 64
      %v195 = vpop.permute.xlu0 %194
      %197 = vst.msk [vmem:[#allocation10] sm:$0x3] %vm71, %v195
      %v198 = vmul.f32 %v187, %v191
      %v200 = vsel %vm113, %v198, 0
      %202 = vmatprep.subr.mxu0 0.0
      %203 = vmatpush1.msra.mxu0 0.0
      %204 = vmatprep.subr.mxu0 0.0
      %205 = vmatpush1.msra.mxu0 0.0
      %206 = vmatprep.subr.mxu0 0.0
      %207 = vmatpush1.msra.mxu0 0.0
      %208 = vmatprep.subr.mxu0 0.0
      %209 = vmatpush1.msra.mxu0 0.0
      %210 = vmatprep.subr.mxu0 0.0
      %211 = vmatpush1.msra.mxu0 0.0
      %212 = vmatprep.subr.mxu0 0.0
      %213 = vmatpush1.msra.mxu0 0.0
      %214 = vmatprep.subr.mxu0 0.0
      %215 = vmatpush1.msra.mxu0 0.0
      %216 = vmatprep.subr.mxu0 0.0
      %217 = vmatpush1.msra.mxu0 0.0
      %218 = vmatprep.subr.mxu0 0.0
      %219 = vmatpush1.msra.mxu0 0.0
      %220 = vmatprep.subr.mxu0 0.0
      %221 = vmatpush1.msra.mxu0 0.0
      %222 = vmatprep.subr.mxu0 0.0
      %223 = vmatpush1.msra.mxu0 0.0
      %224 = vmatprep.subr.mxu0 0.0
      %225 = vmatpush1.msra.mxu0 0.0
      %226 = vmatprep.subr.mxu0 0.0
      %227 = vmatpush1.msra.mxu0 %v64
      %228 = vmatprep.subr.mxu0 0.0
      %229 = vmatpush1.msra.mxu0 %v63
      %230 = vmatprep.subr.mxu0 0.0
      %231 = vmatpush1.msra.mxu0 %v62
      %232 = vmatprep.subr.mxu0 0.0
      %233 = vmatpush1.msra.mxu0 %v61
      %234 = vmatprep.subr.mxu0 0.0
      %235 = vmatpush2.msra.mxu0 0.0
      %236 = vmatprep.subr.mxu0 0.0
      %237 = vmatpush2.msra.mxu0 0.0
      %238 = vmatprep.subr.mxu0 0.0
      %239 = vmatpush2.msra.mxu0 0.0
      %240 = vmatprep.subr.mxu0 0.0
      %241 = vmatpush2.msra.mxu0 0.0
      %242 = vmatprep.subr.mxu0 0.0
      %243 = vmatpush2.msra.mxu0 0.0
      %244 = vmatprep.subr.mxu0 0.0
      %245 = vmatpush2.msra.mxu0 0.0
      %246 = vmatprep.subr.mxu0 0.0
      %247 = vmatpush2.msra.mxu0 0.0
      %248 = vmatprep.subr.mxu0 0.0
      %249 = vmatpush2.msra.mxu0 0.0
      %250 = vmatprep.subr.mxu0 0.0
      %251 = vmatpush2.msra.mxu0 0.0
      %252 = vmatprep.subr.mxu0 0.0
      %253 = vmatpush2.msra.mxu0 0.0
      %254 = vmatprep.subr.mxu0 0.0
      %255 = vmatpush2.msra.mxu0 0.0
      %256 = vmatprep.subr.mxu0 0.0
      %257 = vmatpush2.msra.mxu0 0.0
      %258 = vmatprep.subr.mxu0 0.0
      %259 = vmatpush2.msra.mxu0 0.0
      %260 = vmatprep.subr.mxu0 0.0
      %261 = vmatpush2.msra.mxu0 0.0
      %262 = vmatprep.subr.mxu0 0.0
      %263 = vmatpush2.msra.mxu0 0.0
      %264 = vmatprep.subr.mxu0 0.0
      %265 = vmatpush2.msra.mxu0 0.0
      %266 = vmatprep.mubr.f32.mxu0 0.0
      %267 = vmatmul.mubr.f32.gmra.mxu0 %v200
      %v268 = vpop.f32.mrf.mxu0
      %v269 = vadd.f32 0.0, %v268
      %v270 = vpop.f32.mrf.mxu0
      %271 = vdwg.mxu0
      %vm272 = vcmask 25600
      %273 = vst.msk [vmem:[#allocation3] sm:$0x3] %vm272, %v269
      %274 = vst.msk [vmem:[#allocation4] sm:$0x3] %vm272, 1.0
      %275 = vst.msk [vmem:[#allocation5] sm:$0x3] %vm71, %v195
    $region73: #{tpu_custom_call.1} parent=1 // pred_fallthru
      _
    %v276 = vld [vmem:[#allocation2] sm:$0x3]
    %v277 = vld [vmem:[%s1] sm:$0x7f]
    %v278 = vld [vmem:[%s1 + $0x8] sm:$0x7f]
    %v279 = vld [vmem:[%s2] sm:$0x7f]
    %v280 = vld [vmem:[%s2 + $0x8] sm:$0x7f]
    %v283 = vunpack.c.l.s4 1966171168
    %v284 = vunpack.c.0.s8 %v283
    %v285 = vlaneseq
    %v286 = vshrl.u32 %v285, 7
    %v287 = vsub.s32 %v284, %v286
    %v288 = vrot.slane %v276, %v287
    %v289 = vcombine.high %v288, %v288
    %v291 = vunpack.c.l.s4 1966171168
    %v292 = vunpack.c.0.s8 %v291
    %v293 = vlaneseq
    %v294 = vshrl.u32 %v293, 7
    %v295 = vsub.s32 %v292, %v294
    %v296 = vrot.slane %v288, %v295
    %v298 = vunpack.c.l.s4 1966171168
    %v299 = vunpack.c.0.s8 %v298
    %v300 = vlaneseq
    %v301 = vshrl.u32 %v300, 7
    %v302 = vsub.s32 %v299, %v301
    %v303 = vrot.slane %v289, %v302
    %v304 = vlaneseq
    %v305 = vshrl.u32 %v304, 7
    %v306 = vsub.s32 0, %v305
    %v307 = vrot.slane %v296, %v306
    %v308 = vlaneseq
    %v309 = vshrl.u32 %v308, 7
    %v310 = vsub.s32 0, %v309
    %v311 = vrot.slane %v303, %v310
    %v314 = vmul.f32 %v307, %v277
    %v315 = vmul.f32 %v311, %v278
    %v318 = vcombine.high %v314, %v314
    %v320 = vunpack.c.l.s4 1966171168
    %v321 = vunpack.c.0.s8 %v320
    %v322 = vlaneseq
    %v323 = vshrl.u32 %v322, 7
    %v324 = vsub.s32 %v321, %v323
    %v325 = vrot.slane %v314, %v324
    %v327 = vunpack.c.l.s4 1966171168
    %v328 = vunpack.c.0.s8 %v327
    %v329 = vlaneseq
    %v330 = vshrl.u32 %v329, 7
    %v331 = vsub.s32 %v328, %v330
    %v332 = vrot.slane %v318, %v331
    %v333 = vcombine.high %v325, %v325
    %v334 = vcombine.high %v332, %v332
    %v336 = vunpack.c.l.s4 1966171168
    %v337 = vunpack.c.0.s8 %v336
    %v338 = vlaneseq
    %v339 = vshrl.u32 %v338, 7
    %v340 = vsub.s32 %v337, %v339
    %v341 = vrot.slane %v325, %v340
    %v343 = vunpack.c.l.s4 1966171168
    %v344 = vunpack.c.0.s8 %v343
    %v345 = vlaneseq
    %v346 = vshrl.u32 %v345, 7
    %v347 = vsub.s32 %v344, %v346
    %v348 = vrot.slane %v332, %v347
    %v350 = vunpack.c.l.s4 1966171168
    %v351 = vunpack.c.0.s8 %v350
    %v352 = vlaneseq
    %v353 = vshrl.u32 %v352, 7
    %v354 = vsub.s32 %v351, %v353
    %v355 = vrot.slane %v333, %v354
    %v357 = vunpack.c.l.s4 1966171168
    %v358 = vunpack.c.0.s8 %v357
    %v359 = vlaneseq
    %v360 = vshrl.u32 %v359, 7
    %v361 = vsub.s32 %v358, %v360
    %v362 = vrot.slane %v334, %v361
    %v363 = vcombine.high %v341, %v341
    %v364 = vcombine.high %v348, %v348
    %v365 = vcombine.high %v355, %v355
    %v366 = vcombine.high %v315, %v315
    %v368 = vunpack.c.l.s4 1966171168
    %v369 = vunpack.c.0.s8 %v368
    %v370 = vlaneseq
    %v371 = vshrl.u32 %v370, 7
    %v372 = vsub.s32 %v369, %v371
    %v373 = vrot.slane %v315, %v372
    %v375 = vunpack.c.l.s4 1966171168
    %v376 = vunpack.c.0.s8 %v375
    %v377 = vlaneseq
    %v378 = vshrl.u32 %v377, 7
    %v379 = vsub.s32 %v376, %v378
    %v380 = vrot.slane %v366, %v379
    %v381 = vcombine.high %v373, %v373
    %v382 = vcombine.high %v380, %v380
    %v384 = vunpack.c.l.s4 1966171168
    %v385 = vunpack.c.0.s8 %v384
    %v386 = vlaneseq
    %v387 = vshrl.u32 %v386, 7
    %v388 = vsub.s32 %v385, %v387
    %v389 = vrot.slane %v373, %v388
    %v391 = vunpack.c.l.s4 1966171168
    %v392 = vunpack.c.0.s8 %v391
    %v393 = vlaneseq
    %v394 = vshrl.u32 %v393, 7
    %v395 = vsub.s32 %v392, %v394
    %v396 = vrot.slane %v380, %v395
    %v398 = vunpack.c.l.s4 1966171168
    %v399 = vunpack.c.0.s8 %v398
    %v400 = vlaneseq
    %v401 = vshrl.u32 %v400, 7
    %v402 = vsub.s32 %v399, %v401
    %v403 = vrot.slane %v381, %v402
    %v405 = vunpack.c.l.s4 1966171168
    %v406 = vunpack.c.0.s8 %v405
    %v407 = vlaneseq
    %v408 = vshrl.u32 %v407, 7
    %v409 = vsub.s32 %v406, %v408
    %v410 = vrot.slane %v382, %v409
    %v411 = vcombine.high %v389, %v389
    %v412 = vcombine.high %v396, %v396
    %v413 = vcombine.high %v403, %v403
    %v414 = vcombine.low %v341, %v355
    %v415 = vcombine.low %v363, %v365
    %v416 = vcombine.low %v348, %v362
    %v417 = vcombine.low %v364, %v389
    %v419 = vunpack.c.l.s4 1966171168
    %v420 = vunpack.c.0.s8 %v419
    %v421 = vlaneseq
    %v422 = vshrl.u32 %v421, 7
    %v423 = vsub.s32 %v420, %v422
    %v424 = vrot.slane %v414, %v423
    %v426 = vunpack.c.l.s4 1966171168
    %v427 = vunpack.c.0.s8 %v426
    %v428 = vlaneseq
    %v429 = vshrl.u32 %v428, 7
    %v430 = vsub.s32 %v427, %v429
    %v431 = vrot.slane %v415, %v430
    %v433 = vunpack.c.l.s4 1966171168
    %v434 = vunpack.c.0.s8 %v433
    %v435 = vlaneseq
    %v436 = vshrl.u32 %v435, 7
    %v437 = vsub.s32 %v434, %v436
    %v438 = vrot.slane %v416, %v437
    %v440 = vunpack.c.l.s4 1966171168
    %v441 = vunpack.c.0.s8 %v440
    %v442 = vlaneseq
    %v443 = vshrl.u32 %v442, 7
    %v444 = vsub.s32 %v441, %v443
    %v445 = vrot.slane %v417, %v444
    %v446 = vcombine.low %v424, %v431
    %v447 = vcombine.low %v438, %v445
    %v449 = vunpack.c.l.s4 1966171168
    %v450 = vunpack.c.0.s8 %v449
    %v451 = vlaneseq
    %v452 = vshrl.u32 %v451, 7
    %v453 = vsub.s32 %v450, %v452
    %v454 = vrot.slane %v446, %v453
    %v456 = vunpack.c.l.s4 1966171168
    %v457 = vunpack.c.0.s8 %v456
    %v458 = vlaneseq
    %v459 = vshrl.u32 %v458, 7
    %v460 = vsub.s32 %v457, %v459
    %v461 = vrot.slane %v447, %v460
    %v462 = vcombine.low %v454, %v461
    %v463 = vcombine.low %v403, %v411
    %v464 = vcombine.low %v413, %v396
    %v465 = vcombine.low %v410, %v412
    %v467 = vunpack.c.l.s4 1966171168
    %v468 = vunpack.c.0.s8 %v467
    %v469 = vlaneseq
    %v470 = vshrl.u32 %v469, 7
    %v471 = vsub.s32 %v468, %v470
    %v472 = vrot.slane %v463, %v471
    %v474 = vunpack.c.l.s4 1966171168
    %v475 = vunpack.c.0.s8 %v474
    %v476 = vlaneseq
    %v477 = vshrl.u32 %v476, 7
    %v478 = vsub.s32 %v475, %v477
    %v479 = vrot.slane %v464, %v478
    %v481 = vunpack.c.l.s4 1966171168
    %v482 = vunpack.c.0.s8 %v481
    %v483 = vlaneseq
    %v484 = vshrl.u32 %v483, 7
    %v485 = vsub.s32 %v482, %v484
    %v486 = vrot.slane %v465, %v485
    %v487 = vcombine.low %v472, %v479
    %v489 = vunpack.c.l.s4 1966171168
    %v490 = vunpack.c.0.s8 %v489
    %v491 = vlaneseq
    %v492 = vshrl.u32 %v491, 7
    %v493 = vsub.s32 %v490, %v492
    %v494 = vrot.slane %v487, %v493
    %v496 = vunpack.c.l.s4 1966171168
    %v497 = vunpack.c.0.s8 %v496
    %v498 = vlaneseq
    %v499 = vshrl.u32 %v498, 7
    %v500 = vsub.s32 %v497, %v499
    %v501 = vrot.slane %v486, %v500
    %v502 = vcombine.low %v494, %v501
    %vm503 = vcmask 261120
    %v504 = vsel %vm503, %v462, 0
    %v506 = vsel %vm503, %v502, 0
    %508 = vmatprep.subr.mxu0 0.0
    %509 = vmatpush1.msra.mxu0 0.0
    %510 = vmatprep.subr.mxu0 0.0
    %511 = vmatpush1.msra.mxu0 0.0
    %512 = vmatprep.subr.mxu0 0.0
    %513 = vmatpush1.msra.mxu0 0.0
    %514 = vmatprep.subr.mxu0 0.0
    %515 = vmatpush1.msra.mxu0 0.0
    %516 = vmatprep.subr.mxu0 0.0
    %517 = vmatpush1.msra.mxu0 0.0
    %518 = vmatprep.subr.mxu0 0.0
    %519 = vmatpush1.msra.mxu0 0.0
    %520 = vmatprep.subr.mxu0 0.0
    %521 = vmatpush1.msra.mxu0 0.0
    %522 = vmatprep.subr.mxu0 0.0
    %523 = vmatpush1.msra.mxu0 0.0
    %524 = vmatprep.subr.mxu0 0.0
    %525 = vmatpush1.msra.mxu0 0.0
    %526 = vmatprep.subr.mxu0 0.0
    %527 = vmatpush1.msra.mxu0 0.0
    %528 = vmatprep.subr.mxu0 0.0
    %529 = vmatpush1.msra.mxu0 0.0
    %530 = vmatprep.subr.mxu0 0.0
    %531 = vmatpush1.msra.mxu0 0.0
    %532 = vmatprep.subr.mxu0 0.0
    %533 = vmatpush1.msra.mxu0 %v64
    %534 = vmatprep.subr.mxu0 0.0
    %535 = vmatpush1.msra.mxu0 %v63
    %536 = vmatprep.subr.mxu0 0.0
    %537 = vmatpush1.msra.mxu0 %v62
    %538 = vmatprep.subr.mxu0 0.0
    %539 = vmatpush1.msra.mxu0 %v61
    %540 = vmatprep.subr.mxu0 0.0
    %541 = vmatpush2.msra.mxu0 0.0
    %542 = vmatprep.subr.mxu0 0.0
    %543 = vmatpush2.msra.mxu0 0.0
    %544 = vmatprep.subr.mxu0 0.0
    %545 = vmatpush2.msra.mxu0 0.0
    %546 = vmatprep.subr.mxu0 0.0
    %547 = vmatpush2.msra.mxu0 0.0
    %548 = vmatprep.subr.mxu0 0.0
    %549 = vmatpush2.msra.mxu0 0.0
    %550 = vmatprep.subr.mxu0 0.0
    %551 = vmatpush2.msra.mxu0 0.0
    %552 = vmatprep.subr.mxu0 0.0
    %553 = vmatpush2.msra.mxu0 0.0
    %554 = vmatprep.subr.mxu0 0.0
    %555 = vmatpush2.msra.mxu0 0.0
    %556 = vmatprep.subr.mxu0 0.0
    %557 = vmatpush2.msra.mxu0 0.0
    %558 = vmatprep.subr.mxu0 0.0
    %559 = vmatpush2.msra.mxu0 0.0
    %560 = vmatprep.subr.mxu0 0.0
    %561 = vmatpush2.msra.mxu0 0.0
    %562 = vmatprep.subr.mxu0 0.0
    %563 = vmatpush2.msra.mxu0 0.0
    %564 = vmatprep.subr.mxu0 0.0
    %565 = vmatpush2.msra.mxu0 0.0
    %566 = vmatprep.subr.mxu0 0.0
    %567 = vmatpush2.msra.mxu0 0.0
    %568 = vmatprep.subr.mxu0 0.0
    %569 = vmatpush2.msra.mxu0 0.0
    %570 = vmatprep.subr.mxu0 0.0
    %571 = vmatpush2.msra.mxu0 0.0
    %572 = vmatprep.mubr.f32.mxu0 0.0
    %573 = vmatmul.mubr.f32.gmra.mxu0 %v504
    %v574 = vpop.f32.mrf.mxu0
    %v575 = vadd.f32 0.0, %v574
    %v576 = vpop.f32.mrf.mxu0
    %577 = vmatprep.mubr.f32.mxu0 0.0
    %578 = vmatmul.mubr.f32.gmra.mxu0 %v506
    %v579 = vpop.f32.mrf.mxu0
    %v580 = vadd.f32 0.0, %v579
    %v581 = vpop.f32.mrf.mxu0
    %582 = vdwg.mxu0
    %v585 = vcombine.high %v575, %v575
    %v587 = vunpack.c.l.s4 1966171168
    %v588 = vunpack.c.0.s8 %v587
    %v589 = vlaneseq
    %v590 = vshrl.u32 %v589, 7
    %v591 = vsub.s32 %v588, %v590
    %v592 = vrot.slane %v575, %v591
    %v594 = vunpack.c.l.s4 1966171168
    %v595 = vunpack.c.0.s8 %v594
    %v596 = vlaneseq
    %v597 = vshrl.u32 %v596, 7
    %v598 = vsub.s32 %v595, %v597
    %v599 = vrot.slane %v585, %v598
    %v600 = vcombine.high %v592, %v592
    %v601 = vcombine.high %v599, %v599
    %v603 = vunpack.c.l.s4 1966171168
    %v604 = vunpack.c.0.s8 %v603
    %v605 = vlaneseq
    %v606 = vshrl.u32 %v605, 7
    %v607 = vsub.s32 %v604, %v606
    %v608 = vrot.slane %v592, %v607
    %v610 = vunpack.c.l.s4 1966171168
    %v611 = vunpack.c.0.s8 %v610
    %v612 = vlaneseq
    %v613 = vshrl.u32 %v612, 7
    %v614 = vsub.s32 %v611, %v613
    %v615 = vrot.slane %v599, %v614
    %v617 = vunpack.c.l.s4 1966171168
    %v618 = vunpack.c.0.s8 %v617
    %v619 = vlaneseq
    %v620 = vshrl.u32 %v619, 7
    %v621 = vsub.s32 %v618, %v620
    %v622 = vrot.slane %v600, %v621
    %v624 = vunpack.c.l.s4 1966171168
    %v625 = vunpack.c.0.s8 %v624
    %v626 = vlaneseq
    %v627 = vshrl.u32 %v626, 7
    %v628 = vsub.s32 %v625, %v627
    %v629 = vrot.slane %v601, %v628
    %v630 = vcombine.high %v608, %v608
    %v631 = vcombine.high %v615, %v615
    %v632 = vcombine.high %v622, %v622
    %v633 = vcombine.high %v629, %v629
    %v634 = vcombine.high %v580, %v580
    %v636 = vunpack.c.l.s4 1966171168
    %v637 = vunpack.c.0.s8 %v636
    %v638 = vlaneseq
    %v639 = vshrl.u32 %v638, 7
    %v640 = vsub.s32 %v637, %v639
    %v641 = vrot.slane %v580, %v640
    %v643 = vunpack.c.l.s4 1966171168
    %v644 = vunpack.c.0.s8 %v643
    %v645 = vlaneseq
    %v646 = vshrl.u32 %v645, 7
    %v647 = vsub.s32 %v644, %v646
    %v648 = vrot.slane %v634, %v647
    %v649 = vcombine.high %v641, %v641
    %v650 = vcombine.high %v648, %v648
    %v652 = vunpack.c.l.s4 1966171168
    %v653 = vunpack.c.0.s8 %v652
    %v654 = vlaneseq
    %v655 = vshrl.u32 %v654, 7
    %v656 = vsub.s32 %v653, %v655
    %v657 = vrot.slane %v641, %v656
    %v659 = vunpack.c.l.s4 1966171168
    %v660 = vunpack.c.0.s8 %v659
    %v661 = vlaneseq
    %v662 = vshrl.u32 %v661, 7
    %v663 = vsub.s32 %v660, %v662
    %v664 = vrot.slane %v648, %v663
    %v666 = vunpack.c.l.s4 1966171168
    %v667 = vunpack.c.0.s8 %v666
    %v668 = vlaneseq
    %v669 = vshrl.u32 %v668, 7
    %v670 = vsub.s32 %v667, %v669
    %v671 = vrot.slane %v649, %v670
    %v673 = vunpack.c.l.s4 1966171168
    %v674 = vunpack.c.0.s8 %v673
    %v675 = vlaneseq
    %v676 = vshrl.u32 %v675, 7
    %v677 = vsub.s32 %v674, %v676
    %v678 = vrot.slane %v650, %v677
    %v679 = vcombine.high %v657, %v657
    %v680 = vcombine.high %v671, %v671
    %v695 = vld [vmem:[#allocation3] sm:$0x3]
    %v696 = vcombine.low %v608, %v622
    %v697 = vcombine.low %v630, %v632
    %v698 = vcombine.low %v615, %v629
    %v700 = vunpack.c.l.s4 1966171168
    %v701 = vunpack.c.0.s8 %v700
    %v702 = vlaneseq
    %v703 = vshrl.u32 %v702, 7
    %v704 = vsub.s32 %v701, %v703
    %v705 = vrot.slane %v696, %v704
    %v707 = vunpack.c.l.s4 1966171168
    %v708 = vunpack.c.0.s8 %v707
    %v709 = vlaneseq
    %v710 = vshrl.u32 %v709, 7
    %v711 = vsub.s32 %v708, %v710
    %v712 = vrot.slane %v697, %v711
    %v714 = vunpack.c.l.s4 1966171168
    %v715 = vunpack.c.0.s8 %v714
    %v716 = vlaneseq
    %v717 = vshrl.u32 %v716, 7
    %v718 = vsub.s32 %v715, %v717
    %v719 = vrot.slane %v698, %v718
    %v721 = vunpack.c.l.s4 1966171168
    %v722 = vunpack.c.0.s8 %v721
    %v723 = vlaneseq
    %v724 = vshrl.u32 %v723, 7
    %v725 = vsub.s32 %v722, %v724
    %v726 = vrot.slane %v631, %v725
    %v727 = vcombine.low %v705, %v712
    %v728 = vcombine.low %v719, %v726
    %v730 = vunpack.c.l.s4 1966171168
    %v731 = vunpack.c.0.s8 %v730
    %v732 = vlaneseq
    %v733 = vshrl.u32 %v732, 7
    %v734 = vsub.s32 %v731, %v733
    %v735 = vrot.slane %v727, %v734
    %v737 = vunpack.c.l.s4 1966171168
    %v738 = vunpack.c.0.s8 %v737
    %v739 = vlaneseq
    %v740 = vshrl.u32 %v739, 7
    %v741 = vsub.s32 %v738, %v740
    %v742 = vrot.slane %v728, %v741
    %v743 = vcombine.low %v735, %v742
    %v744 = vcombine.low %v633, %v657
    %v745 = vcombine.low %v671, %v679
    %v746 = vcombine.low %v680, %v664
    %v748 = vunpack.c.l.s4 1966171168
    %v749 = vunpack.c.0.s8 %v748
    %v750 = vlaneseq
    %v751 = vshrl.u32 %v750, 7
    %v752 = vsub.s32 %v749, %v751
    %v753 = vrot.slane %v744, %v752
    %v755 = vunpack.c.l.s4 1966171168
    %v756 = vunpack.c.0.s8 %v755
    %v757 = vlaneseq
    %v758 = vshrl.u32 %v757, 7
    %v759 = vsub.s32 %v756, %v758
    %v760 = vrot.slane %v745, %v759
    %v762 = vunpack.c.l.s4 1966171168
    %v763 = vunpack.c.0.s8 %v762
    %v764 = vlaneseq
    %v765 = vshrl.u32 %v764, 7
    %v766 = vsub.s32 %v763, %v765
    %v767 = vrot.slane %v746, %v766
    %v769 = vunpack.c.l.s4 1966171168
    %v770 = vunpack.c.0.s8 %v769
    %v771 = vlaneseq
    %v772 = vshrl.u32 %v771, 7
    %v773 = vsub.s32 %v770, %v772
    %v774 = vrot.slane %v678, %v773
    %v775 = vcombine.low %v753, %v760
    %v776 = vcombine.low %v767, %v774
    %v778 = vunpack.c.l.s4 1966171168
    %v779 = vunpack.c.0.s8 %v778
    %v780 = vlaneseq
    %v781 = vshrl.u32 %v780, 7
    %v782 = vsub.s32 %v779, %v781
    %v783 = vrot.slane %v775, %v782
    %v785 = vunpack.c.l.s4 1966171168
    %v786 = vunpack.c.0.s8 %v785
    %v787 = vlaneseq
    %v788 = vshrl.u32 %v787, 7
    %v789 = vsub.s32 %v786, %v788
    %v790 = vrot.slane %v776, %v789
    %v791 = vcombine.low %v783, %v790
    %vm794 = vcmask 30720
    %v795 = vsel %vm794, %v743, -inf
    %v796 = vrot.slane %v795, 4
    %v797 = vmax.f32 %v795, %v796
    %v798 = vrot.slane %v797, 2
    %v799 = vmax.f32 %v797, %v798
    %v800 = vrot.slane %v799, 1
    %v801 = vmax.f32 %v799, %v800
    %v802 = vsel %vm794, %v791, -inf
    %v803 = vrot.slane %v802, 4
    %v804 = vmax.f32 %v802, %v803
    %v805 = vrot.slane %v804, 2
    %v806 = vmax.f32 %v804, %v805
    %v807 = vrot.slane %v806, 1
    %v808 = vmax.f32 %v806, %v807
    %vm811 = vcmask 1041409
    %v812 = vsel %vm811, %v808, %v801
    %v814 = vmax.f32 %v695, %v812
    %v815 = vsub.f32 %v695, %v814
    %v816 = vmul.f32 %v815, 1.442695
    %v817 = vpow.pop %v816
    %v820 = vunpack.c.l.s4 1966171168
    %v821 = vunpack.c.0.s8 %v820
    %v822 = vlaneseq
    %v823 = vshrl.u32 %v822, 7
    %v824 = vsub.s32 %v821, %v823
    %v825 = vrot.slane %v814, %v824
    %v826 = vcombine.high %v825, %v825
    %v828 = vunpack.c.l.s4 1966171168
    %v829 = vunpack.c.0.s8 %v828
    %v830 = vlaneseq
    %v831 = vshrl.u32 %v830, 7
    %v832 = vsub.s32 %v829, %v831
    %v833 = vrot.slane %v825, %v832
    %v835 = vunpack.c.l.s4 1966171168
    %v836 = vunpack.c.0.s8 %v835
    %v837 = vlaneseq
    %v838 = vshrl.u32 %v837, 7
    %v839 = vsub.s32 %v836, %v838
    %v840 = vrot.slane %v826, %v839
    %v841 = vlaneseq
    %v842 = vshrl.u32 %v841, 7
    %v843 = vsub.s32 0, %v842
    %v844 = vrot.slane %v833, %v843
    %v845 = vlaneseq
    %v846 = vshrl.u32 %v845, 7
    %v847 = vsub.s32 0, %v846
    %v848 = vrot.slane %v840, %v847
    %v849 = vcombine.high %v844, %v844
    %v851 = vunpack.c.l.s4 1966171168
    %v852 = vunpack.c.0.s8 %v851
    %v853 = vlaneseq
    %v854 = vshrl.u32 %v853, 7
    %v855 = vsub.s32 %v852, %v854
    %v856 = vrot.slane %v844, %v855
    %v858 = vunpack.c.l.s4 1966171168
    %v859 = vunpack.c.0.s8 %v858
    %v860 = vlaneseq
    %v861 = vshrl.u32 %v860, 7
    %v862 = vsub.s32 %v859, %v861
    %v863 = vrot.slane %v849, %v862
    %v864 = vcombine.high %v856, %v856
    %v865 = vcombine.high %v863, %v863
    %v867 = vunpack.c.l.s4 1966171168
    %v868 = vunpack.c.0.s8 %v867
    %v869 = vlaneseq
    %v870 = vshrl.u32 %v869, 7
    %v871 = vsub.s32 %v868, %v870
    %v872 = vrot.slane %v856, %v871
    %v874 = vunpack.c.l.s4 1966171168
    %v875 = vunpack.c.0.s8 %v874
    %v876 = vlaneseq
    %v877 = vshrl.u32 %v876, 7
    %v878 = vsub.s32 %v875, %v877
    %v879 = vrot.slane %v863, %v878
    %v881 = vunpack.c.l.s4 1966171168
    %v882 = vunpack.c.0.s8 %v881
    %v883 = vlaneseq
    %v884 = vshrl.u32 %v883, 7
    %v885 = vsub.s32 %v882, %v884
    %v886 = vrot.slane %v864, %v885
    %v888 = vunpack.c.l.s4 1966171168
    %v889 = vunpack.c.0.s8 %v888
    %v890 = vlaneseq
    %v891 = vshrl.u32 %v890, 7
    %v892 = vsub.s32 %v889, %v891
    %v893 = vrot.slane %v865, %v892
    %v894 = vcombine.high %v872, %v872
    %v895 = vcombine.high %v879, %v879
    %v896 = vcombine.high %v886, %v886
    %v897 = vcombine.high %v848, %v848
    %v899 = vunpack.c.l.s4 1966171168
    %v900 = vunpack.c.0.s8 %v899
    %v901 = vlaneseq
    %v902 = vshrl.u32 %v901, 7
    %v903 = vsub.s32 %v900, %v902
    %v904 = vrot.slane %v848, %v903
    %v906 = vunpack.c.l.s4 1966171168
    %v907 = vunpack.c.0.s8 %v906
    %v908 = vlaneseq
    %v909 = vshrl.u32 %v908, 7
    %v910 = vsub.s32 %v907, %v909
    %v911 = vrot.slane %v897, %v910
    %v912 = vcombine.high %v904, %v904
    %v913 = vcombine.high %v911, %v911
    %v915 = vunpack.c.l.s4 1966171168
    %v916 = vunpack.c.0.s8 %v915
    %v917 = vlaneseq
    %v918 = vshrl.u32 %v917, 7
    %v919 = vsub.s32 %v916, %v918
    %v920 = vrot.slane %v904, %v919
    %v922 = vunpack.c.l.s4 1966171168
    %v923 = vunpack.c.0.s8 %v922
    %v924 = vlaneseq
    %v925 = vshrl.u32 %v924, 7
    %v926 = vsub.s32 %v923, %v925
    %v927 = vrot.slane %v911, %v926
    %v929 = vunpack.c.l.s4 1966171168
    %v930 = vunpack.c.0.s8 %v929
    %v931 = vlaneseq
    %v932 = vshrl.u32 %v931, 7
    %v933 = vsub.s32 %v930, %v932
    %v934 = vrot.slane %v912, %v933
    %v936 = vunpack.c.l.s4 1966171168
    %v937 = vunpack.c.0.s8 %v936
    %v938 = vlaneseq
    %v939 = vshrl.u32 %v938, 7
    %v940 = vsub.s32 %v937, %v939
    %v941 = vrot.slane %v913, %v940
    %v942 = vcombine.high %v920, %v920
    %v943 = vcombine.high %v927, %v927
    %v944 = vcombine.high %v934, %v934
    %v959 = vsub.f32 %v608, %v872
    %v960 = vsub.f32 %v622, %v886
    %v961 = vsub.f32 %v630, %v894
    %v962 = vsub.f32 %v632, %v896
    %v963 = vsub.f32 %v615, %v879
    %v964 = vsub.f32 %v629, %v893
    %v965 = vsub.f32 %v631, %v895
    %v966 = vsub.f32 %v633, %v920
    %v967 = vsub.f32 %v657, %v934
    %v968 = vsub.f32 %v671, %v942
    %v969 = vsub.f32 %v679, %v944
    %v970 = vsub.f32 %v680, %v927
    %v971 = vsub.f32 %v664, %v941
    %v972 = vsub.f32 %v678, %v943
    %v973 = vmul.f32 %v959, 1.442695
    %v974 = vpow.pop %v973
    %v975 = vmul.f32 %v960, 1.442695
    %v976 = vpow.pop %v975
    %v977 = vmul.f32 %v961, 1.442695
    %v978 = vpow.pop %v977
    %v979 = vmul.f32 %v962, 1.442695
    %v980 = vpow.pop %v979
    %v981 = vmul.f32 %v963, 1.442695
    %v982 = vpow.pop %v981
    %v983 = vmul.f32 %v964, 1.442695
    %v984 = vpow.pop %v983
    %v985 = vmul.f32 %v965, 1.442695
    %v986 = vpow.pop %v985
    %v987 = vmul.f32 %v966, 1.442695
    %v988 = vpow.pop %v987
    %v989 = vmul.f32 %v967, 1.442695
    %v990 = vpow.pop %v989
    %v991 = vmul.f32 %v968, 1.442695
    %v992 = vpow.pop %v991
    %v993 = vmul.f32 %v969, 1.442695
    %v994 = vpow.pop %v993
    %v995 = vmul.f32 %v970, 1.442695
    %v996 = vpow.pop %v995
    %v997 = vmul.f32 %v971, 1.442695
    %v998 = vpow.pop %v997
    %v999 = vmul.f32 %v972, 1.442695
    %v1000 = vpow.pop %v999
    %v1001 = vld [vmem:[#allocation4] sm:$0x3]
    %v1002 = vmul.f32 %v817, %v1001
    %v1017 = vcombine.low %v974, %v976
    %v1018 = vcombine.low %v978, %v980
    %v1019 = vcombine.low %v982, %v984
    %v1021 = vunpack.c.l.s4 1966171168
    %v1022 = vunpack.c.0.s8 %v1021
    %v1023 = vlaneseq
    %v1024 = vshrl.u32 %v1023, 7
    %v1025 = vsub.s32 %v1022, %v1024
    %v1026 = vrot.slane %v1017, %v1025
    %v1028 = vunpack.c.l.s4 1966171168
    %v1029 = vunpack.c.0.s8 %v1028
    %v1030 = vlaneseq
    %v1031 = vshrl.u32 %v1030, 7
    %v1032 = vsub.s32 %v1029, %v1031
    %v1033 = vrot.slane %v1018, %v1032
    %v1035 = vunpack.c.l.s4 1966171168
    %v1036 = vunpack.c.0.s8 %v1035
    %v1037 = vlaneseq
    %v1038 = vshrl.u32 %v1037, 7
    %v1039 = vsub.s32 %v1036, %v1038
    %v1040 = vrot.slane %v1019, %v1039
    %v1042 = vunpack.c.l.s4 1966171168
    %v1043 = vunpack.c.0.s8 %v1042
    %v1044 = vlaneseq
    %v1045 = vshrl.u32 %v1044, 7
    %v1046 = vsub.s32 %v1043, %v1045
    %v1047 = vrot.slane %v986, %v1046
    %v1048 = vcombine.low %v1026, %v1033
    %v1049 = vcombine.low %v1040, %v1047
    %v1051 = vunpack.c.l.s4 1966171168
    %v1052 = vunpack.c.0.s8 %v1051
    %v1053 = vlaneseq
    %v1054 = vshrl.u32 %v1053, 7
    %v1055 = vsub.s32 %v1052, %v1054
    %v1056 = vrot.slane %v1048, %v1055
    %v1058 = vunpack.c.l.s4 1966171168
    %v1059 = vunpack.c.0.s8 %v1058
    %v1060 = vlaneseq
    %v1061 = vshrl.u32 %v1060, 7
    %v1062 = vsub.s32 %v1059, %v1061
    %v1063 = vrot.slane %v1049, %v1062
    %v1064 = vcombine.low %v1056, %v1063
    %v1065 = vcombine.low %v988, %v990
    %v1066 = vcombine.low %v992, %v994
    %v1067 = vcombine.low %v996, %v998
    %v1069 = vunpack.c.l.s4 1966171168
    %v1070 = vunpack.c.0.s8 %v1069
    %v1071 = vlaneseq
    %v1072 = vshrl.u32 %v1071, 7
    %v1073 = vsub.s32 %v1070, %v1072
    %v1074 = vrot.slane %v1065, %v1073
    %v1076 = vunpack.c.l.s4 1966171168
    %v1077 = vunpack.c.0.s8 %v1076
    %v1078 = vlaneseq
    %v1079 = vshrl.u32 %v1078, 7
    %v1080 = vsub.s32 %v1077, %v1079
    %v1081 = vrot.slane %v1066, %v1080
    %v1083 = vunpack.c.l.s4 1966171168
    %v1084 = vunpack.c.0.s8 %v1083
    %v1085 = vlaneseq
    %v1086 = vshrl.u32 %v1085, 7
    %v1087 = vsub.s32 %v1084, %v1086
    %v1088 = vrot.slane %v1067, %v1087
    %v1090 = vunpack.c.l.s4 1966171168
    %v1091 = vunpack.c.0.s8 %v1090
    %v1092 = vlaneseq
    %v1093 = vshrl.u32 %v1092, 7
    %v1094 = vsub.s32 %v1091, %v1093
    %v1095 = vrot.slane %v1000, %v1094
    %v1096 = vcombine.low %v1074, %v1081
    %v1097 = vcombine.low %v1088, %v1095
    %v1099 = vunpack.c.l.s4 1966171168
    %v1100 = vunpack.c.0.s8 %v1099
    %v1101 = vlaneseq
    %v1102 = vshrl.u32 %v1101, 7
    %v1103 = vsub.s32 %v1100, %v1102
    %v1104 = vrot.slane %v1096, %v1103
    %v1106 = vunpack.c.l.s4 1966171168
    %v1107 = vunpack.c.0.s8 %v1106
    %v1108 = vlaneseq
    %v1109 = vshrl.u32 %v1108, 7
    %v1110 = vsub.s32 %v1107, %v1109
    %v1111 = vrot.slane %v1097, %v1110
    %v1112 = vcombine.low %v1104, %v1111
    %v1115 = vsel %vm794, %v1064, 0.0
    %v1116 = vrot.slane %v1115, 4
    %v1117 = vadd.f32 %v1115, %v1116
    %v1118 = vrot.slane %v1117, 2
    %v1119 = vadd.f32 %v1117, %v1118
    %v1120 = vrot.slane %v1119, 1
    %v1121 = vadd.f32 %v1119, %v1120
    %v1122 = vsel %vm794, %v1112, 0.0
    %v1123 = vrot.slane %v1122, 4
    %v1124 = vadd.f32 %v1122, %v1123
    %v1125 = vrot.slane %v1124, 2
    %v1126 = vadd.f32 %v1124, %v1125
    %v1127 = vrot.slane %v1126, 1
    %v1128 = vadd.f32 %v1126, %v1127
    %v1131 = vsel %vm811, %v1128, %v1121
    %v1133 = vadd.f32 %v1002, %v1131
    %vm1134 = vcmask 25600
    %1135 = vst.msk [vmem:[#allocation4] sm:$0x3] %vm1134, %v1133
    %v1136 = vcombine.low %v986, %v988
    %v1138 = vunpack.c.l.s4 1966171168
    %v1139 = vunpack.c.0.s8 %v1138
    %v1140 = vlaneseq
    %v1141 = vshrl.u32 %v1140, 7
    %v1142 = vsub.s32 %v1139, %v1141
    %v1143 = vrot.slane %v1136, %v1142
    %v1144 = vcombine.low %v1040, %v1143
    %v1146 = vunpack.c.l.s4 1966171168
    %v1147 = vunpack.c.0.s8 %v1146
    %v1148 = vlaneseq
    %v1149 = vshrl.u32 %v1148, 7
    %v1150 = vsub.s32 %v1147, %v1149
    %v1151 = vrot.slane %v1144, %v1150
    %v1152 = vcombine.low %v1056, %v1151
    %v1153 = vcombine.low %v990, %v992
    %v1154 = vcombine.low %v994, %v996
    %v1155 = vcombine.low %v998, %v1000
    %v1157 = vunpack.c.l.s4 1966171168
    %v1158 = vunpack.c.0.s8 %v1157
    %v1159 = vlaneseq
    %v1160 = vshrl.u32 %v1159, 7
    %v1161 = vsub.s32 %v1158, %v1160
    %v1162 = vrot.slane %v1153, %v1161
    %v1164 = vunpack.c.l.s4 1966171168
    %v1165 = vunpack.c.0.s8 %v1164
    %v1166 = vlaneseq
    %v1167 = vshrl.u32 %v1166, 7
    %v1168 = vsub.s32 %v1165, %v1167
    %v1169 = vrot.slane %v1154, %v1168
    %v1171 = vunpack.c.l.s4 1966171168
    %v1172 = vunpack.c.0.s8 %v1171
    %v1173 = vlaneseq
    %v1174 = vshrl.u32 %v1173, 7
    %v1175 = vsub.s32 %v1172, %v1174
    %v1176 = vrot.slane %v1155, %v1175
    %v1177 = vcombine.low %v1162, %v1169
    %v1179 = vunpack.c.l.s4 1966171168
    %v1180 = vunpack.c.0.s8 %v1179
    %v1181 = vlaneseq
    %v1182 = vshrl.u32 %v1181, 7
    %v1183 = vsub.s32 %v1180, %v1182
    %v1184 = vrot.slane %v1177, %v1183
    %v1186 = vunpack.c.l.s4 1966171168
    %v1187 = vunpack.c.0.s8 %v1186
    %v1188 = vlaneseq
    %v1189 = vshrl.u32 %v1188, 7
    %v1190 = vsub.s32 %v1187, %v1189
    %v1191 = vrot.slane %v1176, %v1190
    %v1192 = vcombine.low %v1184, %v1191
    %vm1193 = vcmask 31744
    %v1194 = vsel %vm1193, %v1152, 0
    %v1196 = vsel %vm1193, %v1192, 0
    %vm1198 = vcmask 1043456
    %v1200 = vsel %vm1198, %v65, 0
    %1202 = vmatprep.subr.mxu0 0.0
    %1203 = vmatpush1.msra.mxu0 0.0
    %1204 = vmatprep.subr.mxu0 0.0
    %1205 = vmatpush1.msra.mxu0 0.0
    %1206 = vmatprep.subr.mxu0 0.0
    %1207 = vmatpush1.msra.mxu0 0.0
    %1208 = vmatprep.subr.mxu0 0.0
    %1209 = vmatpush1.msra.mxu0 0.0
    %1210 = vmatprep.subr.mxu0 0.0
    %1211 = vmatpush1.msra.mxu0 0.0
    %1212 = vmatprep.subr.mxu0 0.0
    %1213 = vmatpush1.msra.mxu0 0.0
    %1214 = vmatprep.subr.mxu0 0.0
    %1215 = vmatpush1.msra.mxu0 0.0
    %1216 = vmatprep.subr.mxu0 0.0
    %1217 = vmatpush1.msra.mxu0 0.0
    %1218 = vmatprep.subr.mxu0 0.0
    %1219 = vmatpush1.msra.mxu0 0.0
    %1220 = vmatprep.subr.mxu0 0.0
    %1221 = vmatpush1.msra.mxu0 0.0
    %1222 = vmatprep.subr.mxu0 0.0
    %1223 = vmatpush1.msra.mxu0 0.0
    %1224 = vmatprep.subr.mxu0 0.0
    %1225 = vmatpush1.msra.mxu0 0.0
    %1226 = vmatprep.subr.mxu0 0.0
    %1227 = vmatpush1.msra.mxu0 0.0
    %1228 = vmatprep.subr.mxu0 0.0
    %1229 = vmatpush1.msra.mxu0 0.0
    %1230 = vmatprep.subr.mxu0 0.0
    %1231 = vmatpush1.msra.mxu0 0.0
    %1232 = vmatprep.subr.mxu0 0.0
    %1233 = vmatpush1.msra.mxu0 %v1200
    %1234 = vmatprep.subr.mxu0 0.0
    %1235 = vmatpush2.msra.mxu0 0.0
    %1236 = vmatprep.subr.mxu0 0.0
    %1237 = vmatpush2.msra.mxu0 0.0
    %1238 = vmatprep.subr.mxu0 0.0
    %1239 = vmatpush2.msra.mxu0 0.0
    %1240 = vmatprep.subr.mxu0 0.0
    %1241 = vmatpush2.msra.mxu0 0.0
    %1242 = vmatprep.subr.mxu0 0.0
    %1243 = vmatpush2.msra.mxu0 0.0
    %1244 = vmatprep.subr.mxu0 0.0
    %1245 = vmatpush2.msra.mxu0 0.0
    %1246 = vmatprep.subr.mxu0 0.0
    %1247 = vmatpush2.msra.mxu0 0.0
    %1248 = vmatprep.subr.mxu0 0.0
    %1249 = vmatpush2.msra.mxu0 0.0
    %1250 = vmatprep.subr.mxu0 0.0
    %1251 = vmatpush2.msra.mxu0 0.0
    %1252 = vmatprep.subr.mxu0 0.0
    %1253 = vmatpush2.msra.mxu0 0.0
    %1254 = vmatprep.subr.mxu0 0.0
    %1255 = vmatpush2.msra.mxu0 0.0
    %1256 = vmatprep.subr.mxu0 0.0
    %1257 = vmatpush2.msra.mxu0 0.0
    %1258 = vmatprep.subr.mxu0 0.0
    %1259 = vmatpush2.msra.mxu0 0.0
    %1260 = vmatprep.subr.mxu0 0.0
    %1261 = vmatpush2.msra.mxu0 0.0
    %1262 = vmatprep.subr.mxu0 0.0
    %1263 = vmatpush2.msra.mxu0 0.0
    %1264 = vmatprep.subr.mxu0 0.0
    %1265 = vmatpush2.msra.mxu0 0.0
    %1266 = vmatprep.mubr.f32.mxu0 0.0
    %1267 = vmatmul.mubr.f32.gmra.mxu0 %v1194
    %v1268 = vpop.f32.mrf.mxu0
    %v1269 = vadd.f32 0.0, %v1268
    %v1270 = vpop.f32.mrf.mxu0
    %1271 = vmatprep.mubr.f32.mxu0 0.0
    %1272 = vmatmul.mubr.f32.gmra.mxu0 %v1196
    %v1273 = vpop.f32.mrf.mxu0
    %v1274 = vadd.f32 0.0, %v1273
    %v1275 = vpop.f32.mrf.mxu0
    %1276 = vdwg.mxu0
    %v1279 = vcombine.high %v1269, %v1269
    %v1281 = vunpack.c.l.s4 1966171168
    %v1282 = vunpack.c.0.s8 %v1281
    %v1283 = vlaneseq
    %v1284 = vshrl.u32 %v1283, 7
    %v1285 = vsub.s32 %v1282, %v1284
    %v1286 = vrot.slane %v1269, %v1285
    %v1288 = vunpack.c.l.s4 1966171168
    %v1289 = vunpack.c.0.s8 %v1288
    %v1290 = vlaneseq
    %v1291 = vshrl.u32 %v1290, 7
    %v1292 = vsub.s32 %v1289, %v1291
    %v1293 = vrot.slane %v1279, %v1292
    %v1294 = vcombine.high %v1286, %v1286
    %v1295 = vcombine.high %v1293, %v1293
    %v1297 = vunpack.c.l.s4 1966171168
    %v1298 = vunpack.c.0.s8 %v1297
    %v1299 = vlaneseq
    %v1300 = vshrl.u32 %v1299, 7
    %v1301 = vsub.s32 %v1298, %v1300
    %v1302 = vrot.slane %v1286, %v1301
    %v1304 = vunpack.c.l.s4 1966171168
    %v1305 = vunpack.c.0.s8 %v1304
    %v1306 = vlaneseq
    %v1307 = vshrl.u32 %v1306, 7
    %v1308 = vsub.s32 %v1305, %v1307
    %v1309 = vrot.slane %v1293, %v1308
    %v1311 = vunpack.c.l.s4 1966171168
    %v1312 = vunpack.c.0.s8 %v1311
    %v1313 = vlaneseq
    %v1314 = vshrl.u32 %v1313, 7
    %v1315 = vsub.s32 %v1312, %v1314
    %v1316 = vrot.slane %v1294, %v1315
    %v1318 = vunpack.c.l.s4 1966171168
    %v1319 = vunpack.c.0.s8 %v1318
    %v1320 = vlaneseq
    %v1321 = vshrl.u32 %v1320, 7
    %v1322 = vsub.s32 %v1319, %v1321
    %v1323 = vrot.slane %v1295, %v1322
    %v1324 = vcombine.high %v1302, %v1302
    %v1325 = vcombine.high %v1309, %v1309
    %v1326 = vcombine.high %v1316, %v1316
    %v1327 = vcombine.high %v1323, %v1323
    %v1328 = vcombine.high %v1274, %v1274
    %v1330 = vunpack.c.l.s4 1966171168
    %v1331 = vunpack.c.0.s8 %v1330
    %v1332 = vlaneseq
    %v1333 = vshrl.u32 %v1332, 7
    %v1334 = vsub.s32 %v1331, %v1333
    %v1335 = vrot.slane %v1274, %v1334
    %v1337 = vunpack.c.l.s4 1966171168
    %v1338 = vunpack.c.0.s8 %v1337
    %v1339 = vlaneseq
    %v1340 = vshrl.u32 %v1339, 7
    %v1341 = vsub.s32 %v1338, %v1340
    %v1342 = vrot.slane %v1328, %v1341
    %v1343 = vcombine.high %v1335, %v1335
    %v1344 = vcombine.high %v1342, %v1342
    %v1346 = vunpack.c.l.s4 1966171168
    %v1347 = vunpack.c.0.s8 %v1346
    %v1348 = vlaneseq
    %v1349 = vshrl.u32 %v1348, 7
    %v1350 = vsub.s32 %v1347, %v1349
    %v1351 = vrot.slane %v1335, %v1350
    %v1353 = vunpack.c.l.s4 1966171168
    %v1354 = vunpack.c.0.s8 %v1353
    %v1355 = vlaneseq
    %v1356 = vshrl.u32 %v1355, 7
    %v1357 = vsub.s32 %v1354, %v1356
    %v1358 = vrot.slane %v1342, %v1357
    %v1360 = vunpack.c.l.s4 1966171168
    %v1361 = vunpack.c.0.s8 %v1360
    %v1362 = vlaneseq
    %v1363 = vshrl.u32 %v1362, 7
    %v1364 = vsub.s32 %v1361, %v1363
    %v1365 = vrot.slane %v1343, %v1364
    %v1367 = vunpack.c.l.s4 1966171168
    %v1368 = vunpack.c.0.s8 %v1367
    %v1369 = vlaneseq
    %v1370 = vshrl.u32 %v1369, 7
    %v1371 = vsub.s32 %v1368, %v1370
    %v1372 = vrot.slane %v1344, %v1371
    %v1373 = vcombine.high %v1351, %v1351
    %v1374 = vcombine.high %v1365, %v1365
    %v1390 = vsel %vm1193, %v817, 0
    %1392 = vmatprep.subr.mxu0 0.0
    %1393 = vmatpush1.msra.mxu0 0.0
    %1394 = vmatprep.subr.mxu0 0.0
    %1395 = vmatpush1.msra.mxu0 0.0
    %1396 = vmatprep.subr.mxu0 0.0
    %1397 = vmatpush1.msra.mxu0 0.0
    %1398 = vmatprep.subr.mxu0 0.0
    %1399 = vmatpush1.msra.mxu0 0.0
    %1400 = vmatprep.subr.mxu0 0.0
    %1401 = vmatpush1.msra.mxu0 0.0
    %1402 = vmatprep.subr.mxu0 0.0
    %1403 = vmatpush1.msra.mxu0 0.0
    %1404 = vmatprep.subr.mxu0 0.0
    %1405 = vmatpush1.msra.mxu0 0.0
    %1406 = vmatprep.subr.mxu0 0.0
    %1407 = vmatpush1.msra.mxu0 0.0
    %1408 = vmatprep.subr.mxu0 0.0
    %1409 = vmatpush1.msra.mxu0 0.0
    %1410 = vmatprep.subr.mxu0 0.0
    %1411 = vmatpush1.msra.mxu0 0.0
    %1412 = vmatprep.subr.mxu0 0.0
    %1413 = vmatpush1.msra.mxu0 0.0
    %1414 = vmatprep.subr.mxu0 0.0
    %1415 = vmatpush1.msra.mxu0 0.0
    %1416 = vmatprep.subr.mxu0 0.0
    %1417 = vmatpush1.msra.mxu0 0.0
    %1418 = vmatprep.subr.mxu0 0.0
    %1419 = vmatpush1.msra.mxu0 0.0
    %1420 = vmatprep.subr.mxu0 0.0
    %1421 = vmatpush1.msra.mxu0 0.0
    %1422 = vmatprep.subr.mxu0 0.0
    %1423 = vmatpush1.msra.mxu0 %v1200
    %1424 = vmatprep.subr.mxu0 0.0
    %1425 = vmatpush2.msra.mxu0 0.0
    %1426 = vmatprep.subr.mxu0 0.0
    %1427 = vmatpush2.msra.mxu0 0.0
    %1428 = vmatprep.subr.mxu0 0.0
    %1429 = vmatpush2.msra.mxu0 0.0
    %1430 = vmatprep.subr.mxu0 0.0
    %1431 = vmatpush2.msra.mxu0 0.0
    %1432 = vmatprep.subr.mxu0 0.0
    %1433 = vmatpush2.msra.mxu0 0.0
    %1434 = vmatprep.subr.mxu0 0.0
    %1435 = vmatpush2.msra.mxu0 0.0
    %1436 = vmatprep.subr.mxu0 0.0
    %1437 = vmatpush2.msra.mxu0 0.0
    %1438 = vmatprep.subr.mxu0 0.0
    %1439 = vmatpush2.msra.mxu0 0.0
    %1440 = vmatprep.subr.mxu0 0.0
    %1441 = vmatpush2.msra.mxu0 0.0
    %1442 = vmatprep.subr.mxu0 0.0
    %1443 = vmatpush2.msra.mxu0 0.0
    %1444 = vmatprep.subr.mxu0 0.0
    %1445 = vmatpush2.msra.mxu0 0.0
    %1446 = vmatprep.subr.mxu0 0.0
    %1447 = vmatpush2.msra.mxu0 0.0
    %1448 = vmatprep.subr.mxu0 0.0
    %1449 = vmatpush2.msra.mxu0 0.0
    %1450 = vmatprep.subr.mxu0 0.0
    %1451 = vmatpush2.msra.mxu0 0.0
    %1452 = vmatprep.subr.mxu0 0.0
    %1453 = vmatpush2.msra.mxu0 0.0
    %1454 = vmatprep.subr.mxu0 0.0
    %1455 = vmatpush2.msra.mxu0 0.0
    %1456 = vmatprep.mubr.f32.mxu0 0.0
    %1457 = vmatmul.mubr.f32.gmra.mxu0 %v1390
    %v1458 = vpop.f32.mrf.mxu0
    %v1459 = vadd.f32 0.0, %v1458
    %v1460 = vpop.f32.mrf.mxu0
    %1461 = vdwg.mxu0
    %v1462 = vld [vmem:[#allocation5] sm:$0x3]
    %v1463 = vmul.f32 %v1459, %v1462
    %v1466 = vcombine.high %v279, %v279
    %v1468 = vunpack.c.l.s4 1966171168
    %v1469 = vunpack.c.0.s8 %v1468
    %v1470 = vlaneseq
    %v1471 = vshrl.u32 %v1470, 7
    %v1472 = vsub.s32 %v1469, %v1471
    %v1473 = vrot.slane %v279, %v1472
    %v1475 = vunpack.c.l.s4 1966171168
    %v1476 = vunpack.c.0.s8 %v1475
    %v1477 = vlaneseq
    %v1478 = vshrl.u32 %v1477, 7
    %v1479 = vsub.s32 %v1476, %v1478
    %v1480 = vrot.slane %v1466, %v1479
    %v1481 = vcombine.high %v1473, %v1473
    %v1482 = vcombine.high %v1480, %v1480
    %v1484 = vunpack.c.l.s4 1966171168
    %v1485 = vunpack.c.0.s8 %v1484
    %v1486 = vlaneseq
    %v1487 = vshrl.u32 %v1486, 7
    %v1488 = vsub.s32 %v1485, %v1487
    %v1489 = vrot.slane %v1473, %v1488
    %v1491 = vunpack.c.l.s4 1966171168
    %v1492 = vunpack.c.0.s8 %v1491
    %v1493 = vlaneseq
    %v1494 = vshrl.u32 %v1493, 7
    %v1495 = vsub.s32 %v1492, %v1494
    %v1496 = vrot.slane %v1480, %v1495
    %v1498 = vunpack.c.l.s4 1966171168
    %v1499 = vunpack.c.0.s8 %v1498
    %v1500 = vlaneseq
    %v1501 = vshrl.u32 %v1500, 7
    %v1502 = vsub.s32 %v1499, %v1501
    %v1503 = vrot.slane %v1481, %v1502
    %v1505 = vunpack.c.l.s4 1966171168
    %v1506 = vunpack.c.0.s8 %v1505
    %v1507 = vlaneseq
    %v1508 = vshrl.u32 %v1507, 7
    %v1509 = vsub.s32 %v1506, %v1508
    %v1510 = vrot.slane %v1482, %v1509
    %v1511 = vcombine.high %v1489, %v1489
    %v1512 = vcombine.high %v1496, %v1496
    %v1513 = vcombine.high %v1503, %v1503
    %v1514 = vcombine.high %v280, %v280
    %v1516 = vunpack.c.l.s4 1966171168
    %v1517 = vunpack.c.0.s8 %v1516
    %v1518 = vlaneseq
    %v1519 = vshrl.u32 %v1518, 7
    %v1520 = vsub.s32 %v1517, %v1519
    %v1521 = vrot.slane %v280, %v1520
    %v1523 = vunpack.c.l.s4 1966171168
    %v1524 = vunpack.c.0.s8 %v1523
    %v1525 = vlaneseq
    %v1526 = vshrl.u32 %v1525, 7
    %v1527 = vsub.s32 %v1524, %v1526
    %v1528 = vrot.slane %v1514, %v1527
    %v1529 = vcombine.high %v1521, %v1521
    %v1530 = vcombine.high %v1528, %v1528
    %v1532 = vunpack.c.l.s4 1966171168
    %v1533 = vunpack.c.0.s8 %v1532
    %v1534 = vlaneseq
    %v1535 = vshrl.u32 %v1534, 7
    %v1536 = vsub.s32 %v1533, %v1535
    %v1537 = vrot.slane %v1521, %v1536
    %v1539 = vunpack.c.l.s4 1966171168
    %v1540 = vunpack.c.0.s8 %v1539
    %v1541 = vlaneseq
    %v1542 = vshrl.u32 %v1541, 7
    %v1543 = vsub.s32 %v1540, %v1542
    %v1544 = vrot.slane %v1528, %v1543
    %v1546 = vunpack.c.l.s4 1966171168
    %v1547 = vunpack.c.0.s8 %v1546
    %v1548 = vlaneseq
    %v1549 = vshrl.u32 %v1548, 7
    %v1550 = vsub.s32 %v1547, %v1549
    %v1551 = vrot.slane %v1529, %v1550
    %v1553 = vunpack.c.l.s4 1966171168
    %v1554 = vunpack.c.0.s8 %v1553
    %v1555 = vlaneseq
    %v1556 = vshrl.u32 %v1555, 7
    %v1557 = vsub.s32 %v1554, %v1556
    %v1558 = vrot.slane %v1530, %v1557
    %v1559 = vcombine.high %v1537, %v1537
    %v1560 = vcombine.high %v1544, %v1544
    %v1561 = vcombine.high %v1551, %v1551
    %v1576 = vmul.f32 %v1302, %v1489
    %v1577 = vmul.f32 %v1316, %v1503
    %v1578 = vmul.f32 %v1324, %v1511
    %v1579 = vmul.f32 %v1326, %v1513
    %v1580 = vmul.f32 %v1309, %v1496
    %v1581 = vmul.f32 %v1323, %v1510
    %v1582 = vmul.f32 %v1325, %v1512
    %v1583 = vmul.f32 %v1327, %v1537
    %v1584 = vmul.f32 %v1351, %v1551
    %v1585 = vmul.f32 %v1365, %v1559
    %v1586 = vmul.f32 %v1373, %v1561
    %v1587 = vmul.f32 %v1374, %v1544
    %v1588 = vmul.f32 %v1358, %v1558
    %v1589 = vmul.f32 %v1372, %v1560
    %v1604 = vcombine.low %v1576, %v1577
    %v1605 = vcombine.low %v1578, %v1579
    %v1606 = vcombine.low %v1580, %v1581
    %v1608 = vunpack.c.l.s4 1966171168
    %v1609 = vunpack.c.0.s8 %v1608
    %v1610 = vlaneseq
    %v1611 = vshrl.u32 %v1610, 7
    %v1612 = vsub.s32 %v1609, %v1611
    %v1613 = vrot.slane %v1604, %v1612
    %v1615 = vunpack.c.l.s4 1966171168
    %v1616 = vunpack.c.0.s8 %v1615
    %v1617 = vlaneseq
    %v1618 = vshrl.u32 %v1617, 7
    %v1619 = vsub.s32 %v1616, %v1618
    %v1620 = vrot.slane %v1605, %v1619
    %v1622 = vunpack.c.l.s4 1966171168
    %v1623 = vunpack.c.0.s8 %v1622
    %v1624 = vlaneseq
    %v1625 = vshrl.u32 %v1624, 7
    %v1626 = vsub.s32 %v1623, %v1625
    %v1627 = vrot.slane %v1606, %v1626
    %v1629 = vunpack.c.l.s4 1966171168
    %v1630 = vunpack.c.0.s8 %v1629
    %v1631 = vlaneseq
    %v1632 = vshrl.u32 %v1631, 7
    %v1633 = vsub.s32 %v1630, %v1632
    %v1634 = vrot.slane %v1582, %v1633
    %v1635 = vcombine.low %v1613, %v1620
    %v1636 = vcombine.low %v1627, %v1634
    %v1638 = vunpack.c.l.s4 1966171168
    %v1639 = vunpack.c.0.s8 %v1638
    %v1640 = vlaneseq
    %v1641 = vshrl.u32 %v1640, 7
    %v1642 = vsub.s32 %v1639, %v1641
    %v1643 = vrot.slane %v1635, %v1642
    %v1645 = vunpack.c.l.s4 1966171168
    %v1646 = vunpack.c.0.s8 %v1645
    %v1647 = vlaneseq
    %v1648 = vshrl.u32 %v1647, 7
    %v1649 = vsub.s32 %v1646, %v1648
    %v1650 = vrot.slane %v1636, %v1649
    %v1651 = vcombine.low %v1643, %v1650
    %v1652 = vcombine.low %v1583, %v1584
    %v1653 = vcombine.low %v1585, %v1586
    %v1654 = vcombine.low %v1587, %v1588
    %v1656 = vunpack.c.l.s4 1966171168
    %v1657 = vunpack.c.0.s8 %v1656
    %v1658 = vlaneseq
    %v1659 = vshrl.u32 %v1658, 7
    %v1660 = vsub.s32 %v1657, %v1659
    %v1661 = vrot.slane %v1652, %v1660
    %v1663 = vunpack.c.l.s4 1966171168
    %v1664 = vunpack.c.0.s8 %v1663
    %v1665 = vlaneseq
    %v1666 = vshrl.u32 %v1665, 7
    %v1667 = vsub.s32 %v1664, %v1666
    %v1668 = vrot.slane %v1653, %v1667
    %v1670 = vunpack.c.l.s4 1966171168
    %v1671 = vunpack.c.0.s8 %v1670
    %v1672 = vlaneseq
    %v1673 = vshrl.u32 %v1672, 7
    %v1674 = vsub.s32 %v1671, %v1673
    %v1675 = vrot.slane %v1654, %v1674
    %v1677 = vunpack.c.l.s4 1966171168
    %v1678 = vunpack.c.0.s8 %v1677
    %v1679 = vlaneseq
    %v1680 = vshrl.u32 %v1679, 7
    %v1681 = vsub.s32 %v1678, %v1680
    %v1682 = vrot.slane %v1589, %v1681
    %v1683 = vcombine.low %v1661, %v1668
    %v1684 = vcombine.low %v1675, %v1682
    %v1686 = vunpack.c.l.s4 1966171168
    %v1687 = vunpack.c.0.s8 %v1686
    %v1688 = vlaneseq
    %v1689 = vshrl.u32 %v1688, 7
    %v1690 = vsub.s32 %v1687, %v1689
    %v1691 = vrot.slane %v1683, %v1690
    %v1693 = vunpack.c.l.s4 1966171168
    %v1694 = vunpack.c.0.s8 %v1693
    %v1695 = vlaneseq
    %v1696 = vshrl.u32 %v1695, 7
    %v1697 = vsub.s32 %v1694, %v1696
    %v1698 = vrot.slane %v1684, %v1697
    %v1699 = vcombine.low %v1691, %v1698
    %vm1702 = vcmask 260096
    %v1703 = vsel %vm1702, %v1651, 0.0
    %v1704 = vrot.slane %v1703, 4
    %v1705 = vadd.f32 %v1703, %v1704
    %v1706 = vrot.slane %v1705, 2
    %v1707 = vadd.f32 %v1705, %v1706
    %v1708 = vrot.slane %v1707, 1
    %v1709 = vadd.f32 %v1707, %v1708
    %v1710 = vsel %vm1702, %v1699, 0.0
    %v1711 = vrot.slane %v1710, 4
    %v1712 = vadd.f32 %v1710, %v1711
    %v1713 = vrot.slane %v1712, 2
    %v1714 = vadd.f32 %v1712, %v1713
    %v1715 = vrot.slane %v1714, 1
    %v1716 = vadd.f32 %v1714, %v1715
    %v1719 = vsel %vm811, %v1716, %v1709
    %v1721 = vadd.f32 %v1463, %v1719
    %vm1722 = vcmask 254976
    %1723 = vst.msk [vmem:[#allocation5] sm:$0x3] %vm1722, %v1721
    %1724 = vst.msk [vmem:[#allocation3] sm:$0x3] %vm1134, %v814
    // Predicated region
    $region74: #{tpu_custom_call.1} parent=1 // pred_check
      %p1725 = pneg %p66
    $region75: #{tpu_custom_call.1} parent=1 // pred_check_branch
      %1727 = sbr.rel (%p1725) target = $region77
    $region76: #{tpu_custom_call.1} parent=1 // pred_region
      %v1728 = vld [vmem:[#allocation4] sm:$0x3]
      %v1729 = vrcp.pop %v1728
      %v1731 = vsel %vm1193, %v1729, 0
      %1733 = vmatprep.subr.mxu0 0.0
      %1734 = vmatpush1.msra.mxu0 0.0
      %1735 = vmatprep.subr.mxu0 0.0
      %1736 = vmatpush1.msra.mxu0 0.0
      %1737 = vmatprep.subr.mxu0 0.0
      %1738 = vmatpush1.msra.mxu0 0.0
      %1739 = vmatprep.subr.mxu0 0.0
      %1740 = vmatpush1.msra.mxu0 0.0
      %1741 = vmatprep.subr.mxu0 0.0
      %1742 = vmatpush1.msra.mxu0 0.0
      %1743 = vmatprep.subr.mxu0 0.0
      %1744 = vmatpush1.msra.mxu0 0.0
      %1745 = vmatprep.subr.mxu0 0.0
      %1746 = vmatpush1.msra.mxu0 0.0
      %1747 = vmatprep.subr.mxu0 0.0
      %1748 = vmatpush1.msra.mxu0 0.0
      %1749 = vmatprep.subr.mxu0 0.0
      %1750 = vmatpush1.msra.mxu0 0.0
      %1751 = vmatprep.subr.mxu0 0.0
      %1752 = vmatpush1.msra.mxu0 0.0
      %1753 = vmatprep.subr.mxu0 0.0
      %1754 = vmatpush1.msra.mxu0 0.0
      %1755 = vmatprep.subr.mxu0 0.0
      %1756 = vmatpush1.msra.mxu0 0.0
      %1757 = vmatprep.subr.mxu0 0.0
      %1758 = vmatpush1.msra.mxu0 0.0
      %1759 = vmatprep.subr.mxu0 0.0
      %1760 = vmatpush1.msra.mxu0 0.0
      %1761 = vmatprep.subr.mxu0 0.0
      %1762 = vmatpush1.msra.mxu0 0.0
      %1763 = vmatprep.subr.mxu0 0.0
      %1764 = vmatpush1.msra.mxu0 %v1200
      %1765 = vmatprep.subr.mxu0 0.0
      %1766 = vmatpush2.msra.mxu0 0.0
      %1767 = vmatprep.subr.mxu0 0.0
      %1768 = vmatpush2.msra.mxu0 0.0
      %1769 = vmatprep.subr.mxu0 0.0
      %1770 = vmatpush2.msra.mxu0 0.0
      %1771 = vmatprep.subr.mxu0 0.0
      %1772 = vmatpush2.msra.mxu0 0.0
      %1773 = vmatprep.subr.mxu0 0.0
      %1774 = vmatpush2.msra.mxu0 0.0
      %1775 = vmatprep.subr.mxu0 0.0
      %1776 = vmatpush2.msra.mxu0 0.0
      %1777 = vmatprep.subr.mxu0 0.0
      %1778 = vmatpush2.msra.mxu0 0.0
      %1779 = vmatprep.subr.mxu0 0.0
      %1780 = vmatpush2.msra.mxu0 0.0
      %1781 = vmatprep.subr.mxu0 0.0
      %1782 = vmatpush2.msra.mxu0 0.0
      %1783 = vmatprep.subr.mxu0 0.0
      %1784 = vmatpush2.msra.mxu0 0.0
      %1785 = vmatprep.subr.mxu0 0.0
      %1786 = vmatpush2.msra.mxu0 0.0
      %1787 = vmatprep.subr.mxu0 0.0
      %1788 = vmatpush2.msra.mxu0 0.0
      %1789 = vmatprep.subr.mxu0 0.0
      %1790 = vmatpush2.msra.mxu0 0.0
      %1791 = vmatprep.subr.mxu0 0.0
      %1792 = vmatpush2.msra.mxu0 0.0
      %1793 = vmatprep.subr.mxu0 0.0
      %1794 = vmatpush2.msra.mxu0 0.0
      %1795 = vmatprep.subr.mxu0 0.0
      %1796 = vmatpush2.msra.mxu0 0.0
      %1797 = vmatprep.mubr.f32.mxu0 0.0
      %1798 = vmatmul.mubr.f32.gmra.mxu0 %v1731
      %v1799 = vpop.f32.mrf.mxu0
      %v1800 = vadd.f32 0.0, %v1799
      %v1801 = vpop.f32.mrf.mxu0
      %1802 = vdwg.mxu0
      %v1803 = vld [vmem:[#allocation5] sm:$0x3]
      %v1804 = vmul.f32 %v1803, %v1800
      %v1805 = vld [vmem:[%s9] sm:$0xff]
      %v1806 = vld [vmem:[%s9 + $0x8] sm:$0xff]
      %v1807 = vld [vmem:[%s9 + $0x10] sm:$0xff]
      %v1808 = vld [vmem:[%s9 + $0x18] sm:$0xff]
      %v1809 = vld [vmem:[%s10] sm:$0x1]
      %v1811 = vlaneseq
      %v1812 = vshrl.u32 %v1811, 7
      %v1813 = vsub.s32 0, %v1812
      %v1814 = vrot.slane %v1809, %v1813
      %v1817 = vsel %vm503, %v1804, 0
      %1819 = vmatprep.subr.mxu0 0.0
      %1820 = vmatpush1.msra.mxu0 0.0
      %1821 = vmatprep.subr.mxu0 0.0
      %1822 = vmatpush1.msra.mxu0 0.0
      %1823 = vmatprep.subr.mxu0 0.0
      %1824 = vmatpush1.msra.mxu0 0.0
      %1825 = vmatprep.subr.mxu0 0.0
      %1826 = vmatpush1.msra.mxu0 0.0
      %1827 = vmatprep.subr.mxu0 0.0
      %1828 = vmatpush1.msra.mxu0 0.0
      %1829 = vmatprep.subr.mxu0 0.0
      %1830 = vmatpush1.msra.mxu0 0.0
      %1831 = vmatprep.subr.mxu0 0.0
      %1832 = vmatpush1.msra.mxu0 0.0
      %1833 = vmatprep.subr.mxu0 0.0
      %1834 = vmatpush1.msra.mxu0 0.0
      %1835 = vmatprep.subr.mxu0 0.0
      %1836 = vmatpush1.msra.mxu0 0.0
      %1837 = vmatprep.subr.mxu0 0.0
      %1838 = vmatpush1.msra.mxu0 0.0
      %1839 = vmatprep.subr.mxu0 0.0
      %1840 = vmatpush1.msra.mxu0 0.0
      %1841 = vmatprep.subr.mxu0 0.0
      %1842 = vmatpush1.msra.mxu0 0.0
      %1843 = vmatprep.subr.mxu0 0.0
      %1844 = vmatpush1.msra.mxu0 %v1808
      %1845 = vmatprep.subr.mxu0 0.0
      %1846 = vmatpush1.msra.mxu0 %v1807
      %1847 = vmatprep.subr.mxu0 0.0
      %1848 = vmatpush1.msra.mxu0 %v1806
      %1849 = vmatprep.subr.mxu0 0.0
      %1850 = vmatpush1.msra.mxu0 %v1805
      %1851 = vmatprep.subr.mxu0 0.0
      %1852 = vmatpush2.msra.mxu0 0.0
      %1853 = vmatprep.subr.mxu0 0.0
      %1854 = vmatpush2.msra.mxu0 0.0
      %1855 = vmatprep.subr.mxu0 0.0
      %1856 = vmatpush2.msra.mxu0 0.0
      %1857 = vmatprep.subr.mxu0 0.0
      %1858 = vmatpush2.msra.mxu0 0.0
      %1859 = vmatprep.subr.mxu0 0.0
      %1860 = vmatpush2.msra.mxu0 0.0
      %1861 = vmatprep.subr.mxu0 0.0
      %1862 = vmatpush2.msra.mxu0 0.0
      %1863 = vmatprep.subr.mxu0 0.0
      %1864 = vmatpush2.msra.mxu0 0.0
      %1865 = vmatprep.subr.mxu0 0.0
      %1866 = vmatpush2.msra.mxu0 0.0
      %1867 = vmatprep.subr.mxu0 0.0
      %1868 = vmatpush2.msra.mxu0 0.0
      %1869 = vmatprep.subr.mxu0 0.0
      %1870 = vmatpush2.msra.mxu0 0.0
      %1871 = vmatprep.subr.mxu0 0.0
      %1872 = vmatpush2.msra.mxu0 0.0
      %1873 = vmatprep.subr.mxu0 0.0
      %1874 = vmatpush2.msra.mxu0 0.0
      %1875 = vmatprep.subr.mxu0 0.0
      %1876 = vmatpush2.msra.mxu0 0.0
      %1877 = vmatprep.subr.mxu0 0.0
      %1878 = vmatpush2.msra.mxu0 0.0
      %1879 = vmatprep.subr.mxu0 0.0
      %1880 = vmatpush2.msra.mxu0 0.0
      %1881 = vmatprep.subr.mxu0 0.0
      %1882 = vmatpush2.msra.mxu0 0.0
      %1883 = vmatprep.mubr.f32.mxu0 0.0
      %1884 = vmatmul.mubr.f32.gmra.mxu0 %v1817
      %v1885 = vpop.f32.mrf.mxu0
      %v1886 = vadd.f32 %v1814, %v1885
      %v1887 = vpop.f32.mrf.mxu0
      %1888 = vdwg.mxu0
      %v1889 = vld [vmem:[%s0] sm:$0x3]
      %v1890 = vadd.f32 %v1889, %v1886
      %v1891 = vsel %vm1722, %v1890, 0.0
      %1892 = vadd.xlane.f32.xlu0 %v1891
      %v1893 = vpop.xlane.xlu0 %1892
      %v1894 = vrcp.pop 32.0
      %v1895 = vmul.f32 %v1893, %v1894
      %v1896 = vsub.f32 %v1890, %v1895
      %v1897 = vmul.f32 %v1896, %v1896
      %v1898 = vsel %vm1722, %v1897, 0.0
      %1899 = vadd.xlane.f32.xlu0 %v1898
      %v1900 = vpop.xlane.xlu0 %1899
      %v1901 = vmul.f32 %v1900, %v1894
      %v1902 = vadd.f32 %v1901, 1e-05
      %v1903 = vrsqrt.pop %v1902
      %v1904 = vmul.f32 %v1896, %v1903
      %v1905 = vld [vmem:[%s11] sm:$0x1]
      %v1907 = vlaneseq
      %v1908 = vshrl.u32 %v1907, 7
      %v1909 = vsub.s32 0, %v1908
      %v1910 = vrot.slane %v1905, %v1909
      %v1912 = vmul.f32 %v1904, %v1910
      %v1913 = vld [vmem:[%s12] sm:$0x1]
      %v1915 = vlaneseq
      %v1916 = vshrl.u32 %v1915, 7
      %v1917 = vsub.s32 0, %v1916
      %v1918 = vrot.slane %v1913, %v1917
      %v1920 = vadd.f32 %v1912, %v1918
      %v1921 = vld [vmem:[%s13] sm:$0xff]
      %v1922 = vld [vmem:[%s13 + $0x8] sm:$0xff]
      %v1923 = vld [vmem:[%s13 + $0x10] sm:$0xff]
      %v1924 = vld [vmem:[%s13 + $0x18] sm:$0xff]
      %v1925 = vld [vmem:[%s14] sm:$0x1]
      %v1927 = vlaneseq
      %v1928 = vshrl.u32 %v1927, 7
      %v1929 = vsub.s32 0, %v1928
      %v1930 = vrot.slane %v1925, %v1929
      %v1933 = vsel %vm503, %v1920, 0
      %1935 = vmatprep.subr.mxu0 0.0
      %1936 = vmatpush1.msra.mxu0 0.0
      %1937 = vmatprep.subr.mxu0 0.0
      %1938 = vmatpush1.msra.mxu0 0.0
      %1939 = vmatprep.subr.mxu0 0.0
      %1940 = vmatpush1.msra.mxu0 0.0
      %1941 = vmatprep.subr.mxu0 0.0
      %1942 = vmatpush1.msra.mxu0 0.0
      %1943 = vmatprep.subr.mxu0 0.0
      %1944 = vmatpush1.msra.mxu0 0.0
      %1945 = vmatprep.subr.mxu0 0.0
      %1946 = vmatpush1.msra.mxu0 0.0
      %1947 = vmatprep.subr.mxu0 0.0
      %1948 = vmatpush1.msra.mxu0 0.0
      %1949 = vmatprep.subr.mxu0 0.0
      %1950 = vmatpush1.msra.mxu0 0.0
      %1951 = vmatprep.subr.mxu0 0.0
      %1952 = vmatpush1.msra.mxu0 0.0
      %1953 = vmatprep.subr.mxu0 0.0
      %1954 = vmatpush1.msra.mxu0 0.0
      %1955 = vmatprep.subr.mxu0 0.0
      %1956 = vmatpush1.msra.mxu0 0.0
      %1957 = vmatprep.subr.mxu0 0.0
      %1958 = vmatpush1.msra.mxu0 0.0
      %1959 = vmatprep.subr.mxu0 0.0
      %1960 = vmatpush1.msra.mxu0 %v1924
      %1961 = vmatprep.subr.mxu0 0.0
      %1962 = vmatpush1.msra.mxu0 %v1923
      %1963 = vmatprep.subr.mxu0 0.0
      %1964 = vmatpush1.msra.mxu0 %v1922
      %1965 = vmatprep.subr.mxu0 0.0
      %1966 = vmatpush1.msra.mxu0 %v1921
      %1967 = vmatprep.subr.mxu0 0.0
      %1968 = vmatpush2.msra.mxu0 0.0
      %1969 = vmatprep.subr.mxu0 0.0
      %1970 = vmatpush2.msra.mxu0 0.0
      %1971 = vmatprep.subr.mxu0 0.0
      %1972 = vmatpush2.msra.mxu0 0.0
      %1973 = vmatprep.subr.mxu0 0.0
      %1974 = vmatpush2.msra.mxu0 0.0
      %1975 = vmatprep.subr.mxu0 0.0
      %1976 = vmatpush2.msra.mxu0 0.0
      %1977 = vmatprep.subr.mxu0 0.0
      %1978 = vmatpush2.msra.mxu0 0.0
      %1979 = vmatprep.subr.mxu0 0.0
      %1980 = vmatpush2.msra.mxu0 0.0
      %1981 = vmatprep.subr.mxu0 0.0
      %1982 = vmatpush2.msra.mxu0 0.0
      %1983 = vmatprep.subr.mxu0 0.0
      %1984 = vmatpush2.msra.mxu0 0.0
      %1985 = vmatprep.subr.mxu0 0.0
      %1986 = vmatpush2.msra.mxu0 0.0
      %1987 = vmatprep.subr.mxu0 0.0
      %1988 = vmatpush2.msra.mxu0 0.0
      %1989 = vmatprep.subr.mxu0 0.0
      %1990 = vmatpush2.msra.mxu0 0.0
      %1991 = vmatprep.subr.mxu0 0.0
      %1992 = vmatpush2.msra.mxu0 0.0
      %1993 = vmatprep.subr.mxu0 0.0
      %1994 = vmatpush2.msra.mxu0 0.0
      %1995 = vmatprep.subr.mxu0 0.0
      %1996 = vmatpush2.msra.mxu0 0.0
      %1997 = vmatprep.subr.mxu0 0.0
      %1998 = vmatpush2.msra.mxu0 0.0
      %1999 = vmatprep.mubr.f32.mxu0 0.0
      %2000 = vmatmul.mubr.f32.gmra.mxu0 %v1933
      %v2001 = vpop.f32.mrf.mxu0
      %v2002 = vadd.f32 %v1930, %v2001
      %v2003 = vpop.f32.mrf.mxu0
      %2004 = vdwg.mxu0
      %v2005 = vmul.f32 %v2002, 0.5
      %v2006 = vmul.f32 %v2002, 0.70710677
      %v2007 = verf.f32.pop %v2006
      %v2008 = vadd.f32 %v2007, 1.0
      %v2009 = vmul.f32 %v2005, %v2008
      %v2010 = vld [vmem:[%s15] sm:$0xff]
      %v2011 = vld [vmem:[%s15 + $0x8] sm:$0xff]
      %v2012 = vld [vmem:[%s15 + $0x10] sm:$0xff]
      %v2013 = vld [vmem:[%s15 + $0x18] sm:$0xff]
      %v2014 = vld [vmem:[%s15 + $0x20] sm:$0xff]
      %v2015 = vld [vmem:[%s15 + $0x28] sm:$0xff]
      %v2016 = vld [vmem:[%s15 + $0x30] sm:$0xff]
      %v2017 = vld [vmem:[%s15 + $0x38] sm:$0xff]
      %v2018 = vld [vmem:[%s15 + $0x40] sm:$0xff]
      %v2019 = vld [vmem:[%s15 + $0x48] sm:$0xff]
      %v2020 = vld [vmem:[%s15 + $0x50] sm:$0xff]
      %v2021 = vld [vmem:[%s15 + $0x58] sm:$0xff]
      %v2022 = vld [vmem:[%s15 + $0x60] sm:$0xff]
      %v2023 = vld [vmem:[%s15 + $0x68] sm:$0xff]
      %v2024 = vld [vmem:[%s15 + $0x70] sm:$0xff]
      %v2025 = vld [vmem:[%s15 + $0x78] sm:$0xff]
      %v2026 = vld [vmem:[%s16] sm:$0x1]
      %v2028 = vlaneseq
      %v2029 = vshrl.u32 %v2028, 7
      %v2030 = vsub.s32 0, %v2029
      %v2031 = vrot.slane %v2026, %v2030
      %2033 = vmatprep.subr.mxu0 0.0
      %2034 = vmatpush1.msra.mxu0 %v2025
      %2035 = vmatprep.subr.mxu0 0.0
      %2036 = vmatpush1.msra.mxu0 %v2024
      %2037 = vmatprep.subr.mxu0 0.0
      %2038 = vmatpush1.msra.mxu0 %v2023
      %2039 = vmatprep.subr.mxu0 0.0
      %2040 = vmatpush1.msra.mxu0 %v2022
      %2041 = vmatprep.subr.mxu0 0.0
      %2042 = vmatpush1.msra.mxu0 %v2021
      %2043 = vmatprep.subr.mxu0 0.0
      %2044 = vmatpush1.msra.mxu0 %v2020
      %2045 = vmatprep.subr.mxu0 0.0
      %2046 = vmatpush1.msra.mxu0 %v2019
      %2047 = vmatprep.subr.mxu0 0.0
      %2048 = vmatpush1.msra.mxu0 %v2018
      %2049 = vmatprep.subr.mxu0 0.0
      %2050 = vmatpush1.msra.mxu0 %v2017
      %2051 = vmatprep.subr.mxu0 0.0
      %2052 = vmatpush1.msra.mxu0 %v2016
      %2053 = vmatprep.subr.mxu0 0.0
      %2054 = vmatpush1.msra.mxu0 %v2015
      %2055 = vmatprep.subr.mxu0 0.0
      %2056 = vmatpush1.msra.mxu0 %v2014
      %2057 = vmatprep.subr.mxu0 0.0
      %2058 = vmatpush1.msra.mxu0 %v2013
      %2059 = vmatprep.subr.mxu0 0.0
      %2060 = vmatpush1.msra.mxu0 %v2012
      %2061 = vmatprep.subr.mxu0 0.0
      %2062 = vmatpush1.msra.mxu0 %v2011
      %2063 = vmatprep.subr.mxu0 0.0
      %2064 = vmatpush1.msra.mxu0 %v2010
      %2065 = vmatprep.subr.mxu0 0.0
      %2066 = vmatpush2.msra.mxu0 0.0
      %2067 = vmatprep.subr.mxu0 0.0
      %2068 = vmatpush2.msra.mxu0 0.0
      %2069 = vmatprep.subr.mxu0 0.0
      %2070 = vmatpush2.msra.mxu0 0.0
      %2071 = vmatprep.subr.mxu0 0.0
      %2072 = vmatpush2.msra.mxu0 0.0
      %2073 = vmatprep.subr.mxu0 0.0
      %2074 = vmatpush2.msra.mxu0 0.0
      %2075 = vmatprep.subr.mxu0 0.0
      %2076 = vmatpush2.msra.mxu0 0.0
      %2077 = vmatprep.subr.mxu0 0.0
      %2078 = vmatpush2.msra.mxu0 0.0
      %2079 = vmatprep.subr.mxu0 0.0
      %2080 = vmatpush2.msra.mxu0 0.0
      %2081 = vmatprep.subr.mxu0 0.0
      %2082 = vmatpush2.msra.mxu0 0.0
      %2083 = vmatprep.subr.mxu0 0.0
      %2084 = vmatpush2.msra.mxu0 0.0
      %2085 = vmatprep.subr.mxu0 0.0
      %2086 = vmatpush2.msra.mxu0 0.0
      %2087 = vmatprep.subr.mxu0 0.0
      %2088 = vmatpush2.msra.mxu0 0.0
      %2089 = vmatprep.subr.mxu0 0.0
      %2090 = vmatpush2.msra.mxu0 0.0
      %2091 = vmatprep.subr.mxu0 0.0
      %2092 = vmatpush2.msra.mxu0 0.0
      %2093 = vmatprep.subr.mxu0 0.0
      %2094 = vmatpush2.msra.mxu0 0.0
      %2095 = vmatprep.subr.mxu0 0.0
      %2096 = vmatpush2.msra.mxu0 0.0
      %2097 = vmatprep.mubr.f32.mxu0 0.0
      %2098 = vmatmul.mubr.f32.gmra.mxu0 %v2009
      %v2099 = vpop.f32.mrf.mxu0
      %v2100 = vadd.f32 %v2031, %v2099
      %v2101 = vpop.f32.mrf.mxu0
      %2102 = vdwg.mxu0
      %v2103 = vadd.f32 %v1890, %v2100
      %2104 = vst.msk [vmem:[#allocation6] sm:$0x3] %vm1722, %v2103
    $region77: #{tpu_custom_call.1} parent=1 // pred_fallthru
      _
    // Predicated region
    $region78: #{tpu_custom_call.1} parent=1 // pred_check
      _
    $region79: #{tpu_custom_call.1} parent=1 // pred_check_branch
      %2106 = sbr.rel (0) target = $region81
    $region80: #{tpu_custom_call.1} parent=1 // pred_region
      %s2108 = ssub.s32 32, 32
      %2109 = vsyncadd [#allocation7], %s2108
      %s2111 = sshll.u32 [#allocation6], 4
      %s2112 = int_to_ptr.vmem [resolvable:$true] %s2111
      %2114 = dma.vmem_to_hbm [thread:$0]  %s2112, 32, %s17, [#allocation7]
    $region81: #{tpu_custom_call.1} parent=1 // pred_fallthru
      _
    // Predicated region
    $region82: #{tpu_custom_call.1} parent=1 // pred_check
      _
    $region83: #{tpu_custom_call.1} parent=1 // pred_check_branch
      %2116 = sbr.rel (0) target = $region85
    $region84: #{tpu_custom_call.1} parent=1 // pred_region
      %s2118 = ssub.s32 32, 32
      %2119 = vsyncadd [#allocation9], %s2118
      %s2121 = sshll.u32 [#allocation8], 4
      %s2122 = int_to_ptr.vmem [resolvable:$true] %s2121
      %2124 = dma.vmem_to_hbm [thread:$0]  %s2122, 32, %s18, [#allocation9]
    $region85: #{tpu_custom_call.1} parent=1 // pred_fallthru
      _
    // Predicated region
    $region86: #{tpu_custom_call.1} parent=1 // pred_check
      _
    $region87: #{tpu_custom_call.1} parent=1 // pred_check_branch
      %2126 = sbr.rel (0) target = $region89
    $region88: #{tpu_custom_call.1} parent=1 // pred_region
      %s2128 = ssub.s32 32, 32
      %2129 = vsyncadd [#allocation9], %s2128
      %s2131 = sshll.u32 [#allocation10], 4
      %s2132 = int_to_ptr.vmem [resolvable:$true] %s2131
      %2134 = dma.vmem_to_hbm [thread:$0]  %s2132, 32, %s19, [#allocation9]
    $region89: #{tpu_custom_call.1} parent=1 // pred_fallthru
      _
    // Predicated region
    $region90: #{tpu_custom_call.1} parent=1 // pred_check
      _
    $region91: #{tpu_custom_call.1} parent=1 // pred_check_branch
      %2136 = sbr.rel (0) target = $region93
    $region92: #{tpu_custom_call.1} parent=1 // pred_region
      %2137 = dma.done [#allocation7], 32
    $region93: #{tpu_custom_call.1} parent=1 // pred_fallthru
      _
    // Predicated region
    $region94: #{tpu_custom_call.1} parent=1 // pred_check
      _
    $region95: #{tpu_custom_call.1} parent=1 // pred_check_branch
      %2139 = sbr.rel (0) target = $region97
    $region96: #{tpu_custom_call.1} parent=1 // pred_region
      %2140 = dma.done [#allocation9], 32
    $region97: #{tpu_custom_call.1} parent=1 // pred_fallthru
      _
    // Predicated region
    $region98: #{tpu_custom_call.1} parent=1 // pred_check
      _
    $region99: #{tpu_custom_call.1} parent=1 // pred_check_branch
      %2142 = sbr.rel (0) target = $region101
    $region100: #{tpu_custom_call.1} parent=1 // pred_region
      %2143 = dma.done [#allocation9], 32
    $region101: #{tpu_custom_call.1} parent=1 // pred_fallthru
      _
    %2144 = vsyncpa [#allocation7], 1
    %2145 = vsyncpa [#allocation9], 1

</llo_original>
